<compile_context>
chip_gen: v7x
topology: tpu7x:2x2x1
jax: 0.10.0
libtpu: 0.0.40
codegen_flags: <defaults>
</compile_context>

<pallas_src>
import math
import jax
import jax.numpy as jnp
from jax import lax
from jax.experimental import pallas as pl
from jax.experimental.pallas import tpu as pltpu


# ---------------------------------------------------------------------------
# Fused kernel: L stacked LSTM layers + final Linear, all in one invocation.
# ---------------------------------------------------------------------------
def _make_fused_lstm_kernel(num_layers, T, B, H):
    """Build the fused (L-layer LSTM + FC) kernel for fixed static shapes."""

    def kernel(*refs):
        n_in = 3 + 3 * num_layers + 2
        x_ref, h0_ref, c0_ref = refs[0], refs[1], refs[2]          # (T*B,D),(L,B,H),(L,B,H)
        layer_refs = refs[3:3 + 3 * num_layers]
        wfc_ref = refs[3 + 3 * num_layers]                          # (L*H, H_in)
        bfc_ref = refs[4 + 3 * num_layers]                          # (1, H_in)
        out_ref, hn_ref, cn_ref = refs[n_in], refs[n_in + 1], refs[n_in + 2]
        gx_ref, y_ref = refs[n_in + 3], refs[n_in + 4]              # VMEM scratch

        fc_acc = None
        for l in range(num_layers):
            wih_ref = layer_refs[3 * l + 0]    # (D_l, 4H)  packed W_ih^T  [i|f|g|o]
            whh_ref = layer_refs[3 * l + 1]    # (H,   4H)  packed W_hh^T
            b_ref = layer_refs[3 * l + 2]      # (1,   4H)  b_ih + b_hh
            last_layer = (l == num_layers - 1)

            # ---- batched input projection: ONE MXU matmul for all T steps ----
            src = x_ref[...] if l == 0 else y_ref[...]              # (T*B, D_l)
            gx_ref[...] = (jnp.dot(src, wih_ref[...],
                                   preferred_element_type=jnp.float32)
                           + b_ref[...])

            whh = whh_ref[...]
            h = h0_ref[l]
            c = c0_ref[l]

            # ---- recurrence: only h @ W_hh + gate elementwise (unrolled) ----
            for t in range(T):
                g = (gx_ref[pl.ds(t * B, B), :]
                     + jnp.dot(h, whh, preferred_element_type=jnp.float32))
                i_g = jax.nn.sigmoid(g[:, 0 * H:1 * H])
                f_g = jax.nn.sigmoid(g[:, 1 * H:2 * H])
                g_g = jnp.tanh(g[:, 2 * H:3 * H])
                o_g = jax.nn.sigmoid(g[:, 3 * H:4 * H])
                c = f_g * c + i_g * g_g
                h = o_g * jnp.tanh(c)
                if not last_layer:
                    y_ref[pl.ds(t * B, B), :] = h                   # next layer's input

            hn_ref[l] = h
            cn_ref[l] = c

            # ---- fold this layer's final hidden into the FC output ----------
            # W_fc^T rows [l*H, (l+1)*H) correspond to layer l in the torch
            # permute(1,0,2).view(-1, L*H) flattening order.
            fc_part = jnp.dot(h, wfc_ref[pl.ds(l * H, H), :],
                              preferred_element_type=jnp.float32)
            fc_acc = fc_part if fc_acc is None else fc_acc + fc_part

        out_ref[...] = fc_acc + bfc_ref[...]

    return kernel


# ---------------------------------------------------------------------------
# Weight packing (done ONCE, hoisted out of the forward path)
# ---------------------------------------------------------------------------
def pack_params(lstm_params, fc_params):
    """torch layout -> packed kernel layout: W^T, fused (b_ih + b_hh)."""
    wihs, whhs, bs = [], [], []
    for (w_ih, w_hh, b_ih, b_hh) in lstm_params:
        wihs.append(jnp.asarray(w_ih, jnp.float32).T)               # (D, 4H)
        whhs.append(jnp.asarray(w_hh, jnp.float32).T)               # (H, 4H)
        bs.append((jnp.asarray(b_ih, jnp.float32)
                   + jnp.asarray(b_hh, jnp.float32)).reshape(1, -1))
    w_fc, b_fc = fc_params
    wfc = jnp.asarray(w_fc, jnp.float32).T                          # (L*H, H_in)
    bfc = jnp.asarray(b_fc, jnp.float32).reshape(1, -1)
    return wihs, whhs, bs, wfc, bfc


# ---------------------------------------------------------------------------
# LSTMnet forward (semantics of the PyTorch module)
# ---------------------------------------------------------------------------
def lstmnet_forward(packed, x, hidden, cell):
    """x: (B, T, H_in); hidden, cell: (L, B, H_cell).
    Returns (OpAdj_h_new (B,1,H_in), hidden_new, cell_new) -- torch semantics."""
    wihs, whhs, bs, wfc, bfc = packed
    L = len(wihs)
    B, T, D = x.shape
    H = hidden.shape[-1]
    H_in = wfc.shape[-1]

    # time-major flatten: row t*B + b holds timestep t of batch b (feeds a single
    # (T*B, D) x (D, 4H) projection matmul with a real M dimension for the MXU).
    x_tb = jnp.transpose(x, (1, 0, 2)).reshape(T * B, D).astype(jnp.float32)

    args = [x_tb, hidden.astype(jnp.float32), cell.astype(jnp.float32)]
    for l in range(L):
        args += [wihs[l], whhs[l], bs[l]]
    args += [wfc, bfc]

    flops = 2 * B * (L * H) * H_in
    for l in range(L):
        flops += 2 * T * B * (wihs[l].shape[0] * 4 * H + H * 4 * H)
    transcendentals = 5 * L * T * B * H
    bytes_accessed = (sum(int(a.size) for a in args)
                      + B * H_in + 2 * L * B * H) * 4

    out, hn, cn = pl.pallas_call(
        _make_fused_lstm_kernel(L, T, B, H),
        out_shape=(
            jax.ShapeDtypeStruct((B, H_in), jnp.float32),
            jax.ShapeDtypeStruct((L, B, H), jnp.float32),
            jax.ShapeDtypeStruct((L, B, H), jnp.float32),
        ),
        in_specs=[pl.BlockSpec(memory_space=pltpu.MemorySpace.VMEM)] * len(args),
        out_specs=(
            pl.BlockSpec(memory_space=pltpu.MemorySpace.VMEM),
            pl.BlockSpec(memory_space=pltpu.MemorySpace.VMEM),
            pl.BlockSpec(memory_space=pltpu.MemorySpace.VMEM),
        ),
        scratch_shapes=[
            pltpu.VMEM((T * B, 4 * H), jnp.float32),   # gx slab (all timesteps)
            pltpu.VMEM((T * B, H), jnp.float32),       # inter-layer activations (VMEM only)
        ],
        cost_estimate=pl.CostEstimate(flops=flops,
                                      transcendentals=transcendentals,
                                      bytes_accessed=bytes_accessed),
    )(*args)
    return out.reshape(B, 1, H_in), hn, cn


# ---------------------------------------------------------------------------
# Deterministic parameter init (torch default uniform + forget-gate bias fill)
# ---------------------------------------------------------------------------
def init_params(key, H_in, H_cell, num_layers):
    k = 1.0 / math.sqrt(H_cell)
    lstm_params = []
    for l in range(num_layers):
        d_in = H_in if l == 0 else H_cell
        key, k1, k2, k3, k4 = jax.random.split(key, 5)
        w_ih = jax.random.uniform(k1, (4 * H_cell, d_in), minval=-k, maxval=k)
        w_hh = jax.random.uniform(k2, (4 * H_cell, H_cell), minval=-k, maxval=k)
        b_ih = jax.random.uniform(k3, (4 * H_cell,), minval=-k, maxval=k)
        b_hh = jax.random.uniform(k4, (4 * H_cell,), minval=-k, maxval=k)
        n = 4 * H_cell
        b_ih = b_ih.at[n // 4:n // 2].set(1.0)   # forget-gate bias fill, as in torch __init__
        b_hh = b_hh.at[n // 4:n // 2].set(1.0)
        lstm_params.append((w_ih, w_hh, b_ih, b_hh))
    kf = 1.0 / math.sqrt(num_layers * H_cell)
    key, k1, k2 = jax.random.split(key, 3)
    w_fc = jax.random.uniform(k1, (H_in, num_layers * H_cell), minval=-kf, maxval=kf)
    b_fc = jax.random.uniform(k2, (H_in,), minval=-kf, maxval=kf)
    return lstm_params, (w_fc, b_fc)


# ---------------------------------------------------------------------------
# Pure-JAX reference (correctness check)
# ---------------------------------------------------------------------------
def _lstm_layer_ref(x, h0, c0, w_ih, w_hh, b_ih, b_hh):
    H = h0.shape[-1]

    def step(carry, xt):
        h, c = carry
        g = xt @ w_ih.T + b_ih + h @ w_hh.T + b_hh
        i = jax.nn.sigmoid(g[:, :H])
        f = jax.nn.sigmoid(g[:, H:2 * H])
        gg = jnp.tanh(g[:, 2 * H:3 * H])
        o = jax.nn.sigmoid(g[:, 3 * H:])
        c_new = f * c + i * gg
        h_new = o * jnp.tanh(c_new)
        return (h_new, c_new), h_new

    (hT, cT), ys = lax.scan(step, (h0, c0), jnp.swapaxes(x, 0, 1))
    return jnp.swapaxes(ys, 0, 1), hT, cT


def lstmnet_forward_ref(lstm_params, fc_params, x, hidden, cell):
    L = len(lstm_params)
    B = x.shape[0]
    H = hidden.shape[-1]
    layer_in = x
    hn, cn = [], []
    for l in range(L):
        y, hT, cT = _lstm_layer_ref(layer_in, hidden[l], cell[l], *lstm_params[l])
        hn.append(hT)
        cn.append(cT)
        layer_in = y
    hn = jnp.stack(hn, 0)
    cn = jnp.stack(cn, 0)
    hn_flat = jnp.transpose(hn, (1, 0, 2)).reshape(B, L * H)
    w_fc, b_fc = fc_params
    out = hn_flat @ w_fc.T + b_fc
    return out.reshape(B, 1, x.shape[-1]), hn, cn


if __name__ == "__main__":
    # Small shapes consistent with the module's forward pass.
    B, T = 2, 8
    H_in, H_cell, num_layers = 64, 32, 3

    key = jax.random.PRNGKey(0)
    k_x, k_h, k_c, k_p = jax.random.split(key, 4)
    x = jax.random.normal(k_x, (B, T, H_in), dtype=jnp.float32)
    hidden = jax.random.normal(k_h, (num_layers, B, H_cell), dtype=jnp.float32)
    cell = jax.random.normal(k_c, (num_layers, B, H_cell), dtype=jnp.float32)

    lstm_params, fc_params = init_params(k_p, H_in, H_cell, num_layers)
    packed = pack_params(lstm_params, fc_params)   # hoisted out of the forward path

    out, hn, cn = lstmnet_forward(packed, x, hidden, cell)
    out = jax.block_until_ready(out)

    ref_out, ref_hn, ref_cn = lstmnet_forward_ref(lstm_params, fc_params, x, hidden, cell)

    assert out.shape == (B, 1, H_in)
    assert hn.shape == (num_layers, B, H_cell)
    assert cn.shape == (num_layers, B, H_cell)
    assert jnp.allclose(out, ref_out, rtol=1e-4, atol=1e-4), "fc output mismatch"
    assert jnp.allclose(hn, ref_hn, rtol=1e-4, atol=1e-4), "hidden state mismatch"
    assert jnp.allclose(cn, ref_cn, rtol=1e-4, atol=1e-4), "cell state mismatch"

    print("KERNEL_OK")
</pallas_src>

<mosaic_0001>
module attributes {stable_mosaic.version = 11 : i64} {
  func.func @kernel(%arg0: memref<16x64xf32, #tpu.memory_space<vmem>>, %arg1: memref<3x2x32xf32, #tpu.memory_space<vmem>>, %arg2: memref<3x2x32xf32, #tpu.memory_space<vmem>>, %arg3: memref<64x128xf32, #tpu.memory_space<vmem>>, %arg4: memref<32x128xf32, #tpu.memory_space<vmem>>, %arg5: memref<1x128xf32, #tpu.memory_space<vmem>>, %arg6: memref<32x128xf32, #tpu.memory_space<vmem>>, %arg7: memref<32x128xf32, #tpu.memory_space<vmem>>, %arg8: memref<1x128xf32, #tpu.memory_space<vmem>>, %arg9: memref<32x128xf32, #tpu.memory_space<vmem>>, %arg10: memref<32x128xf32, #tpu.memory_space<vmem>>, %arg11: memref<1x128xf32, #tpu.memory_space<vmem>>, %arg12: memref<96x64xf32, #tpu.memory_space<vmem>>, %arg13: memref<1x64xf32, #tpu.memory_space<vmem>>, %arg14: memref<2x64xf32, #tpu.memory_space<vmem>>, %arg15: memref<3x2x32xf32, #tpu.memory_space<vmem>>, %arg16: memref<3x2x32xf32, #tpu.memory_space<vmem>>, %arg17: memref<16x128xf32, #tpu.memory_space<vmem>>, %arg18: memref<16x32xf32, #tpu.memory_space<vmem>>) attributes {dimension_semantics = [], scalar_prefetch = 0 : i64, scratch_operands = 2 : i64, tpu.core_type = #tpu.core_type<tc>} {
    %c0 = arith.constant 0 : index
    %c0_0 = arith.constant 0 : index
    %0 = vector.load %arg0[%c0, %c0_0] : memref<16x64xf32, #tpu.memory_space<vmem>>, vector<16x64xf32>
    %c0_1 = arith.constant 0 : index
    %c0_2 = arith.constant 0 : index
    %1 = vector.load %arg3[%c0_1, %c0_2] : memref<64x128xf32, #tpu.memory_space<vmem>>, vector<64x128xf32>
    %cst = arith.constant dense<0.000000e+00> : vector<16x128xf32>
    %2 = tpu.matmul %0, %1, %cst {dimension_numbers = #tpu.dot_dimension_numbers<[1], [0], [0], [1], [0, 0, 1, 1], [], []>} : vector<16x64xf32>, vector<64x128xf32>, vector<16x128xf32> -> vector<16x128xf32>
    %c0_3 = arith.constant 0 : index
    %c0_4 = arith.constant 0 : index
    %3 = vector.load %arg5[%c0_3, %c0_4] : memref<1x128xf32, #tpu.memory_space<vmem>>, vector<1x128xf32>
    %4 = vector.broadcast %3 : vector<1x128xf32> to vector<16x128xf32>
    %5 = arith.addf %2, %4 : vector<16x128xf32>
    %c0_5 = arith.constant 0 : index
    %c0_6 = arith.constant 0 : index
    %6 = vector.load %arg17[%c0_5, %c0_6] : memref<16x128xf32, #tpu.memory_space<vmem>>, vector<16x128xf32>
    tpu.vector_store %arg17[%c0_5, %c0_6], %5 {strides = array<i32>} : memref<16x128xf32, #tpu.memory_space<vmem>>, vector<16x128xf32>,
    %c0_7 = arith.constant 0 : index
    %c0_8 = arith.constant 0 : index
    %7 = vector.load %arg4[%c0_7, %c0_8] : memref<32x128xf32, #tpu.memory_space<vmem>>, vector<32x128xf32>
    %c0_9 = arith.constant 0 : index
    %c0_10 = arith.constant 0 : index
    %c0_11 = arith.constant 0 : index
    %8 = vector.load %arg1[%c0_9, %c0_10, %c0_11] : memref<3x2x32xf32, #tpu.memory_space<vmem>>, vector<1x2x32xf32>
    %9 = vector.shape_cast %8 : vector<1x2x32xf32> to vector<2x32xf32>
    %c0_12 = arith.constant 0 : index
    %c0_13 = arith.constant 0 : index
    %c0_14 = arith.constant 0 : index
    %10 = vector.load %arg2[%c0_12, %c0_13, %c0_14] : memref<3x2x32xf32, #tpu.memory_space<vmem>>, vector<1x2x32xf32>
    %11 = vector.shape_cast %10 : vector<1x2x32xf32> to vector<2x32xf32>
    %c0_15 = arith.constant 0 : index
    %c0_16 = arith.constant 0 : index
    %12 = vector.load %arg17[%c0_15, %c0_16] : memref<16x128xf32, #tpu.memory_space<vmem>>, vector<2x128xf32>
    %cst_17 = arith.constant dense<0.000000e+00> : vector<2x128xf32>
    %13 = tpu.matmul %9, %7, %cst_17 {dimension_numbers = #tpu.dot_dimension_numbers<[1], [0], [0], [1], [0, 0, 1, 1], [], []>} : vector<2x32xf32>, vector<32x128xf32>, vector<2x128xf32> -> vector<2x128xf32>
    %14 = arith.addf %12, %13 : vector<2x128xf32>
    %15 = vector.extract_strided_slice %14 {offsets = [0, 0], sizes = [2, 32], strides = [1, 1]} : vector<2x128xf32> to vector<2x32xf32>
    %16 = arith.negf %15 : vector<2x32xf32>
    %17 = math.exp %16 : vector<2x32xf32>
    %cst_18 = arith.constant 1.000000e+00 : f32
    %18 = vector.broadcast %cst_18 : f32 to vector<2x32xf32>
    %19 = arith.addf %18, %17 : vector<2x32xf32>
    %20 = arith.divf %18, %19 : vector<2x32xf32>
    %21 = vector.extract_strided_slice %14 {offsets = [0, 32], sizes = [2, 32], strides = [1, 1]} : vector<2x128xf32> to vector<2x32xf32>
    %22 = arith.negf %21 : vector<2x32xf32>
    %23 = math.exp %22 : vector<2x32xf32>
    %cst_19 = arith.constant 1.000000e+00 : f32
    %24 = vector.broadcast %cst_19 : f32 to vector<2x32xf32>
    %25 = arith.addf %24, %23 : vector<2x32xf32>
    %26 = arith.divf %24, %25 : vector<2x32xf32>
    %27 = vector.extract_strided_slice %14 {offsets = [0, 64], sizes = [2, 32], strides = [1, 1]} : vector<2x128xf32> to vector<2x32xf32>
    %28 = math.tanh %27 : vector<2x32xf32>
    %29 = vector.extract_strided_slice %14 {offsets = [0, 96], sizes = [2, 32], strides = [1, 1]} : vector<2x128xf32> to vector<2x32xf32>
    %30 = arith.negf %29 : vector<2x32xf32>
    %31 = math.exp %30 : vector<2x32xf32>
    %cst_20 = arith.constant 1.000000e+00 : f32
    %32 = vector.broadcast %cst_20 : f32 to vector<2x32xf32>
    %33 = arith.addf %32, %31 : vector<2x32xf32>
    %34 = arith.divf %32, %33 : vector<2x32xf32>
    %35 = arith.mulf %26, %11 : vector<2x32xf32>
    %36 = arith.mulf %20, %28 : vector<2x32xf32>
    %37 = arith.addf %35, %36 : vector<2x32xf32>
    %38 = math.tanh %37 : vector<2x32xf32>
    %39 = arith.mulf %34, %38 : vector<2x32xf32>
    %c0_21 = arith.constant 0 : index
    %c0_22 = arith.constant 0 : index
    %40 = vector.load %arg18[%c0_21, %c0_22] : memref<16x32xf32, #tpu.memory_space<vmem>>, vector<2x32xf32>
    tpu.vector_store %arg18[%c0_21, %c0_22], %39 {strides = array<i32>} : memref<16x32xf32, #tpu.memory_space<vmem>>, vector<2x32xf32>,
    %c2 = arith.constant 2 : index
    %c0_23 = arith.constant 0 : index
    %41 = vector.load %arg17[%c2, %c0_23] : memref<16x128xf32, #tpu.memory_space<vmem>>, vector<2x128xf32>
    %cst_24 = arith.constant dense<0.000000e+00> : vector<2x128xf32>
    %42 = tpu.matmul %39, %7, %cst_24 {dimension_numbers = #tpu.dot_dimension_numbers<[1], [0], [0], [1], [0, 0, 1, 1], [], []>} : vector<2x32xf32>, vector<32x128xf32>, vector<2x128xf32> -> vector<2x128xf32>
    %43 = arith.addf %41, %42 : vector<2x128xf32>
    %44 = vector.extract_strided_slice %43 {offsets = [0, 0], sizes = [2, 32], strides = [1, 1]} : vector<2x128xf32> to vector<2x32xf32>
    %45 = arith.negf %44 : vector<2x32xf32>
    %46 = math.exp %45 : vector<2x32xf32>
    %cst_25 = arith.constant 1.000000e+00 : f32
    %47 = vector.broadcast %cst_25 : f32 to vector<2x32xf32>
    %48 = arith.addf %47, %46 : vector<2x32xf32>
    %49 = arith.divf %47, %48 : vector<2x32xf32>
    %50 = vector.extract_strided_slice %43 {offsets = [0, 32], sizes = [2, 32], strides = [1, 1]} : vector<2x128xf32> to vector<2x32xf32>
    %51 = arith.negf %50 : vector<2x32xf32>
    %52 = math.exp %51 : vector<2x32xf32>
    %cst_26 = arith.constant 1.000000e+00 : f32
    %53 = vector.broadcast %cst_26 : f32 to vector<2x32xf32>
    %54 = arith.addf %53, %52 : vector<2x32xf32>
    %55 = arith.divf %53, %54 : vector<2x32xf32>
    %56 = vector.extract_strided_slice %43 {offsets = [0, 64], sizes = [2, 32], strides = [1, 1]} : vector<2x128xf32> to vector<2x32xf32>
    %57 = math.tanh %56 : vector<2x32xf32>
    %58 = vector.extract_strided_slice %43 {offsets = [0, 96], sizes = [2, 32], strides = [1, 1]} : vector<2x128xf32> to vector<2x32xf32>
    %59 = arith.negf %58 : vector<2x32xf32>
    %60 = math.exp %59 : vector<2x32xf32>
    %cst_27 = arith.constant 1.000000e+00 : f32
    %61 = vector.broadcast %cst_27 : f32 to vector<2x32xf32>
    %62 = arith.addf %61, %60 : vector<2x32xf32>
    %63 = arith.divf %61, %62 : vector<2x32xf32>
    %64 = arith.mulf %55, %37 : vector<2x32xf32>
    %65 = arith.mulf %49, %57 : vector<2x32xf32>
    %66 = arith.addf %64, %65 : vector<2x32xf32>
    %67 = math.tanh %66 : vector<2x32xf32>
    %68 = arith.mulf %63, %67 : vector<2x32xf32>
    %c2_28 = arith.constant 2 : index
    %c0_29 = arith.constant 0 : index
    %69 = vector.load %arg18[%c2_28, %c0_29] : memref<16x32xf32, #tpu.memory_space<vmem>>, vector<2x32xf32>
    tpu.vector_store %arg18[%c2_28, %c0_29], %68 {strides = array<i32>} : memref<16x32xf32, #tpu.memory_space<vmem>>, vector<2x32xf32>,
    %c4 = arith.constant 4 : index
    %c0_30 = arith.constant 0 : index
    %70 = vector.load %arg17[%c4, %c0_30] : memref<16x128xf32, #tpu.memory_space<vmem>>, vector<2x128xf32>
    %cst_31 = arith.constant dense<0.000000e+00> : vector<2x128xf32>
    %71 = tpu.matmul %68, %7, %cst_31 {dimension_numbers = #tpu.dot_dimension_numbers<[1], [0], [0], [1], [0, 0, 1, 1], [], []>} : vector<2x32xf32>, vector<32x128xf32>, vector<2x128xf32> -> vector<2x128xf32>
    %72 = arith.addf %70, %71 : vector<2x128xf32>
    %73 = vector.extract_strided_slice %72 {offsets = [0, 0], sizes = [2, 32], strides = [1, 1]} : vector<2x128xf32> to vector<2x32xf32>
    %74 = arith.negf %73 : vector<2x32xf32>
    %75 = math.exp %74 : vector<2x32xf32>
    %cst_32 = arith.constant 1.000000e+00 : f32
    %76 = vector.broadcast %cst_32 : f32 to vector<2x32xf32>
    %77 = arith.addf %76, %75 : vector<2x32xf32>
    %78 = arith.divf %76, %77 : vector<2x32xf32>
    %79 = vector.extract_strided_slice %72 {offsets = [0, 32], sizes = [2, 32], strides = [1, 1]} : vector<2x128xf32> to vector<2x32xf32>
    %80 = arith.negf %79 : vector<2x32xf32>
    %81 = math.exp %80 : vector<2x32xf32>
    %cst_33 = arith.constant 1.000000e+00 : f32
    %82 = vector.broadcast %cst_33 : f32 to vector<2x32xf32>
    %83 = arith.addf %82, %81 : vector<2x32xf32>
    %84 = arith.divf %82, %83 : vector<2x32xf32>
    %85 = vector.extract_strided_slice %72 {offsets = [0, 64], sizes = [2, 32], strides = [1, 1]} : vector<2x128xf32> to vector<2x32xf32>
    %86 = math.tanh %85 : vector<2x32xf32>
    %87 = vector.extract_strided_slice %72 {offsets = [0, 96], sizes = [2, 32], strides = [1, 1]} : vector<2x128xf32> to vector<2x32xf32>
    %88 = arith.negf %87 : vector<2x32xf32>
    %89 = math.exp %88 : vector<2x32xf32>
    %cst_34 = arith.constant 1.000000e+00 : f32
    %90 = vector.broadcast %cst_34 : f32 to vector<2x32xf32>
    %91 = arith.addf %90, %89 : vector<2x32xf32>
    %92 = arith.divf %90, %91 : vector<2x32xf32>
    %93 = arith.mulf %84, %66 : vector<2x32xf32>
    %94 = arith.mulf %78, %86 : vector<2x32xf32>
    %95 = arith.addf %93, %94 : vector<2x32xf32>
    %96 = math.tanh %95 : vector<2x32xf32>
    %97 = arith.mulf %92, %96 : vector<2x32xf32>
    %c4_35 = arith.constant 4 : index
    %c0_36 = arith.constant 0 : index
    %98 = vector.load %arg18[%c4_35, %c0_36] : memref<16x32xf32, #tpu.memory_space<vmem>>, vector<2x32xf32>
    tpu.vector_store %arg18[%c4_35, %c0_36], %97 {strides = array<i32>} : memref<16x32xf32, #tpu.memory_space<vmem>>, vector<2x32xf32>,
    %c6 = arith.constant 6 : index
    %c0_37 = arith.constant 0 : index
    %99 = vector.load %arg17[%c6, %c0_37] : memref<16x128xf32, #tpu.memory_space<vmem>>, vector<2x128xf32>
    %cst_38 = arith.constant dense<0.000000e+00> : vector<2x128xf32>
    %100 = tpu.matmul %97, %7, %cst_38 {dimension_numbers = #tpu.dot_dimension_numbers<[1], [0], [0], [1], [0, 0, 1, 1], [], []>} : vector<2x32xf32>, vector<32x128xf32>, vector<2x128xf32> -> vector<2x128xf32>
    %101 = arith.addf %99, %100 : vector<2x128xf32>
    %102 = vector.extract_strided_slice %101 {offsets = [0, 0], sizes = [2, 32], strides = [1, 1]} : vector<2x128xf32> to vector<2x32xf32>
    %103 = arith.negf %102 : vector<2x32xf32>
    %104 = math.exp %103 : vector<2x32xf32>
    %cst_39 = arith.constant 1.000000e+00 : f32
    %105 = vector.broadcast %cst_39 : f32 to vector<2x32xf32>
    %106 = arith.addf %105, %104 : vector<2x32xf32>
    %107 = arith.divf %105, %106 : vector<2x32xf32>
    %108 = vector.extract_strided_slice %101 {offsets = [0, 32], sizes = [2, 32], strides = [1, 1]} : vector<2x128xf32> to vector<2x32xf32>
    %109 = arith.negf %108 : vector<2x32xf32>
    %110 = math.exp %109 : vector<2x32xf32>
    %cst_40 = arith.constant 1.000000e+00 : f32
    %111 = vector.broadcast %cst_40 : f32 to vector<2x32xf32>
    %112 = arith.addf %111, %110 : vector<2x32xf32>
    %113 = arith.divf %111, %112 : vector<2x32xf32>
    %114 = vector.extract_strided_slice %101 {offsets = [0, 64], sizes = [2, 32], strides = [1, 1]} : vector<2x128xf32> to vector<2x32xf32>
    %115 = math.tanh %114 : vector<2x32xf32>
    %116 = vector.extract_strided_slice %101 {offsets = [0, 96], sizes = [2, 32], strides = [1, 1]} : vector<2x128xf32> to vector<2x32xf32>
    %117 = arith.negf %116 : vector<2x32xf32>
    %118 = math.exp %117 : vector<2x32xf32>
    %cst_41 = arith.constant 1.000000e+00 : f32
    %119 = vector.broadcast %cst_41 : f32 to vector<2x32xf32>
    %120 = arith.addf %119, %118 : vector<2x32xf32>
    %121 = arith.divf %119, %120 : vector<2x32xf32>
    %122 = arith.mulf %113, %95 : vector<2x32xf32>
    %123 = arith.mulf %107, %115 : vector<2x32xf32>
    %124 = arith.addf %122, %123 : vector<2x32xf32>
    %125 = math.tanh %124 : vector<2x32xf32>
    %126 = arith.mulf %121, %125 : vector<2x32xf32>
    %c6_42 = arith.constant 6 : index
    %c0_43 = arith.constant 0 : index
    %127 = vector.load %arg18[%c6_42, %c0_43] : memref<16x32xf32, #tpu.memory_space<vmem>>, vector<2x32xf32>
    tpu.vector_store %arg18[%c6_42, %c0_43], %126 {strides = array<i32>} : memref<16x32xf32, #tpu.memory_space<vmem>>, vector<2x32xf32>,
    %c8 = arith.constant 8 : index
    %c0_44 = arith.constant 0 : index
    %128 = vector.load %arg17[%c8, %c0_44] : memref<16x128xf32, #tpu.memory_space<vmem>>, vector<2x128xf32>
    %cst_45 = arith.constant dense<0.000000e+00> : vector<2x128xf32>
    %129 = tpu.matmul %126, %7, %cst_45 {dimension_numbers = #tpu.dot_dimension_numbers<[1], [0], [0], [1], [0, 0, 1, 1], [], []>} : vector<2x32xf32>, vector<32x128xf32>, vector<2x128xf32> -> vector<2x128xf32>
    %130 = arith.addf %128, %129 : vector<2x128xf32>
    %131 = vector.extract_strided_slice %130 {offsets = [0, 0], sizes = [2, 32], strides = [1, 1]} : vector<2x128xf32> to vector<2x32xf32>
    %132 = arith.negf %131 : vector<2x32xf32>
    %133 = math.exp %132 : vector<2x32xf32>
    %cst_46 = arith.constant 1.000000e+00 : f32
    %134 = vector.broadcast %cst_46 : f32 to vector<2x32xf32>
    %135 = arith.addf %134, %133 : vector<2x32xf32>
    %136 = arith.divf %134, %135 : vector<2x32xf32>
    %137 = vector.extract_strided_slice %130 {offsets = [0, 32], sizes = [2, 32], strides = [1, 1]} : vector<2x128xf32> to vector<2x32xf32>
    %138 = arith.negf %137 : vector<2x32xf32>
    %139 = math.exp %138 : vector<2x32xf32>
    %cst_47 = arith.constant 1.000000e+00 : f32
    %140 = vector.broadcast %cst_47 : f32 to vector<2x32xf32>
    %141 = arith.addf %140, %139 : vector<2x32xf32>
    %142 = arith.divf %140, %141 : vector<2x32xf32>
    %143 = vector.extract_strided_slice %130 {offsets = [0, 64], sizes = [2, 32], strides = [1, 1]} : vector<2x128xf32> to vector<2x32xf32>
    %144 = math.tanh %143 : vector<2x32xf32>
    %145 = vector.extract_strided_slice %130 {offsets = [0, 96], sizes = [2, 32], strides = [1, 1]} : vector<2x128xf32> to vector<2x32xf32>
    %146 = arith.negf %145 : vector<2x32xf32>
    %147 = math.exp %146 : vector<2x32xf32>
    %cst_48 = arith.constant 1.000000e+00 : f32
    %148 = vector.broadcast %cst_48 : f32 to vector<2x32xf32>
    %149 = arith.addf %148, %147 : vector<2x32xf32>
    %150 = arith.divf %148, %149 : vector<2x32xf32>
    %151 = arith.mulf %142, %124 : vector<2x32xf32>
    %152 = arith.mulf %136, %144 : vector<2x32xf32>
    %153 = arith.addf %151, %152 : vector<2x32xf32>
    %154 = math.tanh %153 : vector<2x32xf32>
    %155 = arith.mulf %150, %154 : vector<2x32xf32>
    %c8_49 = arith.constant 8 : index
    %c0_50 = arith.constant 0 : index
    %156 = vector.load %arg18[%c8_49, %c0_50] : memref<16x32xf32, #tpu.memory_space<vmem>>, vector<2x32xf32>
    tpu.vector_store %arg18[%c8_49, %c0_50], %155 {strides = array<i32>} : memref<16x32xf32, #tpu.memory_space<vmem>>, vector<2x32xf32>,
    %c10 = arith.constant 10 : index
    %c0_51 = arith.constant 0 : index
    %157 = vector.load %arg17[%c10, %c0_51] : memref<16x128xf32, #tpu.memory_space<vmem>>, vector<2x128xf32>
    %cst_52 = arith.constant dense<0.000000e+00> : vector<2x128xf32>
    %158 = tpu.matmul %155, %7, %cst_52 {dimension_numbers = #tpu.dot_dimension_numbers<[1], [0], [0], [1], [0, 0, 1, 1], [], []>} : vector<2x32xf32>, vector<32x128xf32>, vector<2x128xf32> -> vector<2x128xf32>
    %159 = arith.addf %157, %158 : vector<2x128xf32>
    %160 = vector.extract_strided_slice %159 {offsets = [0, 0], sizes = [2, 32], strides = [1, 1]} : vector<2x128xf32> to vector<2x32xf32>
    %161 = arith.negf %160 : vector<2x32xf32>
    %162 = math.exp %161 : vector<2x32xf32>
    %cst_53 = arith.constant 1.000000e+00 : f32
    %163 = vector.broadcast %cst_53 : f32 to vector<2x32xf32>
    %164 = arith.addf %163, %162 : vector<2x32xf32>
    %165 = arith.divf %163, %164 : vector<2x32xf32>
    %166 = vector.extract_strided_slice %159 {offsets = [0, 32], sizes = [2, 32], strides = [1, 1]} : vector<2x128xf32> to vector<2x32xf32>
    %167 = arith.negf %166 : vector<2x32xf32>
    %168 = math.exp %167 : vector<2x32xf32>
    %cst_54 = arith.constant 1.000000e+00 : f32
    %169 = vector.broadcast %cst_54 : f32 to vector<2x32xf32>
    %170 = arith.addf %169, %168 : vector<2x32xf32>
    %171 = arith.divf %169, %170 : vector<2x32xf32>
    %172 = vector.extract_strided_slice %159 {offsets = [0, 64], sizes = [2, 32], strides = [1, 1]} : vector<2x128xf32> to vector<2x32xf32>
    %173 = math.tanh %172 : vector<2x32xf32>
    %174 = vector.extract_strided_slice %159 {offsets = [0, 96], sizes = [2, 32], strides = [1, 1]} : vector<2x128xf32> to vector<2x32xf32>
    %175 = arith.negf %174 : vector<2x32xf32>
    %176 = math.exp %175 : vector<2x32xf32>
    %cst_55 = arith.constant 1.000000e+00 : f32
    %177 = vector.broadcast %cst_55 : f32 to vector<2x32xf32>
    %178 = arith.addf %177, %176 : vector<2x32xf32>
    %179 = arith.divf %177, %178 : vector<2x32xf32>
    %180 = arith.mulf %171, %153 : vector<2x32xf32>
    %181 = arith.mulf %165, %173 : vector<2x32xf32>
    %182 = arith.addf %180, %181 : vector<2x32xf32>
    %183 = math.tanh %182 : vector<2x32xf32>
    %184 = arith.mulf %179, %183 : vector<2x32xf32>
    %c10_56 = arith.constant 10 : index
    %c0_57 = arith.constant 0 : index
    %185 = vector.load %arg18[%c10_56, %c0_57] : memref<16x32xf32, #tpu.memory_space<vmem>>, vector<2x32xf32>
    tpu.vector_store %arg18[%c10_56, %c0_57], %184 {strides = array<i32>} : memref<16x32xf32, #tpu.memory_space<vmem>>, vector<2x32xf32>,
    %c12 = arith.constant 12 : index
    %c0_58 = arith.constant 0 : index
    %186 = vector.load %arg17[%c12, %c0_58] : memref<16x128xf32, #tpu.memory_space<vmem>>, vector<2x128xf32>
    %cst_59 = arith.constant dense<0.000000e+00> : vector<2x128xf32>
    %187 = tpu.matmul %184, %7, %cst_59 {dimension_numbers = #tpu.dot_dimension_numbers<[1], [0], [0], [1], [0, 0, 1, 1], [], []>} : vector<2x32xf32>, vector<32x128xf32>, vector<2x128xf32> -> vector<2x128xf32>
    %188 = arith.addf %186, %187 : vector<2x128xf32>
    %189 = vector.extract_strided_slice %188 {offsets = [0, 0], sizes = [2, 32], strides = [1, 1]} : vector<2x128xf32> to vector<2x32xf32>
    %190 = arith.negf %189 : vector<2x32xf32>
    %191 = math.exp %190 : vector<2x32xf32>
    %cst_60 = arith.constant 1.000000e+00 : f32
    %192 = vector.broadcast %cst_60 : f32 to vector<2x32xf32>
    %193 = arith.addf %192, %191 : vector<2x32xf32>
    %194 = arith.divf %192, %193 : vector<2x32xf32>
    %195 = vector.extract_strided_slice %188 {offsets = [0, 32], sizes = [2, 32], strides = [1, 1]} : vector<2x128xf32> to vector<2x32xf32>
    %196 = arith.negf %195 : vector<2x32xf32>
    %197 = math.exp %196 : vector<2x32xf32>
    %cst_61 = arith.constant 1.000000e+00 : f32
    %198 = vector.broadcast %cst_61 : f32 to vector<2x32xf32>
    %199 = arith.addf %198, %197 : vector<2x32xf32>
    %200 = arith.divf %198, %199 : vector<2x32xf32>
    %201 = vector.extract_strided_slice %188 {offsets = [0, 64], sizes = [2, 32], strides = [1, 1]} : vector<2x128xf32> to vector<2x32xf32>
    %202 = math.tanh %201 : vector<2x32xf32>
    %203 = vector.extract_strided_slice %188 {offsets = [0, 96], sizes = [2, 32], strides = [1, 1]} : vector<2x128xf32> to vector<2x32xf32>
    %204 = arith.negf %203 : vector<2x32xf32>
    %205 = math.exp %204 : vector<2x32xf32>
    %cst_62 = arith.constant 1.000000e+00 : f32
    %206 = vector.broadcast %cst_62 : f32 to vector<2x32xf32>
    %207 = arith.addf %206, %205 : vector<2x32xf32>
    %208 = arith.divf %206, %207 : vector<2x32xf32>
    %209 = arith.mulf %200, %182 : vector<2x32xf32>
    %210 = arith.mulf %194, %202 : vector<2x32xf32>
    %211 = arith.addf %209, %210 : vector<2x32xf32>
    %212 = math.tanh %211 : vector<2x32xf32>
    %213 = arith.mulf %208, %212 : vector<2x32xf32>
    %c12_63 = arith.constant 12 : index
    %c0_64 = arith.constant 0 : index
    %214 = vector.load %arg18[%c12_63, %c0_64] : memref<16x32xf32, #tpu.memory_space<vmem>>, vector<2x32xf32>
    tpu.vector_store %arg18[%c12_63, %c0_64], %213 {strides = array<i32>} : memref<16x32xf32, #tpu.memory_space<vmem>>, vector<2x32xf32>,
    %c14 = arith.constant 14 : index
    %c0_65 = arith.constant 0 : index
    %215 = vector.load %arg17[%c14, %c0_65] : memref<16x128xf32, #tpu.memory_space<vmem>>, vector<2x128xf32>
    %cst_66 = arith.constant dense<0.000000e+00> : vector<2x128xf32>
    %216 = tpu.matmul %213, %7, %cst_66 {dimension_numbers = #tpu.dot_dimension_numbers<[1], [0], [0], [1], [0, 0, 1, 1], [], []>} : vector<2x32xf32>, vector<32x128xf32>, vector<2x128xf32> -> vector<2x128xf32>
    %217 = arith.addf %215, %216 : vector<2x128xf32>
    %218 = vector.extract_strided_slice %217 {offsets = [0, 0], sizes = [2, 32], strides = [1, 1]} : vector<2x128xf32> to vector<2x32xf32>
    %219 = arith.negf %218 : vector<2x32xf32>
    %220 = math.exp %219 : vector<2x32xf32>
    %cst_67 = arith.constant 1.000000e+00 : f32
    %221 = vector.broadcast %cst_67 : f32 to vector<2x32xf32>
    %222 = arith.addf %221, %220 : vector<2x32xf32>
    %223 = arith.divf %221, %222 : vector<2x32xf32>
    %224 = vector.extract_strided_slice %217 {offsets = [0, 32], sizes = [2, 32], strides = [1, 1]} : vector<2x128xf32> to vector<2x32xf32>
    %225 = arith.negf %224 : vector<2x32xf32>
    %226 = math.exp %225 : vector<2x32xf32>
    %cst_68 = arith.constant 1.000000e+00 : f32
    %227 = vector.broadcast %cst_68 : f32 to vector<2x32xf32>
    %228 = arith.addf %227, %226 : vector<2x32xf32>
    %229 = arith.divf %227, %228 : vector<2x32xf32>
    %230 = vector.extract_strided_slice %217 {offsets = [0, 64], sizes = [2, 32], strides = [1, 1]} : vector<2x128xf32> to vector<2x32xf32>
    %231 = math.tanh %230 : vector<2x32xf32>
    %232 = vector.extract_strided_slice %217 {offsets = [0, 96], sizes = [2, 32], strides = [1, 1]} : vector<2x128xf32> to vector<2x32xf32>
    %233 = arith.negf %232 : vector<2x32xf32>
    %234 = math.exp %233 : vector<2x32xf32>
    %cst_69 = arith.constant 1.000000e+00 : f32
    %235 = vector.broadcast %cst_69 : f32 to vector<2x32xf32>
    %236 = arith.addf %235, %234 : vector<2x32xf32>
    %237 = arith.divf %235, %236 : vector<2x32xf32>
    %238 = arith.mulf %229, %211 : vector<2x32xf32>
    %239 = arith.mulf %223, %231 : vector<2x32xf32>
    %240 = arith.addf %238, %239 : vector<2x32xf32>
    %241 = math.tanh %240 : vector<2x32xf32>
    %242 = arith.mulf %237, %241 : vector<2x32xf32>
    %c14_70 = arith.constant 14 : index
    %c0_71 = arith.constant 0 : index
    %243 = vector.load %arg18[%c14_70, %c0_71] : memref<16x32xf32, #tpu.memory_space<vmem>>, vector<2x32xf32>
    tpu.vector_store %arg18[%c14_70, %c0_71], %242 {strides = array<i32>} : memref<16x32xf32, #tpu.memory_space<vmem>>, vector<2x32xf32>,
    %c0_72 = arith.constant 0 : index
    %c0_73 = arith.constant 0 : index
    %c0_74 = arith.constant 0 : index
    %244 = vector.load %arg15[%c0_72, %c0_73, %c0_74] : memref<3x2x32xf32, #tpu.memory_space<vmem>>, vector<1x2x32xf32>
    %245 = vector.shape_cast %244 : vector<1x2x32xf32> to vector<2x32xf32>
    %246 = vector.shape_cast %242 : vector<2x32xf32> to vector<1x2x32xf32>
    tpu.vector_store %arg15[%c0_72, %c0_73, %c0_74], %246 {strides = array<i32>} : memref<3x2x32xf32, #tpu.memory_space<vmem>>, vector<1x2x32xf32>,
    %c0_75 = arith.constant 0 : index
    %c0_76 = arith.constant 0 : index
    %c0_77 = arith.constant 0 : index
    %247 = vector.load %arg16[%c0_75, %c0_76, %c0_77] : memref<3x2x32xf32, #tpu.memory_space<vmem>>, vector<1x2x32xf32>
    %248 = vector.shape_cast %247 : vector<1x2x32xf32> to vector<2x32xf32>
    %249 = vector.shape_cast %240 : vector<2x32xf32> to vector<1x2x32xf32>
    tpu.vector_store %arg16[%c0_75, %c0_76, %c0_77], %249 {strides = array<i32>} : memref<3x2x32xf32, #tpu.memory_space<vmem>>, vector<1x2x32xf32>,
    %c0_78 = arith.constant 0 : index
    %c0_79 = arith.constant 0 : index
    %250 = vector.load %arg12[%c0_78, %c0_79] : memref<96x64xf32, #tpu.memory_space<vmem>>, vector<32x64xf32>
    %cst_80 = arith.constant dense<0.000000e+00> : vector<2x64xf32>
    %251 = tpu.matmul %242, %250, %cst_80 {dimension_numbers = #tpu.dot_dimension_numbers<[1], [0], [0], [1], [0, 0, 1, 1], [], []>} : vector<2x32xf32>, vector<32x64xf32>, vector<2x64xf32> -> vector<2x64xf32>
    %c0_81 = arith.constant 0 : index
    %c0_82 = arith.constant 0 : index
    %252 = vector.load %arg18[%c0_81, %c0_82] : memref<16x32xf32, #tpu.memory_space<vmem>>, vector<16x32xf32>
    %c0_83 = arith.constant 0 : index
    %c0_84 = arith.constant 0 : index
    %253 = vector.load %arg6[%c0_83, %c0_84] : memref<32x128xf32, #tpu.memory_space<vmem>>, vector<32x128xf32>
    %cst_85 = arith.constant dense<0.000000e+00> : vector<16x128xf32>
    %254 = tpu.matmul %252, %253, %cst_85 {dimension_numbers = #tpu.dot_dimension_numbers<[1], [0], [0], [1], [0, 0, 1, 1], [], []>} : vector<16x32xf32>, vector<32x128xf32>, vector<16x128xf32> -> vector<16x128xf32>
    %c0_86 = arith.constant 0 : index
    %c0_87 = arith.constant 0 : index
    %255 = vector.load %arg8[%c0_86, %c0_87] : memref<1x128xf32, #tpu.memory_space<vmem>>, vector<1x128xf32>
    %256 = vector.broadcast %255 : vector<1x128xf32> to vector<16x128xf32>
    %257 = arith.addf %254, %256 : vector<16x128xf32>
    %c0_88 = arith.constant 0 : index
    %c0_89 = arith.constant 0 : index
    %258 = vector.load %arg17[%c0_88, %c0_89] : memref<16x128xf32, #tpu.memory_space<vmem>>, vector<16x128xf32>
    tpu.vector_store %arg17[%c0_88, %c0_89], %257 {strides = array<i32>} : memref<16x128xf32, #tpu.memory_space<vmem>>, vector<16x128xf32>,
    %c0_90 = arith.constant 0 : index
    %c0_91 = arith.constant 0 : index
    %259 = vector.load %arg7[%c0_90, %c0_91] : memref<32x128xf32, #tpu.memory_space<vmem>>, vector<32x128xf32>
    %c1 = arith.constant 1 : index
    %c0_92 = arith.constant 0 : index
    %c0_93 = arith.constant 0 : index
    %260 = vector.load %arg1[%c1, %c0_92, %c0_93] : memref<3x2x32xf32, #tpu.memory_space<vmem>>, vector<1x2x32xf32>
    %261 = vector.shape_cast %260 : vector<1x2x32xf32> to vector<2x32xf32>
    %c1_94 = arith.constant 1 : index
    %c0_95 = arith.constant 0 : index
    %c0_96 = arith.constant 0 : index
    %262 = vector.load %arg2[%c1_94, %c0_95, %c0_96] : memref<3x2x32xf32, #tpu.memory_space<vmem>>, vector<1x2x32xf32>
    %263 = vector.shape_cast %262 : vector<1x2x32xf32> to vector<2x32xf32>
    %c0_97 = arith.constant 0 : index
    %c0_98 = arith.constant 0 : index
    %264 = vector.load %arg17[%c0_97, %c0_98] : memref<16x128xf32, #tpu.memory_space<vmem>>, vector<2x128xf32>
    %cst_99 = arith.constant dense<0.000000e+00> : vector<2x128xf32>
    %265 = tpu.matmul %261, %259, %cst_99 {dimension_numbers = #tpu.dot_dimension_numbers<[1], [0], [0], [1], [0, 0, 1, 1], [], []>} : vector<2x32xf32>, vector<32x128xf32>, vector<2x128xf32> -> vector<2x128xf32>
    %266 = arith.addf %264, %265 : vector<2x128xf32>
    %267 = vector.extract_strided_slice %266 {offsets = [0, 0], sizes = [2, 32], strides = [1, 1]} : vector<2x128xf32> to vector<2x32xf32>
    %268 = arith.negf %267 : vector<2x32xf32>
    %269 = math.exp %268 : vector<2x32xf32>
    %cst_100 = arith.constant 1.000000e+00 : f32
    %270 = vector.broadcast %cst_100 : f32 to vector<2x32xf32>
    %271 = arith.addf %270, %269 : vector<2x32xf32>
    %272 = arith.divf %270, %271 : vector<2x32xf32>
    %273 = vector.extract_strided_slice %266 {offsets = [0, 32], sizes = [2, 32], strides = [1, 1]} : vector<2x128xf32> to vector<2x32xf32>
    %274 = arith.negf %273 : vector<2x32xf32>
    %275 = math.exp %274 : vector<2x32xf32>
    %cst_101 = arith.constant 1.000000e+00 : f32
    %276 = vector.broadcast %cst_101 : f32 to vector<2x32xf32>
    %277 = arith.addf %276, %275 : vector<2x32xf32>
    %278 = arith.divf %276, %277 : vector<2x32xf32>
    %279 = vector.extract_strided_slice %266 {offsets = [0, 64], sizes = [2, 32], strides = [1, 1]} : vector<2x128xf32> to vector<2x32xf32>
    %280 = math.tanh %279 : vector<2x32xf32>
    %281 = vector.extract_strided_slice %266 {offsets = [0, 96], sizes = [2, 32], strides = [1, 1]} : vector<2x128xf32> to vector<2x32xf32>
    %282 = arith.negf %281 : vector<2x32xf32>
    %283 = math.exp %282 : vector<2x32xf32>
    %cst_102 = arith.constant 1.000000e+00 : f32
    %284 = vector.broadcast %cst_102 : f32 to vector<2x32xf32>
    %285 = arith.addf %284, %283 : vector<2x32xf32>
    %286 = arith.divf %284, %285 : vector<2x32xf32>
    %287 = arith.mulf %278, %263 : vector<2x32xf32>
    %288 = arith.mulf %272, %280 : vector<2x32xf32>
    %289 = arith.addf %287, %288 : vector<2x32xf32>
    %290 = math.tanh %289 : vector<2x32xf32>
    %291 = arith.mulf %286, %290 : vector<2x32xf32>
    %c0_103 = arith.constant 0 : index
    %c0_104 = arith.constant 0 : index
    %292 = vector.load %arg18[%c0_103, %c0_104] : memref<16x32xf32, #tpu.memory_space<vmem>>, vector<2x32xf32>
    tpu.vector_store %arg18[%c0_103, %c0_104], %291 {strides = array<i32>} : memref<16x32xf32, #tpu.memory_space<vmem>>, vector<2x32xf32>,
    %c2_105 = arith.constant 2 : index
    %c0_106 = arith.constant 0 : index
    %293 = vector.load %arg17[%c2_105, %c0_106] : memref<16x128xf32, #tpu.memory_space<vmem>>, vector<2x128xf32>
    %cst_107 = arith.constant dense<0.000000e+00> : vector<2x128xf32>
    %294 = tpu.matmul %291, %259, %cst_107 {dimension_numbers = #tpu.dot_dimension_numbers<[1], [0], [0], [1], [0, 0, 1, 1], [], []>} : vector<2x32xf32>, vector<32x128xf32>, vector<2x128xf32> -> vector<2x128xf32>
    %295 = arith.addf %293, %294 : vector<2x128xf32>
    %296 = vector.extract_strided_slice %295 {offsets = [0, 0], sizes = [2, 32], strides = [1, 1]} : vector<2x128xf32> to vector<2x32xf32>
    %297 = arith.negf %296 : vector<2x32xf32>
    %298 = math.exp %297 : vector<2x32xf32>
    %cst_108 = arith.constant 1.000000e+00 : f32
    %299 = vector.broadcast %cst_108 : f32 to vector<2x32xf32>
    %300 = arith.addf %299, %298 : vector<2x32xf32>
    %301 = arith.divf %299, %300 : vector<2x32xf32>
    %302 = vector.extract_strided_slice %295 {offsets = [0, 32], sizes = [2, 32], strides = [1, 1]} : vector<2x128xf32> to vector<2x32xf32>
    %303 = arith.negf %302 : vector<2x32xf32>
    %304 = math.exp %303 : vector<2x32xf32>
    %cst_109 = arith.constant 1.000000e+00 : f32
    %305 = vector.broadcast %cst_109 : f32 to vector<2x32xf32>
    %306 = arith.addf %305, %304 : vector<2x32xf32>
    %307 = arith.divf %305, %306 : vector<2x32xf32>
    %308 = vector.extract_strided_slice %295 {offsets = [0, 64], sizes = [2, 32], strides = [1, 1]} : vector<2x128xf32> to vector<2x32xf32>
    %309 = math.tanh %308 : vector<2x32xf32>
    %310 = vector.extract_strided_slice %295 {offsets = [0, 96], sizes = [2, 32], strides = [1, 1]} : vector<2x128xf32> to vector<2x32xf32>
    %311 = arith.negf %310 : vector<2x32xf32>
    %312 = math.exp %311 : vector<2x32xf32>
    %cst_110 = arith.constant 1.000000e+00 : f32
    %313 = vector.broadcast %cst_110 : f32 to vector<2x32xf32>
    %314 = arith.addf %313, %312 : vector<2x32xf32>
    %315 = arith.divf %313, %314 : vector<2x32xf32>
    %316 = arith.mulf %307, %289 : vector<2x32xf32>
    %317 = arith.mulf %301, %309 : vector<2x32xf32>
    %318 = arith.addf %316, %317 : vector<2x32xf32>
    %319 = math.tanh %318 : vector<2x32xf32>
    %320 = arith.mulf %315, %319 : vector<2x32xf32>
    %c2_111 = arith.constant 2 : index
    %c0_112 = arith.constant 0 : index
    %321 = vector.load %arg18[%c2_111, %c0_112] : memref<16x32xf32, #tpu.memory_space<vmem>>, vector<2x32xf32>
    tpu.vector_store %arg18[%c2_111, %c0_112], %320 {strides = array<i32>} : memref<16x32xf32, #tpu.memory_space<vmem>>, vector<2x32xf32>,
    %c4_113 = arith.constant 4 : index
    %c0_114 = arith.constant 0 : index
    %322 = vector.load %arg17[%c4_113, %c0_114] : memref<16x128xf32, #tpu.memory_space<vmem>>, vector<2x128xf32>
    %cst_115 = arith.constant dense<0.000000e+00> : vector<2x128xf32>
    %323 = tpu.matmul %320, %259, %cst_115 {dimension_numbers = #tpu.dot_dimension_numbers<[1], [0], [0], [1], [0, 0, 1, 1], [], []>} : vector<2x32xf32>, vector<32x128xf32>, vector<2x128xf32> -> vector<2x128xf32>
    %324 = arith.addf %322, %323 : vector<2x128xf32>
    %325 = vector.extract_strided_slice %324 {offsets = [0, 0], sizes = [2, 32], strides = [1, 1]} : vector<2x128xf32> to vector<2x32xf32>
    %326 = arith.negf %325 : vector<2x32xf32>
    %327 = math.exp %326 : vector<2x32xf32>
    %cst_116 = arith.constant 1.000000e+00 : f32
    %328 = vector.broadcast %cst_116 : f32 to vector<2x32xf32>
    %329 = arith.addf %328, %327 : vector<2x32xf32>
    %330 = arith.divf %328, %329 : vector<2x32xf32>
    %331 = vector.extract_strided_slice %324 {offsets = [0, 32], sizes = [2, 32], strides = [1, 1]} : vector<2x128xf32> to vector<2x32xf32>
    %332 = arith.negf %331 : vector<2x32xf32>
    %333 = math.exp %332 : vector<2x32xf32>
    %cst_117 = arith.constant 1.000000e+00 : f32
    %334 = vector.broadcast %cst_117 : f32 to vector<2x32xf32>
    %335 = arith.addf %334, %333 : vector<2x32xf32>
    %336 = arith.divf %334, %335 : vector<2x32xf32>
    %337 = vector.extract_strided_slice %324 {offsets = [0, 64], sizes = [2, 32], strides = [1, 1]} : vector<2x128xf32> to vector<2x32xf32>
    %338 = math.tanh %337 : vector<2x32xf32>
    %339 = vector.extract_strided_slice %324 {offsets = [0, 96], sizes = [2, 32], strides = [1, 1]} : vector<2x128xf32> to vector<2x32xf32>
    %340 = arith.negf %339 : vector<2x32xf32>
    %341 = math.exp %340 : vector<2x32xf32>
    %cst_118 = arith.constant 1.000000e+00 : f32
    %342 = vector.broadcast %cst_118 : f32 to vector<2x32xf32>
    %343 = arith.addf %342, %341 : vector<2x32xf32>
    %344 = arith.divf %342, %343 : vector<2x32xf32>
    %345 = arith.mulf %336, %318 : vector<2x32xf32>
    %346 = arith.mulf %330, %338 : vector<2x32xf32>
    %347 = arith.addf %345, %346 : vector<2x32xf32>
    %348 = math.tanh %347 : vector<2x32xf32>
    %349 = arith.mulf %344, %348 : vector<2x32xf32>
    %c4_119 = arith.constant 4 : index
    %c0_120 = arith.constant 0 : index
    %350 = vector.load %arg18[%c4_119, %c0_120] : memref<16x32xf32, #tpu.memory_space<vmem>>, vector<2x32xf32>
    tpu.vector_store %arg18[%c4_119, %c0_120], %349 {strides = array<i32>} : memref<16x32xf32, #tpu.memory_space<vmem>>, vector<2x32xf32>,
    %c6_121 = arith.constant 6 : index
    %c0_122 = arith.constant 0 : index
    %351 = vector.load %arg17[%c6_121, %c0_122] : memref<16x128xf32, #tpu.memory_space<vmem>>, vector<2x128xf32>
    %cst_123 = arith.constant dense<0.000000e+00> : vector<2x128xf32>
    %352 = tpu.matmul %349, %259, %cst_123 {dimension_numbers = #tpu.dot_dimension_numbers<[1], [0], [0], [1], [0, 0, 1, 1], [], []>} : vector<2x32xf32>, vector<32x128xf32>, vector<2x128xf32> -> vector<2x128xf32>
    %353 = arith.addf %351, %352 : vector<2x128xf32>
    %354 = vector.extract_strided_slice %353 {offsets = [0, 0], sizes = [2, 32], strides = [1, 1]} : vector<2x128xf32> to vector<2x32xf32>
    %355 = arith.negf %354 : vector<2x32xf32>
    %356 = math.exp %355 : vector<2x32xf32>
    %cst_124 = arith.constant 1.000000e+00 : f32
    %357 = vector.broadcast %cst_124 : f32 to vector<2x32xf32>
    %358 = arith.addf %357, %356 : vector<2x32xf32>
    %359 = arith.divf %357, %358 : vector<2x32xf32>
    %360 = vector.extract_strided_slice %353 {offsets = [0, 32], sizes = [2, 32], strides = [1, 1]} : vector<2x128xf32> to vector<2x32xf32>
    %361 = arith.negf %360 : vector<2x32xf32>
    %362 = math.exp %361 : vector<2x32xf32>
    %cst_125 = arith.constant 1.000000e+00 : f32
    %363 = vector.broadcast %cst_125 : f32 to vector<2x32xf32>
    %364 = arith.addf %363, %362 : vector<2x32xf32>
    %365 = arith.divf %363, %364 : vector<2x32xf32>
    %366 = vector.extract_strided_slice %353 {offsets = [0, 64], sizes = [2, 32], strides = [1, 1]} : vector<2x128xf32> to vector<2x32xf32>
    %367 = math.tanh %366 : vector<2x32xf32>
    %368 = vector.extract_strided_slice %353 {offsets = [0, 96], sizes = [2, 32], strides = [1, 1]} : vector<2x128xf32> to vector<2x32xf32>
    %369 = arith.negf %368 : vector<2x32xf32>
    %370 = math.exp %369 : vector<2x32xf32>
    %cst_126 = arith.constant 1.000000e+00 : f32
    %371 = vector.broadcast %cst_126 : f32 to vector<2x32xf32>
    %372 = arith.addf %371, %370 : vector<2x32xf32>
    %373 = arith.divf %371, %372 : vector<2x32xf32>
    %374 = arith.mulf %365, %347 : vector<2x32xf32>
    %375 = arith.mulf %359, %367 : vector<2x32xf32>
    %376 = arith.addf %374, %375 : vector<2x32xf32>
    %377 = math.tanh %376 : vector<2x32xf32>
    %378 = arith.mulf %373, %377 : vector<2x32xf32>
    %c6_127 = arith.constant 6 : index
    %c0_128 = arith.constant 0 : index
    %379 = vector.load %arg18[%c6_127, %c0_128] : memref<16x32xf32, #tpu.memory_space<vmem>>, vector<2x32xf32>
    tpu.vector_store %arg18[%c6_127, %c0_128], %378 {strides = array<i32>} : memref<16x32xf32, #tpu.memory_space<vmem>>, vector<2x32xf32>,
    %c8_129 = arith.constant 8 : index
    %c0_130 = arith.constant 0 : index
    %380 = vector.load %arg17[%c8_129, %c0_130] : memref<16x128xf32, #tpu.memory_space<vmem>>, vector<2x128xf32>
    %cst_131 = arith.constant dense<0.000000e+00> : vector<2x128xf32>
    %381 = tpu.matmul %378, %259, %cst_131 {dimension_numbers = #tpu.dot_dimension_numbers<[1], [0], [0], [1], [0, 0, 1, 1], [], []>} : vector<2x32xf32>, vector<32x128xf32>, vector<2x128xf32> -> vector<2x128xf32>
    %382 = arith.addf %380, %381 : vector<2x128xf32>
    %383 = vector.extract_strided_slice %382 {offsets = [0, 0], sizes = [2, 32], strides = [1, 1]} : vector<2x128xf32> to vector<2x32xf32>
    %384 = arith.negf %383 : vector<2x32xf32>
    %385 = math.exp %384 : vector<2x32xf32>
    %cst_132 = arith.constant 1.000000e+00 : f32
    %386 = vector.broadcast %cst_132 : f32 to vector<2x32xf32>
    %387 = arith.addf %386, %385 : vector<2x32xf32>
    %388 = arith.divf %386, %387 : vector<2x32xf32>
    %389 = vector.extract_strided_slice %382 {offsets = [0, 32], sizes = [2, 32], strides = [1, 1]} : vector<2x128xf32> to vector<2x32xf32>
    %390 = arith.negf %389 : vector<2x32xf32>
    %391 = math.exp %390 : vector<2x32xf32>
    %cst_133 = arith.constant 1.000000e+00 : f32
    %392 = vector.broadcast %cst_133 : f32 to vector<2x32xf32>
    %393 = arith.addf %392, %391 : vector<2x32xf32>
    %394 = arith.divf %392, %393 : vector<2x32xf32>
    %395 = vector.extract_strided_slice %382 {offsets = [0, 64], sizes = [2, 32], strides = [1, 1]} : vector<2x128xf32> to vector<2x32xf32>
    %396 = math.tanh %395 : vector<2x32xf32>
    %397 = vector.extract_strided_slice %382 {offsets = [0, 96], sizes = [2, 32], strides = [1, 1]} : vector<2x128xf32> to vector<2x32xf32>
    %398 = arith.negf %397 : vector<2x32xf32>
    %399 = math.exp %398 : vector<2x32xf32>
    %cst_134 = arith.constant 1.000000e+00 : f32
    %400 = vector.broadcast %cst_134 : f32 to vector<2x32xf32>
    %401 = arith.addf %400, %399 : vector<2x32xf32>
    %402 = arith.divf %400, %401 : vector<2x32xf32>
    %403 = arith.mulf %394, %376 : vector<2x32xf32>
    %404 = arith.mulf %388, %396 : vector<2x32xf32>
    %405 = arith.addf %403, %404 : vector<2x32xf32>
    %406 = math.tanh %405 : vector<2x32xf32>
    %407 = arith.mulf %402, %406 : vector<2x32xf32>
    %c8_135 = arith.constant 8 : index
    %c0_136 = arith.constant 0 : index
    %408 = vector.load %arg18[%c8_135, %c0_136] : memref<16x32xf32, #tpu.memory_space<vmem>>, vector<2x32xf32>
    tpu.vector_store %arg18[%c8_135, %c0_136], %407 {strides = array<i32>} : memref<16x32xf32, #tpu.memory_space<vmem>>, vector<2x32xf32>,
    %c10_137 = arith.constant 10 : index
    %c0_138 = arith.constant 0 : index
    %409 = vector.load %arg17[%c10_137, %c0_138] : memref<16x128xf32, #tpu.memory_space<vmem>>, vector<2x128xf32>
    %cst_139 = arith.constant dense<0.000000e+00> : vector<2x128xf32>
    %410 = tpu.matmul %407, %259, %cst_139 {dimension_numbers = #tpu.dot_dimension_numbers<[1], [0], [0], [1], [0, 0, 1, 1], [], []>} : vector<2x32xf32>, vector<32x128xf32>, vector<2x128xf32> -> vector<2x128xf32>
    %411 = arith.addf %409, %410 : vector<2x128xf32>
    %412 = vector.extract_strided_slice %411 {offsets = [0, 0], sizes = [2, 32], strides = [1, 1]} : vector<2x128xf32> to vector<2x32xf32>
    %413 = arith.negf %412 : vector<2x32xf32>
    %414 = math.exp %413 : vector<2x32xf32>
    %cst_140 = arith.constant 1.000000e+00 : f32
    %415 = vector.broadcast %cst_140 : f32 to vector<2x32xf32>
    %416 = arith.addf %415, %414 : vector<2x32xf32>
    %417 = arith.divf %415, %416 : vector<2x32xf32>
    %418 = vector.extract_strided_slice %411 {offsets = [0, 32], sizes = [2, 32], strides = [1, 1]} : vector<2x128xf32> to vector<2x32xf32>
    %419 = arith.negf %418 : vector<2x32xf32>
    %420 = math.exp %419 : vector<2x32xf32>
    %cst_141 = arith.constant 1.000000e+00 : f32
    %421 = vector.broadcast %cst_141 : f32 to vector<2x32xf32>
    %422 = arith.addf %421, %420 : vector<2x32xf32>
    %423 = arith.divf %421, %422 : vector<2x32xf32>
    %424 = vector.extract_strided_slice %411 {offsets = [0, 64], sizes = [2, 32], strides = [1, 1]} : vector<2x128xf32> to vector<2x32xf32>
    %425 = math.tanh %424 : vector<2x32xf32>
    %426 = vector.extract_strided_slice %411 {offsets = [0, 96], sizes = [2, 32], strides = [1, 1]} : vector<2x128xf32> to vector<2x32xf32>
    %427 = arith.negf %426 : vector<2x32xf32>
    %428 = math.exp %427 : vector<2x32xf32>
    %cst_142 = arith.constant 1.000000e+00 : f32
    %429 = vector.broadcast %cst_142 : f32 to vector<2x32xf32>
    %430 = arith.addf %429, %428 : vector<2x32xf32>
    %431 = arith.divf %429, %430 : vector<2x32xf32>
    %432 = arith.mulf %423, %405 : vector<2x32xf32>
    %433 = arith.mulf %417, %425 : vector<2x32xf32>
    %434 = arith.addf %432, %433 : vector<2x32xf32>
    %435 = math.tanh %434 : vector<2x32xf32>
    %436 = arith.mulf %431, %435 : vector<2x32xf32>
    %c10_143 = arith.constant 10 : index
    %c0_144 = arith.constant 0 : index
    %437 = vector.load %arg18[%c10_143, %c0_144] : memref<16x32xf32, #tpu.memory_space<vmem>>, vector<2x32xf32>
    tpu.vector_store %arg18[%c10_143, %c0_144], %436 {strides = array<i32>} : memref<16x32xf32, #tpu.memory_space<vmem>>, vector<2x32xf32>,
    %c12_145 = arith.constant 12 : index
    %c0_146 = arith.constant 0 : index
    %438 = vector.load %arg17[%c12_145, %c0_146] : memref<16x128xf32, #tpu.memory_space<vmem>>, vector<2x128xf32>
    %cst_147 = arith.constant dense<0.000000e+00> : vector<2x128xf32>
    %439 = tpu.matmul %436, %259, %cst_147 {dimension_numbers = #tpu.dot_dimension_numbers<[1], [0], [0], [1], [0, 0, 1, 1], [], []>} : vector<2x32xf32>, vector<32x128xf32>, vector<2x128xf32> -> vector<2x128xf32>
    %440 = arith.addf %438, %439 : vector<2x128xf32>
    %441 = vector.extract_strided_slice %440 {offsets = [0, 0], sizes = [2, 32], strides = [1, 1]} : vector<2x128xf32> to vector<2x32xf32>
    %442 = arith.negf %441 : vector<2x32xf32>
    %443 = math.exp %442 : vector<2x32xf32>
    %cst_148 = arith.constant 1.000000e+00 : f32
    %444 = vector.broadcast %cst_148 : f32 to vector<2x32xf32>
    %445 = arith.addf %444, %443 : vector<2x32xf32>
    %446 = arith.divf %444, %445 : vector<2x32xf32>
    %447 = vector.extract_strided_slice %440 {offsets = [0, 32], sizes = [2, 32], strides = [1, 1]} : vector<2x128xf32> to vector<2x32xf32>
    %448 = arith.negf %447 : vector<2x32xf32>
    %449 = math.exp %448 : vector<2x32xf32>
    %cst_149 = arith.constant 1.000000e+00 : f32
    %450 = vector.broadcast %cst_149 : f32 to vector<2x32xf32>
    %451 = arith.addf %450, %449 : vector<2x32xf32>
    %452 = arith.divf %450, %451 : vector<2x32xf32>
    %453 = vector.extract_strided_slice %440 {offsets = [0, 64], sizes = [2, 32], strides = [1, 1]} : vector<2x128xf32> to vector<2x32xf32>
    %454 = math.tanh %453 : vector<2x32xf32>
    %455 = vector.extract_strided_slice %440 {offsets = [0, 96], sizes = [2, 32], strides = [1, 1]} : vector<2x128xf32> to vector<2x32xf32>
    %456 = arith.negf %455 : vector<2x32xf32>
    %457 = math.exp %456 : vector<2x32xf32>
    %cst_150 = arith.constant 1.000000e+00 : f32
    %458 = vector.broadcast %cst_150 : f32 to vector<2x32xf32>
    %459 = arith.addf %458, %457 : vector<2x32xf32>
    %460 = arith.divf %458, %459 : vector<2x32xf32>
    %461 = arith.mulf %452, %434 : vector<2x32xf32>
    %462 = arith.mulf %446, %454 : vector<2x32xf32>
    %463 = arith.addf %461, %462 : vector<2x32xf32>
    %464 = math.tanh %463 : vector<2x32xf32>
    %465 = arith.mulf %460, %464 : vector<2x32xf32>
    %c12_151 = arith.constant 12 : index
    %c0_152 = arith.constant 0 : index
    %466 = vector.load %arg18[%c12_151, %c0_152] : memref<16x32xf32, #tpu.memory_space<vmem>>, vector<2x32xf32>
    tpu.vector_store %arg18[%c12_151, %c0_152], %465 {strides = array<i32>} : memref<16x32xf32, #tpu.memory_space<vmem>>, vector<2x32xf32>,
    %c14_153 = arith.constant 14 : index
    %c0_154 = arith.constant 0 : index
    %467 = vector.load %arg17[%c14_153, %c0_154] : memref<16x128xf32, #tpu.memory_space<vmem>>, vector<2x128xf32>
    %cst_155 = arith.constant dense<0.000000e+00> : vector<2x128xf32>
    %468 = tpu.matmul %465, %259, %cst_155 {dimension_numbers = #tpu.dot_dimension_numbers<[1], [0], [0], [1], [0, 0, 1, 1], [], []>} : vector<2x32xf32>, vector<32x128xf32>, vector<2x128xf32> -> vector<2x128xf32>
    %469 = arith.addf %467, %468 : vector<2x128xf32>
    %470 = vector.extract_strided_slice %469 {offsets = [0, 0], sizes = [2, 32], strides = [1, 1]} : vector<2x128xf32> to vector<2x32xf32>
    %471 = arith.negf %470 : vector<2x32xf32>
    %472 = math.exp %471 : vector<2x32xf32>
    %cst_156 = arith.constant 1.000000e+00 : f32
    %473 = vector.broadcast %cst_156 : f32 to vector<2x32xf32>
    %474 = arith.addf %473, %472 : vector<2x32xf32>
    %475 = arith.divf %473, %474 : vector<2x32xf32>
    %476 = vector.extract_strided_slice %469 {offsets = [0, 32], sizes = [2, 32], strides = [1, 1]} : vector<2x128xf32> to vector<2x32xf32>
    %477 = arith.negf %476 : vector<2x32xf32>
    %478 = math.exp %477 : vector<2x32xf32>
    %cst_157 = arith.constant 1.000000e+00 : f32
    %479 = vector.broadcast %cst_157 : f32 to vector<2x32xf32>
    %480 = arith.addf %479, %478 : vector<2x32xf32>
    %481 = arith.divf %479, %480 : vector<2x32xf32>
    %482 = vector.extract_strided_slice %469 {offsets = [0, 64], sizes = [2, 32], strides = [1, 1]} : vector<2x128xf32> to vector<2x32xf32>
    %483 = math.tanh %482 : vector<2x32xf32>
    %484 = vector.extract_strided_slice %469 {offsets = [0, 96], sizes = [2, 32], strides = [1, 1]} : vector<2x128xf32> to vector<2x32xf32>
    %485 = arith.negf %484 : vector<2x32xf32>
    %486 = math.exp %485 : vector<2x32xf32>
    %cst_158 = arith.constant 1.000000e+00 : f32
    %487 = vector.broadcast %cst_158 : f32 to vector<2x32xf32>
    %488 = arith.addf %487, %486 : vector<2x32xf32>
    %489 = arith.divf %487, %488 : vector<2x32xf32>
    %490 = arith.mulf %481, %463 : vector<2x32xf32>
    %491 = arith.mulf %475, %483 : vector<2x32xf32>
    %492 = arith.addf %490, %491 : vector<2x32xf32>
    %493 = math.tanh %492 : vector<2x32xf32>
    %494 = arith.mulf %489, %493 : vector<2x32xf32>
    %c14_159 = arith.constant 14 : index
    %c0_160 = arith.constant 0 : index
    %495 = vector.load %arg18[%c14_159, %c0_160] : memref<16x32xf32, #tpu.memory_space<vmem>>, vector<2x32xf32>
    tpu.vector_store %arg18[%c14_159, %c0_160], %494 {strides = array<i32>} : memref<16x32xf32, #tpu.memory_space<vmem>>, vector<2x32xf32>,
    %c1_161 = arith.constant 1 : index
    %c0_162 = arith.constant 0 : index
    %c0_163 = arith.constant 0 : index
    %496 = vector.load %arg15[%c1_161, %c0_162, %c0_163] : memref<3x2x32xf32, #tpu.memory_space<vmem>>, vector<1x2x32xf32>
    %497 = vector.shape_cast %496 : vector<1x2x32xf32> to vector<2x32xf32>
    %498 = vector.shape_cast %494 : vector<2x32xf32> to vector<1x2x32xf32>
    tpu.vector_store %arg15[%c1_161, %c0_162, %c0_163], %498 {strides = array<i32>} : memref<3x2x32xf32, #tpu.memory_space<vmem>>, vector<1x2x32xf32>,
    %c1_164 = arith.constant 1 : index
    %c0_165 = arith.constant 0 : index
    %c0_166 = arith.constant 0 : index
    %499 = vector.load %arg16[%c1_164, %c0_165, %c0_166] : memref<3x2x32xf32, #tpu.memory_space<vmem>>, vector<1x2x32xf32>
    %500 = vector.shape_cast %499 : vector<1x2x32xf32> to vector<2x32xf32>
    %501 = vector.shape_cast %492 : vector<2x32xf32> to vector<1x2x32xf32>
    tpu.vector_store %arg16[%c1_164, %c0_165, %c0_166], %501 {strides = array<i32>} : memref<3x2x32xf32, #tpu.memory_space<vmem>>, vector<1x2x32xf32>,
    %c32 = arith.constant 32 : index
    %c0_167 = arith.constant 0 : index
    %502 = vector.load %arg12[%c32, %c0_167] : memref<96x64xf32, #tpu.memory_space<vmem>>, vector<32x64xf32>
    %cst_168 = arith.constant dense<0.000000e+00> : vector<2x64xf32>
    %503 = tpu.matmul %494, %502, %cst_168 {dimension_numbers = #tpu.dot_dimension_numbers<[1], [0], [0], [1], [0, 0, 1, 1], [], []>} : vector<2x32xf32>, vector<32x64xf32>, vector<2x64xf32> -> vector<2x64xf32>
    %504 = arith.addf %251, %503 : vector<2x64xf32>
    %c0_169 = arith.constant 0 : index
    %c0_170 = arith.constant 0 : index
    %505 = vector.load %arg18[%c0_169, %c0_170] : memref<16x32xf32, #tpu.memory_space<vmem>>, vector<16x32xf32>
    %c0_171 = arith.constant 0 : index
    %c0_172 = arith.constant 0 : index
    %506 = vector.load %arg9[%c0_171, %c0_172] : memref<32x128xf32, #tpu.memory_space<vmem>>, vector<32x128xf32>
    %cst_173 = arith.constant dense<0.000000e+00> : vector<16x128xf32>
    %507 = tpu.matmul %505, %506, %cst_173 {dimension_numbers = #tpu.dot_dimension_numbers<[1], [0], [0], [1], [0, 0, 1, 1], [], []>} : vector<16x32xf32>, vector<32x128xf32>, vector<16x128xf32> -> vector<16x128xf32>
    %c0_174 = arith.constant 0 : index
    %c0_175 = arith.constant 0 : index
    %508 = vector.load %arg11[%c0_174, %c0_175] : memref<1x128xf32, #tpu.memory_space<vmem>>, vector<1x128xf32>
    %509 = vector.broadcast %508 : vector<1x128xf32> to vector<16x128xf32>
    %510 = arith.addf %507, %509 : vector<16x128xf32>
    %c0_176 = arith.constant 0 : index
    %c0_177 = arith.constant 0 : index
    %511 = vector.load %arg17[%c0_176, %c0_177] : memref<16x128xf32, #tpu.memory_space<vmem>>, vector<16x128xf32>
    tpu.vector_store %arg17[%c0_176, %c0_177], %510 {strides = array<i32>} : memref<16x128xf32, #tpu.memory_space<vmem>>, vector<16x128xf32>,
    %c0_178 = arith.constant 0 : index
    %c0_179 = arith.constant 0 : index
    %512 = vector.load %arg10[%c0_178, %c0_179] : memref<32x128xf32, #tpu.memory_space<vmem>>, vector<32x128xf32>
    %c2_180 = arith.constant 2 : index
    %c0_181 = arith.constant 0 : index
    %c0_182 = arith.constant 0 : index
    %513 = vector.load %arg1[%c2_180, %c0_181, %c0_182] : memref<3x2x32xf32, #tpu.memory_space<vmem>>, vector<1x2x32xf32>
    %514 = vector.shape_cast %513 : vector<1x2x32xf32> to vector<2x32xf32>
    %c2_183 = arith.constant 2 : index
    %c0_184 = arith.constant 0 : index
    %c0_185 = arith.constant 0 : index
    %515 = vector.load %arg2[%c2_183, %c0_184, %c0_185] : memref<3x2x32xf32, #tpu.memory_space<vmem>>, vector<1x2x32xf32>
    %516 = vector.shape_cast %515 : vector<1x2x32xf32> to vector<2x32xf32>
    %c0_186 = arith.constant 0 : index
    %c0_187 = arith.constant 0 : index
    %517 = vector.load %arg17[%c0_186, %c0_187] : memref<16x128xf32, #tpu.memory_space<vmem>>, vector<2x128xf32>
    %cst_188 = arith.constant dense<0.000000e+00> : vector<2x128xf32>
    %518 = tpu.matmul %514, %512, %cst_188 {dimension_numbers = #tpu.dot_dimension_numbers<[1], [0], [0], [1], [0, 0, 1, 1], [], []>} : vector<2x32xf32>, vector<32x128xf32>, vector<2x128xf32> -> vector<2x128xf32>
    %519 = arith.addf %517, %518 : vector<2x128xf32>
    %520 = vector.extract_strided_slice %519 {offsets = [0, 0], sizes = [2, 32], strides = [1, 1]} : vector<2x128xf32> to vector<2x32xf32>
    %521 = arith.negf %520 : vector<2x32xf32>
    %522 = math.exp %521 : vector<2x32xf32>
    %cst_189 = arith.constant 1.000000e+00 : f32
    %523 = vector.broadcast %cst_189 : f32 to vector<2x32xf32>
    %524 = arith.addf %523, %522 : vector<2x32xf32>
    %525 = arith.divf %523, %524 : vector<2x32xf32>
    %526 = vector.extract_strided_slice %519 {offsets = [0, 32], sizes = [2, 32], strides = [1, 1]} : vector<2x128xf32> to vector<2x32xf32>
    %527 = arith.negf %526 : vector<2x32xf32>
    %528 = math.exp %527 : vector<2x32xf32>
    %cst_190 = arith.constant 1.000000e+00 : f32
    %529 = vector.broadcast %cst_190 : f32 to vector<2x32xf32>
    %530 = arith.addf %529, %528 : vector<2x32xf32>
    %531 = arith.divf %529, %530 : vector<2x32xf32>
    %532 = vector.extract_strided_slice %519 {offsets = [0, 64], sizes = [2, 32], strides = [1, 1]} : vector<2x128xf32> to vector<2x32xf32>
    %533 = math.tanh %532 : vector<2x32xf32>
    %534 = vector.extract_strided_slice %519 {offsets = [0, 96], sizes = [2, 32], strides = [1, 1]} : vector<2x128xf32> to vector<2x32xf32>
    %535 = arith.negf %534 : vector<2x32xf32>
    %536 = math.exp %535 : vector<2x32xf32>
    %cst_191 = arith.constant 1.000000e+00 : f32
    %537 = vector.broadcast %cst_191 : f32 to vector<2x32xf32>
    %538 = arith.addf %537, %536 : vector<2x32xf32>
    %539 = arith.divf %537, %538 : vector<2x32xf32>
    %540 = arith.mulf %531, %516 : vector<2x32xf32>
    %541 = arith.mulf %525, %533 : vector<2x32xf32>
    %542 = arith.addf %540, %541 : vector<2x32xf32>
    %543 = math.tanh %542 : vector<2x32xf32>
    %544 = arith.mulf %539, %543 : vector<2x32xf32>
    %c2_192 = arith.constant 2 : index
    %c0_193 = arith.constant 0 : index
    %545 = vector.load %arg17[%c2_192, %c0_193] : memref<16x128xf32, #tpu.memory_space<vmem>>, vector<2x128xf32>
    %cst_194 = arith.constant dense<0.000000e+00> : vector<2x128xf32>
    %546 = tpu.matmul %544, %512, %cst_194 {dimension_numbers = #tpu.dot_dimension_numbers<[1], [0], [0], [1], [0, 0, 1, 1], [], []>} : vector<2x32xf32>, vector<32x128xf32>, vector<2x128xf32> -> vector<2x128xf32>
    %547 = arith.addf %545, %546 : vector<2x128xf32>
    %548 = vector.extract_strided_slice %547 {offsets = [0, 0], sizes = [2, 32], strides = [1, 1]} : vector<2x128xf32> to vector<2x32xf32>
    %549 = arith.negf %548 : vector<2x32xf32>
    %550 = math.exp %549 : vector<2x32xf32>
    %cst_195 = arith.constant 1.000000e+00 : f32
    %551 = vector.broadcast %cst_195 : f32 to vector<2x32xf32>
    %552 = arith.addf %551, %550 : vector<2x32xf32>
    %553 = arith.divf %551, %552 : vector<2x32xf32>
    %554 = vector.extract_strided_slice %547 {offsets = [0, 32], sizes = [2, 32], strides = [1, 1]} : vector<2x128xf32> to vector<2x32xf32>
    %555 = arith.negf %554 : vector<2x32xf32>
    %556 = math.exp %555 : vector<2x32xf32>
    %cst_196 = arith.constant 1.000000e+00 : f32
    %557 = vector.broadcast %cst_196 : f32 to vector<2x32xf32>
    %558 = arith.addf %557, %556 : vector<2x32xf32>
    %559 = arith.divf %557, %558 : vector<2x32xf32>
    %560 = vector.extract_strided_slice %547 {offsets = [0, 64], sizes = [2, 32], strides = [1, 1]} : vector<2x128xf32> to vector<2x32xf32>
    %561 = math.tanh %560 : vector<2x32xf32>
    %562 = vector.extract_strided_slice %547 {offsets = [0, 96], sizes = [2, 32], strides = [1, 1]} : vector<2x128xf32> to vector<2x32xf32>
    %563 = arith.negf %562 : vector<2x32xf32>
    %564 = math.exp %563 : vector<2x32xf32>
    %cst_197 = arith.constant 1.000000e+00 : f32
    %565 = vector.broadcast %cst_197 : f32 to vector<2x32xf32>
    %566 = arith.addf %565, %564 : vector<2x32xf32>
    %567 = arith.divf %565, %566 : vector<2x32xf32>
    %568 = arith.mulf %559, %542 : vector<2x32xf32>
    %569 = arith.mulf %553, %561 : vector<2x32xf32>
    %570 = arith.addf %568, %569 : vector<2x32xf32>
    %571 = math.tanh %570 : vector<2x32xf32>
    %572 = arith.mulf %567, %571 : vector<2x32xf32>
    %c4_198 = arith.constant 4 : index
    %c0_199 = arith.constant 0 : index
    %573 = vector.load %arg17[%c4_198, %c0_199] : memref<16x128xf32, #tpu.memory_space<vmem>>, vector<2x128xf32>
    %cst_200 = arith.constant dense<0.000000e+00> : vector<2x128xf32>
    %574 = tpu.matmul %572, %512, %cst_200 {dimension_numbers = #tpu.dot_dimension_numbers<[1], [0], [0], [1], [0, 0, 1, 1], [], []>} : vector<2x32xf32>, vector<32x128xf32>, vector<2x128xf32> -> vector<2x128xf32>
    %575 = arith.addf %573, %574 : vector<2x128xf32>
    %576 = vector.extract_strided_slice %575 {offsets = [0, 0], sizes = [2, 32], strides = [1, 1]} : vector<2x128xf32> to vector<2x32xf32>
    %577 = arith.negf %576 : vector<2x32xf32>
    %578 = math.exp %577 : vector<2x32xf32>
    %cst_201 = arith.constant 1.000000e+00 : f32
    %579 = vector.broadcast %cst_201 : f32 to vector<2x32xf32>
    %580 = arith.addf %579, %578 : vector<2x32xf32>
    %581 = arith.divf %579, %580 : vector<2x32xf32>
    %582 = vector.extract_strided_slice %575 {offsets = [0, 32], sizes = [2, 32], strides = [1, 1]} : vector<2x128xf32> to vector<2x32xf32>
    %583 = arith.negf %582 : vector<2x32xf32>
    %584 = math.exp %583 : vector<2x32xf32>
    %cst_202 = arith.constant 1.000000e+00 : f32
    %585 = vector.broadcast %cst_202 : f32 to vector<2x32xf32>
    %586 = arith.addf %585, %584 : vector<2x32xf32>
    %587 = arith.divf %585, %586 : vector<2x32xf32>
    %588 = vector.extract_strided_slice %575 {offsets = [0, 64], sizes = [2, 32], strides = [1, 1]} : vector<2x128xf32> to vector<2x32xf32>
    %589 = math.tanh %588 : vector<2x32xf32>
    %590 = vector.extract_strided_slice %575 {offsets = [0, 96], sizes = [2, 32], strides = [1, 1]} : vector<2x128xf32> to vector<2x32xf32>
    %591 = arith.negf %590 : vector<2x32xf32>
    %592 = math.exp %591 : vector<2x32xf32>
    %cst_203 = arith.constant 1.000000e+00 : f32
    %593 = vector.broadcast %cst_203 : f32 to vector<2x32xf32>
    %594 = arith.addf %593, %592 : vector<2x32xf32>
    %595 = arith.divf %593, %594 : vector<2x32xf32>
    %596 = arith.mulf %587, %570 : vector<2x32xf32>
    %597 = arith.mulf %581, %589 : vector<2x32xf32>
    %598 = arith.addf %596, %597 : vector<2x32xf32>
    %599 = math.tanh %598 : vector<2x32xf32>
    %600 = arith.mulf %595, %599 : vector<2x32xf32>
    %c6_204 = arith.constant 6 : index
    %c0_205 = arith.constant 0 : index
    %601 = vector.load %arg17[%c6_204, %c0_205] : memref<16x128xf32, #tpu.memory_space<vmem>>, vector<2x128xf32>
    %cst_206 = arith.constant dense<0.000000e+00> : vector<2x128xf32>
    %602 = tpu.matmul %600, %512, %cst_206 {dimension_numbers = #tpu.dot_dimension_numbers<[1], [0], [0], [1], [0, 0, 1, 1], [], []>} : vector<2x32xf32>, vector<32x128xf32>, vector<2x128xf32> -> vector<2x128xf32>
    %603 = arith.addf %601, %602 : vector<2x128xf32>
    %604 = vector.extract_strided_slice %603 {offsets = [0, 0], sizes = [2, 32], strides = [1, 1]} : vector<2x128xf32> to vector<2x32xf32>
    %605 = arith.negf %604 : vector<2x32xf32>
    %606 = math.exp %605 : vector<2x32xf32>
    %cst_207 = arith.constant 1.000000e+00 : f32
    %607 = vector.broadcast %cst_207 : f32 to vector<2x32xf32>
    %608 = arith.addf %607, %606 : vector<2x32xf32>
    %609 = arith.divf %607, %608 : vector<2x32xf32>
    %610 = vector.extract_strided_slice %603 {offsets = [0, 32], sizes = [2, 32], strides = [1, 1]} : vector<2x128xf32> to vector<2x32xf32>
    %611 = arith.negf %610 : vector<2x32xf32>
    %612 = math.exp %611 : vector<2x32xf32>
    %cst_208 = arith.constant 1.000000e+00 : f32
    %613 = vector.broadcast %cst_208 : f32 to vector<2x32xf32>
    %614 = arith.addf %613, %612 : vector<2x32xf32>
    %615 = arith.divf %613, %614 : vector<2x32xf32>
    %616 = vector.extract_strided_slice %603 {offsets = [0, 64], sizes = [2, 32], strides = [1, 1]} : vector<2x128xf32> to vector<2x32xf32>
    %617 = math.tanh %616 : vector<2x32xf32>
    %618 = vector.extract_strided_slice %603 {offsets = [0, 96], sizes = [2, 32], strides = [1, 1]} : vector<2x128xf32> to vector<2x32xf32>
    %619 = arith.negf %618 : vector<2x32xf32>
    %620 = math.exp %619 : vector<2x32xf32>
    %cst_209 = arith.constant 1.000000e+00 : f32
    %621 = vector.broadcast %cst_209 : f32 to vector<2x32xf32>
    %622 = arith.addf %621, %620 : vector<2x32xf32>
    %623 = arith.divf %621, %622 : vector<2x32xf32>
    %624 = arith.mulf %615, %598 : vector<2x32xf32>
    %625 = arith.mulf %609, %617 : vector<2x32xf32>
    %626 = arith.addf %624, %625 : vector<2x32xf32>
    %627 = math.tanh %626 : vector<2x32xf32>
    %628 = arith.mulf %623, %627 : vector<2x32xf32>
    %c8_210 = arith.constant 8 : index
    %c0_211 = arith.constant 0 : index
    %629 = vector.load %arg17[%c8_210, %c0_211] : memref<16x128xf32, #tpu.memory_space<vmem>>, vector<2x128xf32>
    %cst_212 = arith.constant dense<0.000000e+00> : vector<2x128xf32>
    %630 = tpu.matmul %628, %512, %cst_212 {dimension_numbers = #tpu.dot_dimension_numbers<[1], [0], [0], [1], [0, 0, 1, 1], [], []>} : vector<2x32xf32>, vector<32x128xf32>, vector<2x128xf32> -> vector<2x128xf32>
    %631 = arith.addf %629, %630 : vector<2x128xf32>
    %632 = vector.extract_strided_slice %631 {offsets = [0, 0], sizes = [2, 32], strides = [1, 1]} : vector<2x128xf32> to vector<2x32xf32>
    %633 = arith.negf %632 : vector<2x32xf32>
    %634 = math.exp %633 : vector<2x32xf32>
    %cst_213 = arith.constant 1.000000e+00 : f32
    %635 = vector.broadcast %cst_213 : f32 to vector<2x32xf32>
    %636 = arith.addf %635, %634 : vector<2x32xf32>
    %637 = arith.divf %635, %636 : vector<2x32xf32>
    %638 = vector.extract_strided_slice %631 {offsets = [0, 32], sizes = [2, 32], strides = [1, 1]} : vector<2x128xf32> to vector<2x32xf32>
    %639 = arith.negf %638 : vector<2x32xf32>
    %640 = math.exp %639 : vector<2x32xf32>
    %cst_214 = arith.constant 1.000000e+00 : f32
    %641 = vector.broadcast %cst_214 : f32 to vector<2x32xf32>
    %642 = arith.addf %641, %640 : vector<2x32xf32>
    %643 = arith.divf %641, %642 : vector<2x32xf32>
    %644 = vector.extract_strided_slice %631 {offsets = [0, 64], sizes = [2, 32], strides = [1, 1]} : vector<2x128xf32> to vector<2x32xf32>
    %645 = math.tanh %644 : vector<2x32xf32>
    %646 = vector.extract_strided_slice %631 {offsets = [0, 96], sizes = [2, 32], strides = [1, 1]} : vector<2x128xf32> to vector<2x32xf32>
    %647 = arith.negf %646 : vector<2x32xf32>
    %648 = math.exp %647 : vector<2x32xf32>
    %cst_215 = arith.constant 1.000000e+00 : f32
    %649 = vector.broadcast %cst_215 : f32 to vector<2x32xf32>
    %650 = arith.addf %649, %648 : vector<2x32xf32>
    %651 = arith.divf %649, %650 : vector<2x32xf32>
    %652 = arith.mulf %643, %626 : vector<2x32xf32>
    %653 = arith.mulf %637, %645 : vector<2x32xf32>
    %654 = arith.addf %652, %653 : vector<2x32xf32>
    %655 = math.tanh %654 : vector<2x32xf32>
    %656 = arith.mulf %651, %655 : vector<2x32xf32>
    %c10_216 = arith.constant 10 : index
    %c0_217 = arith.constant 0 : index
    %657 = vector.load %arg17[%c10_216, %c0_217] : memref<16x128xf32, #tpu.memory_space<vmem>>, vector<2x128xf32>
    %cst_218 = arith.constant dense<0.000000e+00> : vector<2x128xf32>
    %658 = tpu.matmul %656, %512, %cst_218 {dimension_numbers = #tpu.dot_dimension_numbers<[1], [0], [0], [1], [0, 0, 1, 1], [], []>} : vector<2x32xf32>, vector<32x128xf32>, vector<2x128xf32> -> vector<2x128xf32>
    %659 = arith.addf %657, %658 : vector<2x128xf32>
    %660 = vector.extract_strided_slice %659 {offsets = [0, 0], sizes = [2, 32], strides = [1, 1]} : vector<2x128xf32> to vector<2x32xf32>
    %661 = arith.negf %660 : vector<2x32xf32>
    %662 = math.exp %661 : vector<2x32xf32>
    %cst_219 = arith.constant 1.000000e+00 : f32
    %663 = vector.broadcast %cst_219 : f32 to vector<2x32xf32>
    %664 = arith.addf %663, %662 : vector<2x32xf32>
    %665 = arith.divf %663, %664 : vector<2x32xf32>
    %666 = vector.extract_strided_slice %659 {offsets = [0, 32], sizes = [2, 32], strides = [1, 1]} : vector<2x128xf32> to vector<2x32xf32>
    %667 = arith.negf %666 : vector<2x32xf32>
    %668 = math.exp %667 : vector<2x32xf32>
    %cst_220 = arith.constant 1.000000e+00 : f32
    %669 = vector.broadcast %cst_220 : f32 to vector<2x32xf32>
    %670 = arith.addf %669, %668 : vector<2x32xf32>
    %671 = arith.divf %669, %670 : vector<2x32xf32>
    %672 = vector.extract_strided_slice %659 {offsets = [0, 64], sizes = [2, 32], strides = [1, 1]} : vector<2x128xf32> to vector<2x32xf32>
    %673 = math.tanh %672 : vector<2x32xf32>
    %674 = vector.extract_strided_slice %659 {offsets = [0, 96], sizes = [2, 32], strides = [1, 1]} : vector<2x128xf32> to vector<2x32xf32>
    %675 = arith.negf %674 : vector<2x32xf32>
    %676 = math.exp %675 : vector<2x32xf32>
    %cst_221 = arith.constant 1.000000e+00 : f32
    %677 = vector.broadcast %cst_221 : f32 to vector<2x32xf32>
    %678 = arith.addf %677, %676 : vector<2x32xf32>
    %679 = arith.divf %677, %678 : vector<2x32xf32>
    %680 = arith.mulf %671, %654 : vector<2x32xf32>
    %681 = arith.mulf %665, %673 : vector<2x32xf32>
    %682 = arith.addf %680, %681 : vector<2x32xf32>
    %683 = math.tanh %682 : vector<2x32xf32>
    %684 = arith.mulf %679, %683 : vector<2x32xf32>
    %c12_222 = arith.constant 12 : index
    %c0_223 = arith.constant 0 : index
    %685 = vector.load %arg17[%c12_222, %c0_223] : memref<16x128xf32, #tpu.memory_space<vmem>>, vector<2x128xf32>
    %cst_224 = arith.constant dense<0.000000e+00> : vector<2x128xf32>
    %686 = tpu.matmul %684, %512, %cst_224 {dimension_numbers = #tpu.dot_dimension_numbers<[1], [0], [0], [1], [0, 0, 1, 1], [], []>} : vector<2x32xf32>, vector<32x128xf32>, vector<2x128xf32> -> vector<2x128xf32>
    %687 = arith.addf %685, %686 : vector<2x128xf32>
    %688 = vector.extract_strided_slice %687 {offsets = [0, 0], sizes = [2, 32], strides = [1, 1]} : vector<2x128xf32> to vector<2x32xf32>
    %689 = arith.negf %688 : vector<2x32xf32>
    %690 = math.exp %689 : vector<2x32xf32>
    %cst_225 = arith.constant 1.000000e+00 : f32
    %691 = vector.broadcast %cst_225 : f32 to vector<2x32xf32>
    %692 = arith.addf %691, %690 : vector<2x32xf32>
    %693 = arith.divf %691, %692 : vector<2x32xf32>
    %694 = vector.extract_strided_slice %687 {offsets = [0, 32], sizes = [2, 32], strides = [1, 1]} : vector<2x128xf32> to vector<2x32xf32>
    %695 = arith.negf %694 : vector<2x32xf32>
    %696 = math.exp %695 : vector<2x32xf32>
    %cst_226 = arith.constant 1.000000e+00 : f32
    %697 = vector.broadcast %cst_226 : f32 to vector<2x32xf32>
    %698 = arith.addf %697, %696 : vector<2x32xf32>
    %699 = arith.divf %697, %698 : vector<2x32xf32>
    %700 = vector.extract_strided_slice %687 {offsets = [0, 64], sizes = [2, 32], strides = [1, 1]} : vector<2x128xf32> to vector<2x32xf32>
    %701 = math.tanh %700 : vector<2x32xf32>
    %702 = vector.extract_strided_slice %687 {offsets = [0, 96], sizes = [2, 32], strides = [1, 1]} : vector<2x128xf32> to vector<2x32xf32>
    %703 = arith.negf %702 : vector<2x32xf32>
    %704 = math.exp %703 : vector<2x32xf32>
    %cst_227 = arith.constant 1.000000e+00 : f32
    %705 = vector.broadcast %cst_227 : f32 to vector<2x32xf32>
    %706 = arith.addf %705, %704 : vector<2x32xf32>
    %707 = arith.divf %705, %706 : vector<2x32xf32>
    %708 = arith.mulf %699, %682 : vector<2x32xf32>
    %709 = arith.mulf %693, %701 : vector<2x32xf32>
    %710 = arith.addf %708, %709 : vector<2x32xf32>
    %711 = math.tanh %710 : vector<2x32xf32>
    %712 = arith.mulf %707, %711 : vector<2x32xf32>
    %c14_228 = arith.constant 14 : index
    %c0_229 = arith.constant 0 : index
    %713 = vector.load %arg17[%c14_228, %c0_229] : memref<16x128xf32, #tpu.memory_space<vmem>>, vector<2x128xf32>
    %cst_230 = arith.constant dense<0.000000e+00> : vector<2x128xf32>
    %714 = tpu.matmul %712, %512, %cst_230 {dimension_numbers = #tpu.dot_dimension_numbers<[1], [0], [0], [1], [0, 0, 1, 1], [], []>} : vector<2x32xf32>, vector<32x128xf32>, vector<2x128xf32> -> vector<2x128xf32>
    %715 = arith.addf %713, %714 : vector<2x128xf32>
    %716 = vector.extract_strided_slice %715 {offsets = [0, 0], sizes = [2, 32], strides = [1, 1]} : vector<2x128xf32> to vector<2x32xf32>
    %717 = arith.negf %716 : vector<2x32xf32>
    %718 = math.exp %717 : vector<2x32xf32>
    %cst_231 = arith.constant 1.000000e+00 : f32
    %719 = vector.broadcast %cst_231 : f32 to vector<2x32xf32>
    %720 = arith.addf %719, %718 : vector<2x32xf32>
    %721 = arith.divf %719, %720 : vector<2x32xf32>
    %722 = vector.extract_strided_slice %715 {offsets = [0, 32], sizes = [2, 32], strides = [1, 1]} : vector<2x128xf32> to vector<2x32xf32>
    %723 = arith.negf %722 : vector<2x32xf32>
    %724 = math.exp %723 : vector<2x32xf32>
    %cst_232 = arith.constant 1.000000e+00 : f32
    %725 = vector.broadcast %cst_232 : f32 to vector<2x32xf32>
    %726 = arith.addf %725, %724 : vector<2x32xf32>
    %727 = arith.divf %725, %726 : vector<2x32xf32>
    %728 = vector.extract_strided_slice %715 {offsets = [0, 64], sizes = [2, 32], strides = [1, 1]} : vector<2x128xf32> to vector<2x32xf32>
    %729 = math.tanh %728 : vector<2x32xf32>
    %730 = vector.extract_strided_slice %715 {offsets = [0, 96], sizes = [2, 32], strides = [1, 1]} : vector<2x128xf32> to vector<2x32xf32>
    %731 = arith.negf %730 : vector<2x32xf32>
    %732 = math.exp %731 : vector<2x32xf32>
    %cst_233 = arith.constant 1.000000e+00 : f32
    %733 = vector.broadcast %cst_233 : f32 to vector<2x32xf32>
    %734 = arith.addf %733, %732 : vector<2x32xf32>
    %735 = arith.divf %733, %734 : vector<2x32xf32>
    %736 = arith.mulf %727, %710 : vector<2x32xf32>
    %737 = arith.mulf %721, %729 : vector<2x32xf32>
    %738 = arith.addf %736, %737 : vector<2x32xf32>
    %739 = math.tanh %738 : vector<2x32xf32>
    %740 = arith.mulf %735, %739 : vector<2x32xf32>
    %c2_234 = arith.constant 2 : index
    %c0_235 = arith.constant 0 : index
    %c0_236 = arith.constant 0 : index
    %741 = vector.load %arg15[%c2_234, %c0_235, %c0_236] : memref<3x2x32xf32, #tpu.memory_space<vmem>>, vector<1x2x32xf32>
    %742 = vector.shape_cast %741 : vector<1x2x32xf32> to vector<2x32xf32>
    %743 = vector.shape_cast %740 : vector<2x32xf32> to vector<1x2x32xf32>
    tpu.vector_store %arg15[%c2_234, %c0_235, %c0_236], %743 {strides = array<i32>} : memref<3x2x32xf32, #tpu.memory_space<vmem>>, vector<1x2x32xf32>,
    %c2_237 = arith.constant 2 : index
    %c0_238 = arith.constant 0 : index
    %c0_239 = arith.constant 0 : index
    %744 = vector.load %arg16[%c2_237, %c0_238, %c0_239] : memref<3x2x32xf32, #tpu.memory_space<vmem>>, vector<1x2x32xf32>
    %745 = vector.shape_cast %744 : vector<1x2x32xf32> to vector<2x32xf32>
    %746 = vector.shape_cast %738 : vector<2x32xf32> to vector<1x2x32xf32>
    tpu.vector_store %arg16[%c2_237, %c0_238, %c0_239], %746 {strides = array<i32>} : memref<3x2x32xf32, #tpu.memory_space<vmem>>, vector<1x2x32xf32>,
    %c64 = arith.constant 64 : index
    %c0_240 = arith.constant 0 : index
    %747 = vector.load %arg12[%c64, %c0_240] : memref<96x64xf32, #tpu.memory_space<vmem>>, vector<32x64xf32>
    %cst_241 = arith.constant dense<0.000000e+00> : vector<2x64xf32>
    %748 = tpu.matmul %740, %747, %cst_241 {dimension_numbers = #tpu.dot_dimension_numbers<[1], [0], [0], [1], [0, 0, 1, 1], [], []>} : vector<2x32xf32>, vector<32x64xf32>, vector<2x64xf32> -> vector<2x64xf32>
    %749 = arith.addf %504, %748 : vector<2x64xf32>
    %c0_242 = arith.constant 0 : index
    %c0_243 = arith.constant 0 : index
    %750 = vector.load %arg13[%c0_242, %c0_243] : memref<1x64xf32, #tpu.memory_space<vmem>>, vector<1x64xf32>
    %751 = vector.broadcast %750 : vector<1x64xf32> to vector<2x64xf32>
    %752 = arith.addf %749, %751 : vector<2x64xf32>
    %c0_244 = arith.constant 0 : index
    %c0_245 = arith.constant 0 : index
    %753 = vector.load %arg14[%c0_244, %c0_245] : memref<2x64xf32, #tpu.memory_space<vmem>>, vector<2x64xf32>
    tpu.vector_store %arg14[%c0_244, %c0_245], %752 {strides = array<i32>} : memref<2x64xf32, #tpu.memory_space<vmem>>, vector<2x64xf32>,
    return
  }
}

</mosaic_0001>

<llo_original>
// kernel: tpu_custom_call.1
$region0: #{tpu_custom_call.1}
  #allocation0 [shape = 'u32[]', space=smem, size = 0x4, offset = 0x4, fixed_abs, tag = 'smem constant byte address 0x4 - core index']
  #allocation1 [shape = 'u32[144,128]{1,0:T(1,128)}', space=vmem, size = 0x12000, scoped, tag = 'internal scratch']
  #allocation2 [shape = 'f32[16,128]{1,0:T(8,128)}', space=vmem, size = 0x2000, scoped, tag = 'scratch operand']
  #allocation3 [shape = 'f32[16,32]{1,0:T(8,128)}', space=vmem, size = 0x2000, scoped, tag = 'scratch operand']
  %s0 = inlined_call_operand.hbm [shape: f32[16,64], index: 0, kind: input, shape index: {}]
  %s1 = inlined_call_operand.hbm [shape: f32[3,2,32], index: 1, kind: input, shape index: {}]
  %s2 = inlined_call_operand.hbm [shape: f32[3,2,32], index: 2, kind: input, shape index: {}]
  %s3 = inlined_call_operand.vmem [shape: f32[64,128], index: 3, kind: input, shape index: {}]
  %s4 = inlined_call_operand.vmem [shape: f32[32,128], index: 4, kind: input, shape index: {}]
  %s5 = inlined_call_operand.vmem [shape: f32[1,128], index: 5, kind: input, shape index: {}]
  %s6 = inlined_call_operand.vmem [shape: f32[32,128], index: 6, kind: input, shape index: {}]
  %s7 = inlined_call_operand.vmem [shape: f32[32,128], index: 7, kind: input, shape index: {}]
  %s8 = inlined_call_operand.vmem [shape: f32[1,128], index: 8, kind: input, shape index: {}]
  %s9 = inlined_call_operand.vmem [shape: f32[32,128], index: 9, kind: input, shape index: {}]
  %s10 = inlined_call_operand.hbm [shape: f32[32,128], index: 10, kind: input, shape index: {}]
  %s11 = inlined_call_operand.vmem [shape: f32[1,128], index: 11, kind: input, shape index: {}]
  %s12 = inlined_call_operand.vmem [shape: f32[96,64], index: 12, kind: input, shape index: {}]
  %s13 = inlined_call_operand.vmem [shape: f32[1,64], index: 13, kind: input, shape index: {}]
  %s14 = inlined_call_operand.hbm [shape: f32[2,64], index: 14, kind: output, shape index: {0}]
  %s15 = inlined_call_operand.hbm [shape: f32[3,2,32], index: 15, kind: output, shape index: {1}]
  %s16 = inlined_call_operand.hbm [shape: f32[3,2,32], index: 16, kind: output, shape index: {2}]
  %17 = xla_tuple %s14, %s15, %s16
  %s18 = sld [smem:[#allocation0]]
  $region98: #{tpu_custom_call.1} parent=0
    _
  %s20 = ssub.s32 1, %s18
  %s21 = scalar_select 0, %s20, %s18
  $region1: #{tpu_custom_call.1} parent=0
    #allocation4 [shape = 'u8[8192]{0}', space=vmem, size = 0x2000, scoped, tag = 'input window, operand 0, single buffered']
    #allocation5 [shape = 's32[1]{0}', space=sflag, size = 0x4, scoped, tag = 'scoped memory for tpu_custom_call.1']
    #allocation6 [shape = 's32[1]{0}', space=sflag, size = 0x4, scoped, tag = 'scoped memory for tpu_custom_call.1']
    #allocation7 [shape = 'u8[3072]{0}', space=vmem, size = 0xc00, scoped, tag = 'input window, operand 1, single buffered']
    #allocation8 [shape = 's32[1]{0}', space=sflag, size = 0x4, scoped, tag = 'scoped memory for tpu_custom_call.1']
    #allocation9 [shape = 'u8[3072]{0}', space=vmem, size = 0xc00, scoped, tag = 'input window, operand 2, single buffered']
    #allocation10 [shape = 'u8[16384]{0}', space=vmem, size = 0x4000, scoped, tag = 'input window, operand 10, single buffered']
    #allocation11 [shape = 's32[1]{0}', space=sflag, size = 0x4, scoped, tag = 'scoped memory for tpu_custom_call.1']
    #allocation12 [shape = 'u8[1024]{0}', space=vmem, size = 0x400, scoped, tag = 'output window, operand 0, single buffered']
    #allocation13 [shape = 'u8[3072]{0}', space=vmem, size = 0xc00, scoped, tag = 'output window, operand 1, single buffered']
    #allocation14 [shape = 's32[1]{0}', space=sflag, size = 0x4, scoped, tag = 'scoped memory for tpu_custom_call.1']
    #allocation15 [shape = 'u8[3072]{0}', space=vmem, size = 0xc00, scoped, tag = 'output window, operand 2, single buffered']
    %22 = vsyncpa [#allocation5], 0
    %23 = vsyncpa [#allocation8], 0
    %24 = vsyncpa [#allocation11], 0
    %25 = vsyncpa [#allocation6], 0
    %26 = vsyncpa [#allocation14], 0
    // Predicated region
    $region2: #{tpu_custom_call.1} parent=1 // pred_check
      _
    $region3: #{tpu_custom_call.1} parent=1 // pred_check_branch
      %28 = sbr.rel (0) target = $region5
    $region4: #{tpu_custom_call.1} parent=1 // pred_region
      %s30 = ssub.s32 256, 256
      %31 = vsyncadd [#allocation5], %s30
      %s32 = sshll.u32 [#allocation4], 4
      %s33 = int_to_ptr.vmem [resolvable:$true] %s32
      %38 = dma.hbm_to_vmem [thread:$0]  %s0, 256, %s33, [#allocation5], 128, 128, 8
    $region5: #{tpu_custom_call.1} parent=1 // pred_fallthru
      _
    // Predicated region
    $region6: #{tpu_custom_call.1} parent=1 // pred_check
      _
    $region7: #{tpu_custom_call.1} parent=1 // pred_check_branch
      %40 = sbr.rel (0) target = $region9
    $region8: #{tpu_custom_call.1} parent=1 // pred_region
      %s42 = ssub.s32 96, 96
      %43 = vsyncadd [#allocation8], %s42
      %s44 = sshll.u32 [#allocation7], 4
      %s45 = int_to_ptr.vmem [resolvable:$true] %s44
      %50 = dma.hbm_to_vmem [thread:$0]  %s1, 96, %s45, [#allocation8], 32, 32, 2
    $region9: #{tpu_custom_call.1} parent=1 // pred_fallthru
      _
    // Predicated region
    $region10: #{tpu_custom_call.1} parent=1 // pred_check
      _
    $region11: #{tpu_custom_call.1} parent=1 // pred_check_branch
      %52 = sbr.rel (0) target = $region13
    $region12: #{tpu_custom_call.1} parent=1 // pred_region
      %s54 = ssub.s32 96, 96
      %55 = vsyncadd [#allocation8], %s54
      %s56 = sshll.u32 [#allocation9], 4
      %s57 = int_to_ptr.vmem [resolvable:$true] %s56
      %62 = dma.hbm_to_vmem [thread:$0]  %s2, 96, %s57, [#allocation8], 32, 32, 2
    $region13: #{tpu_custom_call.1} parent=1 // pred_fallthru
      _
    // Predicated region
    $region14: #{tpu_custom_call.1} parent=1 // pred_check
      _
    $region15: #{tpu_custom_call.1} parent=1 // pred_check_branch
      %64 = sbr.rel (0) target = $region17
    $region16: #{tpu_custom_call.1} parent=1 // pred_region
      _
    $region17: #{tpu_custom_call.1} parent=1 // pred_fallthru
      _
    // Predicated region
    $region18: #{tpu_custom_call.1} parent=1 // pred_check
      _
    $region19: #{tpu_custom_call.1} parent=1 // pred_check_branch
      %66 = sbr.rel (0) target = $region21
    $region20: #{tpu_custom_call.1} parent=1 // pred_region
      _
    $region21: #{tpu_custom_call.1} parent=1 // pred_fallthru
      _
    // Predicated region
    $region22: #{tpu_custom_call.1} parent=1 // pred_check
      _
    $region23: #{tpu_custom_call.1} parent=1 // pred_check_branch
      %68 = sbr.rel (0) target = $region25
    $region24: #{tpu_custom_call.1} parent=1 // pred_region
      _
    $region25: #{tpu_custom_call.1} parent=1 // pred_fallthru
      _
    // Predicated region
    $region26: #{tpu_custom_call.1} parent=1 // pred_check
      _
    $region27: #{tpu_custom_call.1} parent=1 // pred_check_branch
      %70 = sbr.rel (0) target = $region29
    $region28: #{tpu_custom_call.1} parent=1 // pred_region
      _
    $region29: #{tpu_custom_call.1} parent=1 // pred_fallthru
      _
    // Predicated region
    $region30: #{tpu_custom_call.1} parent=1 // pred_check
      _
    $region31: #{tpu_custom_call.1} parent=1 // pred_check_branch
      %72 = sbr.rel (0) target = $region33
    $region32: #{tpu_custom_call.1} parent=1 // pred_region
      _
    $region33: #{tpu_custom_call.1} parent=1 // pred_fallthru
      _
    // Predicated region
    $region34: #{tpu_custom_call.1} parent=1 // pred_check
      _
    $region35: #{tpu_custom_call.1} parent=1 // pred_check_branch
      %74 = sbr.rel (0) target = $region37
    $region36: #{tpu_custom_call.1} parent=1 // pred_region
      _
    $region37: #{tpu_custom_call.1} parent=1 // pred_fallthru
      _
    // Predicated region
    $region38: #{tpu_custom_call.1} parent=1 // pred_check
      _
    $region39: #{tpu_custom_call.1} parent=1 // pred_check_branch
      %76 = sbr.rel (0) target = $region41
    $region40: #{tpu_custom_call.1} parent=1 // pred_region
      _
    $region41: #{tpu_custom_call.1} parent=1 // pred_fallthru
      _
    // Predicated region
    $region42: #{tpu_custom_call.1} parent=1 // pred_check
      _
    $region43: #{tpu_custom_call.1} parent=1 // pred_check_branch
      %78 = sbr.rel (0) target = $region45
    $region44: #{tpu_custom_call.1} parent=1 // pred_region
      %s80 = ssub.s32 512, 512
      %81 = vsyncadd [#allocation11], %s80
      %s82 = sshll.u32 [#allocation10], 4
      %s83 = int_to_ptr.vmem [resolvable:$true] %s82
      %88 = dma.hbm_to_vmem [thread:$0]  %s10, 512, %s83, [#allocation11], 128, 128, 8
    $region45: #{tpu_custom_call.1} parent=1 // pred_fallthru
      _
    // Predicated region
    $region46: #{tpu_custom_call.1} parent=1 // pred_check
      _
    $region47: #{tpu_custom_call.1} parent=1 // pred_check_branch
      %90 = sbr.rel (0) target = $region49
    $region48: #{tpu_custom_call.1} parent=1 // pred_region
      _
    $region49: #{tpu_custom_call.1} parent=1 // pred_fallthru
      _
    // Predicated region
    $region50: #{tpu_custom_call.1} parent=1 // pred_check
      _
    $region51: #{tpu_custom_call.1} parent=1 // pred_check_branch
      %92 = sbr.rel (0) target = $region53
    $region52: #{tpu_custom_call.1} parent=1 // pred_region
      _
    $region53: #{tpu_custom_call.1} parent=1 // pred_fallthru
      _
    // Predicated region
    $region54: #{tpu_custom_call.1} parent=1 // pred_check
      _
    $region55: #{tpu_custom_call.1} parent=1 // pred_check_branch
      %94 = sbr.rel (0) target = $region57
    $region56: #{tpu_custom_call.1} parent=1 // pred_region
      _
    $region57: #{tpu_custom_call.1} parent=1 // pred_fallthru
      _
    // Predicated region
    $region58: #{tpu_custom_call.1} parent=1 // pred_check
      _
    $region59: #{tpu_custom_call.1} parent=1 // pred_check_branch
      %96 = sbr.rel (0) target = $region61
    $region60: #{tpu_custom_call.1} parent=1 // pred_region
      %97 = dma.done [#allocation5], 256
    $region61: #{tpu_custom_call.1} parent=1 // pred_fallthru
      _
    // Predicated region
    $region62: #{tpu_custom_call.1} parent=1 // pred_check
      _
    $region63: #{tpu_custom_call.1} parent=1 // pred_check_branch
      %99 = sbr.rel (0) target = $region65
    $region64: #{tpu_custom_call.1} parent=1 // pred_region
      %100 = dma.done [#allocation8], 96
    $region65: #{tpu_custom_call.1} parent=1 // pred_fallthru
      _
    // Predicated region
    $region66: #{tpu_custom_call.1} parent=1 // pred_check
      _
    $region67: #{tpu_custom_call.1} parent=1 // pred_check_branch
      %102 = sbr.rel (0) target = $region69
    $region68: #{tpu_custom_call.1} parent=1 // pred_region
      %103 = dma.done [#allocation8], 96
    $region69: #{tpu_custom_call.1} parent=1 // pred_fallthru
      _
    // Predicated region
    $region70: #{tpu_custom_call.1} parent=1 // pred_check
      _
    $region71: #{tpu_custom_call.1} parent=1 // pred_check_branch
      %105 = sbr.rel (0) target = $region73
    $region72: #{tpu_custom_call.1} parent=1 // pred_region
      %106 = dma.done [#allocation11], 512
    $region73: #{tpu_custom_call.1} parent=1 // pred_fallthru
      _
    %v107 = vld [vmem:[#allocation4] sm:$0xff]
    %v108 = vld [vmem:[#allocation4 + $0x8] sm:$0xff]
    %v109 = vld [vmem:[%s3] sm:$0xff]
    %v110 = vld [vmem:[%s3 + $0x8] sm:$0xff]
    %v111 = vld [vmem:[%s3 + $0x10] sm:$0xff]
    %v112 = vld [vmem:[%s3 + $0x18] sm:$0xff]
    %v113 = vld [vmem:[%s3 + $0x20] sm:$0xff]
    %v114 = vld [vmem:[%s3 + $0x28] sm:$0xff]
    %v115 = vld [vmem:[%s3 + $0x30] sm:$0xff]
    %v116 = vld [vmem:[%s3 + $0x38] sm:$0xff]
    %v117 = vld [vmem:[%s5] sm:$0x1]
    %v119 = vlaneseq
    %v120 = vshrl.u32 %v119, 7
    %v121 = vsub.s32 0, %v120
    %v122 = vrot.slane %v117, %v121
    %vm124 = vcmask 523264
    %v126 = vsel %vm124, %v107, 0
    %v129 = vsel %vm124, %v108, 0
    %131 = vmatprep.subr.mxu0 0.0
    %132 = vmatpush1.msra.mxu0 %v109
    %133 = vmatprep.subr.mxu0 0.0
    %134 = vmatpush1.msra.mxu0 %v110
    %135 = vmatprep.subr.mxu0 0.0
    %136 = vmatpush1.msra.mxu0 %v111
    %137 = vmatprep.subr.mxu0 0.0
    %138 = vmatpush1.msra.mxu0 %v112
    %139 = vmatprep.subr.mxu0 0.0
    %140 = vmatpush1.msra.mxu0 %v113
    %141 = vmatprep.subr.mxu0 0.0
    %142 = vmatpush1.msra.mxu0 %v114
    %143 = vmatprep.subr.mxu0 0.0
    %144 = vmatpush1.msra.mxu0 %v115
    %145 = vmatprep.subr.mxu0 0.0
    %146 = vmatpush1.msra.mxu0 %v116
    %147 = vmatprep.subr.mxu0 0.0
    %148 = vmatpush1.msra.mxu0 0.0
    %149 = vmatprep.subr.mxu0 0.0
    %150 = vmatpush1.msra.mxu0 0.0
    %151 = vmatprep.subr.mxu0 0.0
    %152 = vmatpush1.msra.mxu0 0.0
    %153 = vmatprep.subr.mxu0 0.0
    %154 = vmatpush1.msra.mxu0 0.0
    %155 = vmatprep.subr.mxu0 0.0
    %156 = vmatpush1.msra.mxu0 0.0
    %157 = vmatprep.subr.mxu0 0.0
    %158 = vmatpush1.msra.mxu0 0.0
    %159 = vmatprep.subr.mxu0 0.0
    %160 = vmatpush1.msra.mxu0 0.0
    %161 = vmatprep.subr.mxu0 0.0
    %162 = vmatpush1.msra.mxu0 0.0
    %163 = vmatprep.subr.mxu0 0.0
    %164 = vmatpush1.msra.mxu0 0.0
    %165 = vmatprep.subr.mxu0 0.0
    %166 = vmatpush1.msra.mxu0 0.0
    %167 = vmatprep.subr.mxu0 0.0
    %168 = vmatpush1.msra.mxu0 0.0
    %169 = vmatprep.subr.mxu0 0.0
    %170 = vmatpush1.msra.mxu0 0.0
    %171 = vmatprep.subr.mxu0 0.0
    %172 = vmatpush1.msra.mxu0 0.0
    %173 = vmatprep.subr.mxu0 0.0
    %174 = vmatpush1.msra.mxu0 0.0
    %175 = vmatprep.subr.mxu0 0.0
    %176 = vmatpush1.msra.mxu0 0.0
    %177 = vmatprep.subr.mxu0 0.0
    %178 = vmatpush1.msra.mxu0 0.0
    %179 = vmatprep.subr.mxu0 0.0
    %180 = vmatpush1.msra.mxu0 0.0
    %181 = vmatprep.subr.mxu0 0.0
    %182 = vmatpush1.msra.mxu0 0.0
    %183 = vmatprep.subr.mxu0 0.0
    %184 = vmatpush1.msra.mxu0 0.0
    %185 = vmatprep.subr.mxu0 0.0
    %186 = vmatpush1.msra.mxu0 0.0
    %187 = vmatprep.subr.mxu0 0.0
    %188 = vmatpush1.msra.mxu0 0.0
    %189 = vmatprep.subr.mxu0 0.0
    %190 = vmatpush1.msra.mxu0 0.0
    %191 = vmatprep.subr.mxu0 0.0
    %192 = vmatpush1.msra.mxu0 0.0
    %193 = vmatprep.subr.mxu0 0.0
    %194 = vmatpush1.msra.mxu0 0.0
    %195 = vmatprep.mubr.f32.mxu0 0.0
    %196 = vmatmul.mubr.f32.gmra.mrb[0].mxu0 %v126
    %v197 = vpop.f32.mrb[0].mxu0
    %v198 = vadd.f32 %v122, %v197
    %v199 = vpop.f32.mrb[0].mxu0
    %200 = vmatprep.mubr.f32.mxu0 0.0
    %201 = vmatmul.mubr.f32.gmra.mrb[0].mxu0 %v129
    %v202 = vpop.f32.mrb[0].mxu0
    %v203 = vadd.f32 %v122, %v202
    %v204 = vpop.f32.mrb[0].mxu0
    %205 = vdwg.mxu0
    %206 = vst [vmem:[#allocation2] sm:$0xff] %v198
    %207 = vst [vmem:[#allocation2 + $0x8] sm:$0xff] %v203
    %v208 = vld [vmem:[%s4] sm:$0xff]
    %v209 = vld [vmem:[%s4 + $0x8] sm:$0xff]
    %v210 = vld [vmem:[%s4 + $0x10] sm:$0xff]
    %v211 = vld [vmem:[%s4 + $0x18] sm:$0xff]
    %v212 = vld [vmem:[#allocation7] sm:$0x3]
    %v213 = vld [vmem:[#allocation9] sm:$0x3]
    %v214 = vld [vmem:[#allocation2] sm:$0x3]
    %vm215 = vcmask 261120
    %v217 = vsel %vm215, %v212, 0
    %219 = vmatprep.subr.mxu0 0.0
    %220 = vmatpush1.msra.mxu0 %v208
    %221 = vmatprep.subr.mxu0 0.0
    %222 = vmatpush1.msra.mxu0 %v209
    %223 = vmatprep.subr.mxu0 0.0
    %224 = vmatpush1.msra.mxu0 %v210
    %225 = vmatprep.subr.mxu0 0.0
    %226 = vmatpush1.msra.mxu0 %v211
    %227 = vmatprep.subr.mxu0 0.0
    %228 = vmatpush1.msra.mxu0 0.0
    %229 = vmatprep.subr.mxu0 0.0
    %230 = vmatpush1.msra.mxu0 0.0
    %231 = vmatprep.subr.mxu0 0.0
    %232 = vmatpush1.msra.mxu0 0.0
    %233 = vmatprep.subr.mxu0 0.0
    %234 = vmatpush1.msra.mxu0 0.0
    %235 = vmatprep.subr.mxu0 0.0
    %236 = vmatpush1.msra.mxu0 0.0
    %237 = vmatprep.subr.mxu0 0.0
    %238 = vmatpush1.msra.mxu0 0.0
    %239 = vmatprep.subr.mxu0 0.0
    %240 = vmatpush1.msra.mxu0 0.0
    %241 = vmatprep.subr.mxu0 0.0
    %242 = vmatpush1.msra.mxu0 0.0
    %243 = vmatprep.subr.mxu0 0.0
    %244 = vmatpush1.msra.mxu0 0.0
    %245 = vmatprep.subr.mxu0 0.0
    %246 = vmatpush1.msra.mxu0 0.0
    %247 = vmatprep.subr.mxu0 0.0
    %248 = vmatpush1.msra.mxu0 0.0
    %249 = vmatprep.subr.mxu0 0.0
    %250 = vmatpush1.msra.mxu0 0.0
    %251 = vmatprep.subr.mxu0 0.0
    %252 = vmatpush1.msra.mxu0 0.0
    %253 = vmatprep.subr.mxu0 0.0
    %254 = vmatpush1.msra.mxu0 0.0
    %255 = vmatprep.subr.mxu0 0.0
    %256 = vmatpush1.msra.mxu0 0.0
    %257 = vmatprep.subr.mxu0 0.0
    %258 = vmatpush1.msra.mxu0 0.0
    %259 = vmatprep.subr.mxu0 0.0
    %260 = vmatpush1.msra.mxu0 0.0
    %261 = vmatprep.subr.mxu0 0.0
    %262 = vmatpush1.msra.mxu0 0.0
    %263 = vmatprep.subr.mxu0 0.0
    %264 = vmatpush1.msra.mxu0 0.0
    %265 = vmatprep.subr.mxu0 0.0
    %266 = vmatpush1.msra.mxu0 0.0
    %267 = vmatprep.subr.mxu0 0.0
    %268 = vmatpush1.msra.mxu0 0.0
    %269 = vmatprep.subr.mxu0 0.0
    %270 = vmatpush1.msra.mxu0 0.0
    %271 = vmatprep.subr.mxu0 0.0
    %272 = vmatpush1.msra.mxu0 0.0
    %273 = vmatprep.subr.mxu0 0.0
    %274 = vmatpush1.msra.mxu0 0.0
    %275 = vmatprep.subr.mxu0 0.0
    %276 = vmatpush1.msra.mxu0 0.0
    %277 = vmatprep.subr.mxu0 0.0
    %278 = vmatpush1.msra.mxu0 0.0
    %279 = vmatprep.subr.mxu0 0.0
    %280 = vmatpush1.msra.mxu0 0.0
    %281 = vmatprep.subr.mxu0 0.0
    %282 = vmatpush1.msra.mxu0 0.0
    %283 = vmatprep.mubr.f32.mxu0 0.0
    %284 = vmatmul.mubr.f32.gmra.mrb[0].mxu0 %v217
    %v285 = vpop.f32.mrb[0].mxu0
    %v286 = vadd.f32 0.0, %v285
    %v287 = vpop.f32.mrb[0].mxu0
    %288 = vdwg.mxu0
    %v289 = vadd.f32 %v214, %v286
    %v290 = vxor.u32 %v289, 2147483648
    %v291 = vmul.f32 %v290, 1.442695
    %v292 = vpow.pop %v291
    %v293 = vadd.f32 %v292, 1.0
    %v294 = vrcp.pop %v293
    %v295 = vmul.f32 1.0, %v294
    %v296 = vtanh.pop %v289
    %298 = vrot.lane.b32.xlu0 %v213, 32
    %v299 = vpop.permute.xlu0 %298
    %v301 = vmul.f32 %v295, %v299
    %303 = vrot.lane.b32.xlu0 %v296, 64
    %v304 = vpop.permute.xlu0 %303
    %v306 = vmul.f32 %v295, %v304
    %308 = vrot.lane.b32.xlu0 %v306, 32
    %v309 = vpop.permute.xlu0 %308
    %v311 = vadd.f32 %v301, %v309
    %v312 = vtanh.pop %v311
    %314 = vrot.lane.b32.xlu0 %v312, 64
    %v315 = vpop.permute.xlu0 %314
    %v317 = vmul.f32 %v295, %v315
    %319 = vrot.lane.b32.xlu0 %v317, 32
    %v320 = vpop.permute.xlu0 %319
    %vm322 = vcmask 254976
    %323 = vst.msk [vmem:[#allocation3] sm:$0x3] %vm322, %v320
    %v324 = vld [vmem:[#allocation2 + $0x2] sm:$0x3]
    %v325 = vsel %vm215, %v320, 0
    %327 = vmatprep.subr.mxu0 0.0
    %328 = vmatpush1.msra.mxu0 %v208
    %329 = vmatprep.subr.mxu0 0.0
    %330 = vmatpush1.msra.mxu0 %v209
    %331 = vmatprep.subr.mxu0 0.0
    %332 = vmatpush1.msra.mxu0 %v210
    %333 = vmatprep.subr.mxu0 0.0
    %334 = vmatpush1.msra.mxu0 %v211
    %335 = vmatprep.subr.mxu0 0.0
    %336 = vmatpush1.msra.mxu0 0.0
    %337 = vmatprep.subr.mxu0 0.0
    %338 = vmatpush1.msra.mxu0 0.0
    %339 = vmatprep.subr.mxu0 0.0
    %340 = vmatpush1.msra.mxu0 0.0
    %341 = vmatprep.subr.mxu0 0.0
    %342 = vmatpush1.msra.mxu0 0.0
    %343 = vmatprep.subr.mxu0 0.0
    %344 = vmatpush1.msra.mxu0 0.0
    %345 = vmatprep.subr.mxu0 0.0
    %346 = vmatpush1.msra.mxu0 0.0
    %347 = vmatprep.subr.mxu0 0.0
    %348 = vmatpush1.msra.mxu0 0.0
    %349 = vmatprep.subr.mxu0 0.0
    %350 = vmatpush1.msra.mxu0 0.0
    %351 = vmatprep.subr.mxu0 0.0
    %352 = vmatpush1.msra.mxu0 0.0
    %353 = vmatprep.subr.mxu0 0.0
    %354 = vmatpush1.msra.mxu0 0.0
    %355 = vmatprep.subr.mxu0 0.0
    %356 = vmatpush1.msra.mxu0 0.0
    %357 = vmatprep.subr.mxu0 0.0
    %358 = vmatpush1.msra.mxu0 0.0
    %359 = vmatprep.subr.mxu0 0.0
    %360 = vmatpush1.msra.mxu0 0.0
    %361 = vmatprep.subr.mxu0 0.0
    %362 = vmatpush1.msra.mxu0 0.0
    %363 = vmatprep.subr.mxu0 0.0
    %364 = vmatpush1.msra.mxu0 0.0
    %365 = vmatprep.subr.mxu0 0.0
    %366 = vmatpush1.msra.mxu0 0.0
    %367 = vmatprep.subr.mxu0 0.0
    %368 = vmatpush1.msra.mxu0 0.0
    %369 = vmatprep.subr.mxu0 0.0
    %370 = vmatpush1.msra.mxu0 0.0
    %371 = vmatprep.subr.mxu0 0.0
    %372 = vmatpush1.msra.mxu0 0.0
    %373 = vmatprep.subr.mxu0 0.0
    %374 = vmatpush1.msra.mxu0 0.0
    %375 = vmatprep.subr.mxu0 0.0
    %376 = vmatpush1.msra.mxu0 0.0
    %377 = vmatprep.subr.mxu0 0.0
    %378 = vmatpush1.msra.mxu0 0.0
    %379 = vmatprep.subr.mxu0 0.0
    %380 = vmatpush1.msra.mxu0 0.0
    %381 = vmatprep.subr.mxu0 0.0
    %382 = vmatpush1.msra.mxu0 0.0
    %383 = vmatprep.subr.mxu0 0.0
    %384 = vmatpush1.msra.mxu0 0.0
    %385 = vmatprep.subr.mxu0 0.0
    %386 = vmatpush1.msra.mxu0 0.0
    %387 = vmatprep.subr.mxu0 0.0
    %388 = vmatpush1.msra.mxu0 0.0
    %389 = vmatprep.subr.mxu0 0.0
    %390 = vmatpush1.msra.mxu0 0.0
    %391 = vmatprep.mubr.f32.mxu0 0.0
    %392 = vmatmul.mubr.f32.gmra.mrb[0].mxu0 %v325
    %v393 = vpop.f32.mrb[0].mxu0
    %v394 = vadd.f32 0.0, %v393
    %v395 = vpop.f32.mrb[0].mxu0
    %396 = vdwg.mxu0
    %v397 = vadd.f32 %v324, %v394
    %v398 = vxor.u32 %v397, 2147483648
    %v399 = vmul.f32 %v398, 1.442695
    %v400 = vpow.pop %v399
    %v401 = vadd.f32 %v400, 1.0
    %v402 = vrcp.pop %v401
    %v403 = vmul.f32 1.0, %v402
    %v404 = vtanh.pop %v397
    %v405 = vmul.f32 %v403, %v311
    %407 = vrot.lane.b32.xlu0 %v404, 64
    %v408 = vpop.permute.xlu0 %407
    %v410 = vmul.f32 %v403, %v408
    %412 = vrot.lane.b32.xlu0 %v410, 32
    %v413 = vpop.permute.xlu0 %412
    %v415 = vadd.f32 %v405, %v413
    %v416 = vtanh.pop %v415
    %418 = vrot.lane.b32.xlu0 %v416, 64
    %v419 = vpop.permute.xlu0 %418
    %v421 = vmul.f32 %v403, %v419
    %423 = vrot.lane.b32.xlu0 %v421, 32
    %v424 = vpop.permute.xlu0 %423
    %426 = vst.msk [vmem:[#allocation3 + $0x2] sm:$0x3] %vm322, %v424
    %v427 = vld [vmem:[#allocation2 + $0x4] sm:$0x3]
    %v428 = vsel %vm215, %v424, 0
    %430 = vmatprep.subr.mxu0 0.0
    %431 = vmatpush1.msra.mxu0 %v208
    %432 = vmatprep.subr.mxu0 0.0
    %433 = vmatpush1.msra.mxu0 %v209
    %434 = vmatprep.subr.mxu0 0.0
    %435 = vmatpush1.msra.mxu0 %v210
    %436 = vmatprep.subr.mxu0 0.0
    %437 = vmatpush1.msra.mxu0 %v211
    %438 = vmatprep.subr.mxu0 0.0
    %439 = vmatpush1.msra.mxu0 0.0
    %440 = vmatprep.subr.mxu0 0.0
    %441 = vmatpush1.msra.mxu0 0.0
    %442 = vmatprep.subr.mxu0 0.0
    %443 = vmatpush1.msra.mxu0 0.0
    %444 = vmatprep.subr.mxu0 0.0
    %445 = vmatpush1.msra.mxu0 0.0
    %446 = vmatprep.subr.mxu0 0.0
    %447 = vmatpush1.msra.mxu0 0.0
    %448 = vmatprep.subr.mxu0 0.0
    %449 = vmatpush1.msra.mxu0 0.0
    %450 = vmatprep.subr.mxu0 0.0
    %451 = vmatpush1.msra.mxu0 0.0
    %452 = vmatprep.subr.mxu0 0.0
    %453 = vmatpush1.msra.mxu0 0.0
    %454 = vmatprep.subr.mxu0 0.0
    %455 = vmatpush1.msra.mxu0 0.0
    %456 = vmatprep.subr.mxu0 0.0
    %457 = vmatpush1.msra.mxu0 0.0
    %458 = vmatprep.subr.mxu0 0.0
    %459 = vmatpush1.msra.mxu0 0.0
    %460 = vmatprep.subr.mxu0 0.0
    %461 = vmatpush1.msra.mxu0 0.0
    %462 = vmatprep.subr.mxu0 0.0
    %463 = vmatpush1.msra.mxu0 0.0
    %464 = vmatprep.subr.mxu0 0.0
    %465 = vmatpush1.msra.mxu0 0.0
    %466 = vmatprep.subr.mxu0 0.0
    %467 = vmatpush1.msra.mxu0 0.0
    %468 = vmatprep.subr.mxu0 0.0
    %469 = vmatpush1.msra.mxu0 0.0
    %470 = vmatprep.subr.mxu0 0.0
    %471 = vmatpush1.msra.mxu0 0.0
    %472 = vmatprep.subr.mxu0 0.0
    %473 = vmatpush1.msra.mxu0 0.0
    %474 = vmatprep.subr.mxu0 0.0
    %475 = vmatpush1.msra.mxu0 0.0
    %476 = vmatprep.subr.mxu0 0.0
    %477 = vmatpush1.msra.mxu0 0.0
    %478 = vmatprep.subr.mxu0 0.0
    %479 = vmatpush1.msra.mxu0 0.0
    %480 = vmatprep.subr.mxu0 0.0
    %481 = vmatpush1.msra.mxu0 0.0
    %482 = vmatprep.subr.mxu0 0.0
    %483 = vmatpush1.msra.mxu0 0.0
    %484 = vmatprep.subr.mxu0 0.0
    %485 = vmatpush1.msra.mxu0 0.0
    %486 = vmatprep.subr.mxu0 0.0
    %487 = vmatpush1.msra.mxu0 0.0
    %488 = vmatprep.subr.mxu0 0.0
    %489 = vmatpush1.msra.mxu0 0.0
    %490 = vmatprep.subr.mxu0 0.0
    %491 = vmatpush1.msra.mxu0 0.0
    %492 = vmatprep.subr.mxu0 0.0
    %493 = vmatpush1.msra.mxu0 0.0
    %494 = vmatprep.mubr.f32.mxu0 0.0
    %495 = vmatmul.mubr.f32.gmra.mrb[0].mxu0 %v428
    %v496 = vpop.f32.mrb[0].mxu0
    %v497 = vadd.f32 0.0, %v496
    %v498 = vpop.f32.mrb[0].mxu0
    %499 = vdwg.mxu0
    %v500 = vadd.f32 %v427, %v497
    %v501 = vxor.u32 %v500, 2147483648
    %v502 = vmul.f32 %v501, 1.442695
    %v503 = vpow.pop %v502
    %v504 = vadd.f32 %v503, 1.0
    %v505 = vrcp.pop %v504
    %v506 = vmul.f32 1.0, %v505
    %v507 = vtanh.pop %v500
    %v508 = vmul.f32 %v506, %v415
    %510 = vrot.lane.b32.xlu0 %v507, 64
    %v511 = vpop.permute.xlu0 %510
    %v513 = vmul.f32 %v506, %v511
    %515 = vrot.lane.b32.xlu0 %v513, 32
    %v516 = vpop.permute.xlu0 %515
    %v518 = vadd.f32 %v508, %v516
    %v519 = vtanh.pop %v518
    %521 = vrot.lane.b32.xlu0 %v519, 64
    %v522 = vpop.permute.xlu0 %521
    %v524 = vmul.f32 %v506, %v522
    %526 = vrot.lane.b32.xlu0 %v524, 32
    %v527 = vpop.permute.xlu0 %526
    %529 = vst.msk [vmem:[#allocation3 + $0x4] sm:$0x3] %vm322, %v527
    %v530 = vld [vmem:[#allocation2 + $0x6] sm:$0x3]
    %v531 = vsel %vm215, %v527, 0
    %533 = vmatprep.subr.mxu0 0.0
    %534 = vmatpush1.msra.mxu0 %v208
    %535 = vmatprep.subr.mxu0 0.0
    %536 = vmatpush1.msra.mxu0 %v209
    %537 = vmatprep.subr.mxu0 0.0
    %538 = vmatpush1.msra.mxu0 %v210
    %539 = vmatprep.subr.mxu0 0.0
    %540 = vmatpush1.msra.mxu0 %v211
    %541 = vmatprep.subr.mxu0 0.0
    %542 = vmatpush1.msra.mxu0 0.0
    %543 = vmatprep.subr.mxu0 0.0
    %544 = vmatpush1.msra.mxu0 0.0
    %545 = vmatprep.subr.mxu0 0.0
    %546 = vmatpush1.msra.mxu0 0.0
    %547 = vmatprep.subr.mxu0 0.0
    %548 = vmatpush1.msra.mxu0 0.0
    %549 = vmatprep.subr.mxu0 0.0
    %550 = vmatpush1.msra.mxu0 0.0
    %551 = vmatprep.subr.mxu0 0.0
    %552 = vmatpush1.msra.mxu0 0.0
    %553 = vmatprep.subr.mxu0 0.0
    %554 = vmatpush1.msra.mxu0 0.0
    %555 = vmatprep.subr.mxu0 0.0
    %556 = vmatpush1.msra.mxu0 0.0
    %557 = vmatprep.subr.mxu0 0.0
    %558 = vmatpush1.msra.mxu0 0.0
    %559 = vmatprep.subr.mxu0 0.0
    %560 = vmatpush1.msra.mxu0 0.0
    %561 = vmatprep.subr.mxu0 0.0
    %562 = vmatpush1.msra.mxu0 0.0
    %563 = vmatprep.subr.mxu0 0.0
    %564 = vmatpush1.msra.mxu0 0.0
    %565 = vmatprep.subr.mxu0 0.0
    %566 = vmatpush1.msra.mxu0 0.0
    %567 = vmatprep.subr.mxu0 0.0
    %568 = vmatpush1.msra.mxu0 0.0
    %569 = vmatprep.subr.mxu0 0.0
    %570 = vmatpush1.msra.mxu0 0.0
    %571 = vmatprep.subr.mxu0 0.0
    %572 = vmatpush1.msra.mxu0 0.0
    %573 = vmatprep.subr.mxu0 0.0
    %574 = vmatpush1.msra.mxu0 0.0
    %575 = vmatprep.subr.mxu0 0.0
    %576 = vmatpush1.msra.mxu0 0.0
    %577 = vmatprep.subr.mxu0 0.0
    %578 = vmatpush1.msra.mxu0 0.0
    %579 = vmatprep.subr.mxu0 0.0
    %580 = vmatpush1.msra.mxu0 0.0
    %581 = vmatprep.subr.mxu0 0.0
    %582 = vmatpush1.msra.mxu0 0.0
    %583 = vmatprep.subr.mxu0 0.0
    %584 = vmatpush1.msra.mxu0 0.0
    %585 = vmatprep.subr.mxu0 0.0
    %586 = vmatpush1.msra.mxu0 0.0
    %587 = vmatprep.subr.mxu0 0.0
    %588 = vmatpush1.msra.mxu0 0.0
    %589 = vmatprep.subr.mxu0 0.0
    %590 = vmatpush1.msra.mxu0 0.0
    %591 = vmatprep.subr.mxu0 0.0
    %592 = vmatpush1.msra.mxu0 0.0
    %593 = vmatprep.subr.mxu0 0.0
    %594 = vmatpush1.msra.mxu0 0.0
    %595 = vmatprep.subr.mxu0 0.0
    %596 = vmatpush1.msra.mxu0 0.0
    %597 = vmatprep.mubr.f32.mxu0 0.0
    %598 = vmatmul.mubr.f32.gmra.mrb[0].mxu0 %v531
    %v599 = vpop.f32.mrb[0].mxu0
    %v600 = vadd.f32 0.0, %v599
    %v601 = vpop.f32.mrb[0].mxu0
    %602 = vdwg.mxu0
    %v603 = vadd.f32 %v530, %v600
    %v604 = vxor.u32 %v603, 2147483648
    %v605 = vmul.f32 %v604, 1.442695
    %v606 = vpow.pop %v605
    %v607 = vadd.f32 %v606, 1.0
    %v608 = vrcp.pop %v607
    %v609 = vmul.f32 1.0, %v608
    %v610 = vtanh.pop %v603
    %v611 = vmul.f32 %v609, %v518
    %613 = vrot.lane.b32.xlu0 %v610, 64
    %v614 = vpop.permute.xlu0 %613
    %v616 = vmul.f32 %v609, %v614
    %618 = vrot.lane.b32.xlu0 %v616, 32
    %v619 = vpop.permute.xlu0 %618
    %v621 = vadd.f32 %v611, %v619
    %v622 = vtanh.pop %v621
    %624 = vrot.lane.b32.xlu0 %v622, 64
    %v625 = vpop.permute.xlu0 %624
    %v627 = vmul.f32 %v609, %v625
    %629 = vrot.lane.b32.xlu0 %v627, 32
    %v630 = vpop.permute.xlu0 %629
    %632 = vst.msk [vmem:[#allocation3 + $0x6] sm:$0x3] %vm322, %v630
    %v633 = vld [vmem:[#allocation2 + $0x8] sm:$0x3]
    %v634 = vsel %vm215, %v630, 0
    %636 = vmatprep.subr.mxu0 0.0
    %637 = vmatpush1.msra.mxu0 %v208
    %638 = vmatprep.subr.mxu0 0.0
    %639 = vmatpush1.msra.mxu0 %v209
    %640 = vmatprep.subr.mxu0 0.0
    %641 = vmatpush1.msra.mxu0 %v210
    %642 = vmatprep.subr.mxu0 0.0
    %643 = vmatpush1.msra.mxu0 %v211
    %644 = vmatprep.subr.mxu0 0.0
    %645 = vmatpush1.msra.mxu0 0.0
    %646 = vmatprep.subr.mxu0 0.0
    %647 = vmatpush1.msra.mxu0 0.0
    %648 = vmatprep.subr.mxu0 0.0
    %649 = vmatpush1.msra.mxu0 0.0
    %650 = vmatprep.subr.mxu0 0.0
    %651 = vmatpush1.msra.mxu0 0.0
    %652 = vmatprep.subr.mxu0 0.0
    %653 = vmatpush1.msra.mxu0 0.0
    %654 = vmatprep.subr.mxu0 0.0
    %655 = vmatpush1.msra.mxu0 0.0
    %656 = vmatprep.subr.mxu0 0.0
    %657 = vmatpush1.msra.mxu0 0.0
    %658 = vmatprep.subr.mxu0 0.0
    %659 = vmatpush1.msra.mxu0 0.0
    %660 = vmatprep.subr.mxu0 0.0
    %661 = vmatpush1.msra.mxu0 0.0
    %662 = vmatprep.subr.mxu0 0.0
    %663 = vmatpush1.msra.mxu0 0.0
    %664 = vmatprep.subr.mxu0 0.0
    %665 = vmatpush1.msra.mxu0 0.0
    %666 = vmatprep.subr.mxu0 0.0
    %667 = vmatpush1.msra.mxu0 0.0
    %668 = vmatprep.subr.mxu0 0.0
    %669 = vmatpush1.msra.mxu0 0.0
    %670 = vmatprep.subr.mxu0 0.0
    %671 = vmatpush1.msra.mxu0 0.0
    %672 = vmatprep.subr.mxu0 0.0
    %673 = vmatpush1.msra.mxu0 0.0
    %674 = vmatprep.subr.mxu0 0.0
    %675 = vmatpush1.msra.mxu0 0.0
    %676 = vmatprep.subr.mxu0 0.0
    %677 = vmatpush1.msra.mxu0 0.0
    %678 = vmatprep.subr.mxu0 0.0
    %679 = vmatpush1.msra.mxu0 0.0
    %680 = vmatprep.subr.mxu0 0.0
    %681 = vmatpush1.msra.mxu0 0.0
    %682 = vmatprep.subr.mxu0 0.0
    %683 = vmatpush1.msra.mxu0 0.0
    %684 = vmatprep.subr.mxu0 0.0
    %685 = vmatpush1.msra.mxu0 0.0
    %686 = vmatprep.subr.mxu0 0.0
    %687 = vmatpush1.msra.mxu0 0.0
    %688 = vmatprep.subr.mxu0 0.0
    %689 = vmatpush1.msra.mxu0 0.0
    %690 = vmatprep.subr.mxu0 0.0
    %691 = vmatpush1.msra.mxu0 0.0
    %692 = vmatprep.subr.mxu0 0.0
    %693 = vmatpush1.msra.mxu0 0.0
    %694 = vmatprep.subr.mxu0 0.0
    %695 = vmatpush1.msra.mxu0 0.0
    %696 = vmatprep.subr.mxu0 0.0
    %697 = vmatpush1.msra.mxu0 0.0
    %698 = vmatprep.subr.mxu0 0.0
    %699 = vmatpush1.msra.mxu0 0.0
    %700 = vmatprep.mubr.f32.mxu0 0.0
    %701 = vmatmul.mubr.f32.gmra.mrb[0].mxu0 %v634
    %v702 = vpop.f32.mrb[0].mxu0
    %v703 = vadd.f32 0.0, %v702
    %v704 = vpop.f32.mrb[0].mxu0
    %705 = vdwg.mxu0
    %v706 = vadd.f32 %v633, %v703
    %v707 = vxor.u32 %v706, 2147483648
    %v708 = vmul.f32 %v707, 1.442695
    %v709 = vpow.pop %v708
    %v710 = vadd.f32 %v709, 1.0
    %v711 = vrcp.pop %v710
    %v712 = vmul.f32 1.0, %v711
    %v713 = vtanh.pop %v706
    %v714 = vmul.f32 %v712, %v621
    %716 = vrot.lane.b32.xlu0 %v713, 64
    %v717 = vpop.permute.xlu0 %716
    %v719 = vmul.f32 %v712, %v717
    %721 = vrot.lane.b32.xlu0 %v719, 32
    %v722 = vpop.permute.xlu0 %721
    %v724 = vadd.f32 %v714, %v722
    %v725 = vtanh.pop %v724
    %727 = vrot.lane.b32.xlu0 %v725, 64
    %v728 = vpop.permute.xlu0 %727
    %v730 = vmul.f32 %v712, %v728
    %732 = vrot.lane.b32.xlu0 %v730, 32
    %v733 = vpop.permute.xlu0 %732
    %735 = vst.msk [vmem:[#allocation3 + $0x8] sm:$0x3] %vm322, %v733
    %v736 = vld [vmem:[#allocation2 + $0xa] sm:$0x3]
    %v737 = vsel %vm215, %v733, 0
    %739 = vmatprep.subr.mxu0 0.0
    %740 = vmatpush1.msra.mxu0 %v208
    %741 = vmatprep.subr.mxu0 0.0
    %742 = vmatpush1.msra.mxu0 %v209
    %743 = vmatprep.subr.mxu0 0.0
    %744 = vmatpush1.msra.mxu0 %v210
    %745 = vmatprep.subr.mxu0 0.0
    %746 = vmatpush1.msra.mxu0 %v211
    %747 = vmatprep.subr.mxu0 0.0
    %748 = vmatpush1.msra.mxu0 0.0
    %749 = vmatprep.subr.mxu0 0.0
    %750 = vmatpush1.msra.mxu0 0.0
    %751 = vmatprep.subr.mxu0 0.0
    %752 = vmatpush1.msra.mxu0 0.0
    %753 = vmatprep.subr.mxu0 0.0
    %754 = vmatpush1.msra.mxu0 0.0
    %755 = vmatprep.subr.mxu0 0.0
    %756 = vmatpush1.msra.mxu0 0.0
    %757 = vmatprep.subr.mxu0 0.0
    %758 = vmatpush1.msra.mxu0 0.0
    %759 = vmatprep.subr.mxu0 0.0
    %760 = vmatpush1.msra.mxu0 0.0
    %761 = vmatprep.subr.mxu0 0.0
    %762 = vmatpush1.msra.mxu0 0.0
    %763 = vmatprep.subr.mxu0 0.0
    %764 = vmatpush1.msra.mxu0 0.0
    %765 = vmatprep.subr.mxu0 0.0
    %766 = vmatpush1.msra.mxu0 0.0
    %767 = vmatprep.subr.mxu0 0.0
    %768 = vmatpush1.msra.mxu0 0.0
    %769 = vmatprep.subr.mxu0 0.0
    %770 = vmatpush1.msra.mxu0 0.0
    %771 = vmatprep.subr.mxu0 0.0
    %772 = vmatpush1.msra.mxu0 0.0
    %773 = vmatprep.subr.mxu0 0.0
    %774 = vmatpush1.msra.mxu0 0.0
    %775 = vmatprep.subr.mxu0 0.0
    %776 = vmatpush1.msra.mxu0 0.0
    %777 = vmatprep.subr.mxu0 0.0
    %778 = vmatpush1.msra.mxu0 0.0
    %779 = vmatprep.subr.mxu0 0.0
    %780 = vmatpush1.msra.mxu0 0.0
    %781 = vmatprep.subr.mxu0 0.0
    %782 = vmatpush1.msra.mxu0 0.0
    %783 = vmatprep.subr.mxu0 0.0
    %784 = vmatpush1.msra.mxu0 0.0
    %785 = vmatprep.subr.mxu0 0.0
    %786 = vmatpush1.msra.mxu0 0.0
    %787 = vmatprep.subr.mxu0 0.0
    %788 = vmatpush1.msra.mxu0 0.0
    %789 = vmatprep.subr.mxu0 0.0
    %790 = vmatpush1.msra.mxu0 0.0
    %791 = vmatprep.subr.mxu0 0.0
    %792 = vmatpush1.msra.mxu0 0.0
    %793 = vmatprep.subr.mxu0 0.0
    %794 = vmatpush1.msra.mxu0 0.0
    %795 = vmatprep.subr.mxu0 0.0
    %796 = vmatpush1.msra.mxu0 0.0
    %797 = vmatprep.subr.mxu0 0.0
    %798 = vmatpush1.msra.mxu0 0.0
    %799 = vmatprep.subr.mxu0 0.0
    %800 = vmatpush1.msra.mxu0 0.0
    %801 = vmatprep.subr.mxu0 0.0
    %802 = vmatpush1.msra.mxu0 0.0
    %803 = vmatprep.mubr.f32.mxu0 0.0
    %804 = vmatmul.mubr.f32.gmra.mrb[0].mxu0 %v737
    %v805 = vpop.f32.mrb[0].mxu0
    %v806 = vadd.f32 0.0, %v805
    %v807 = vpop.f32.mrb[0].mxu0
    %808 = vdwg.mxu0
    %v809 = vadd.f32 %v736, %v806
    %v810 = vxor.u32 %v809, 2147483648
    %v811 = vmul.f32 %v810, 1.442695
    %v812 = vpow.pop %v811
    %v813 = vadd.f32 %v812, 1.0
    %v814 = vrcp.pop %v813
    %v815 = vmul.f32 1.0, %v814
    %v816 = vtanh.pop %v809
    %v817 = vmul.f32 %v815, %v724
    %819 = vrot.lane.b32.xlu0 %v816, 64
    %v820 = vpop.permute.xlu0 %819
    %v822 = vmul.f32 %v815, %v820
    %824 = vrot.lane.b32.xlu0 %v822, 32
    %v825 = vpop.permute.xlu0 %824
    %v827 = vadd.f32 %v817, %v825
    %v828 = vtanh.pop %v827
    %830 = vrot.lane.b32.xlu0 %v828, 64
    %v831 = vpop.permute.xlu0 %830
    %v833 = vmul.f32 %v815, %v831
    %835 = vrot.lane.b32.xlu0 %v833, 32
    %v836 = vpop.permute.xlu0 %835
    %838 = vst.msk [vmem:[#allocation3 + $0xa] sm:$0x3] %vm322, %v836
    %v839 = vld [vmem:[#allocation2 + $0xc] sm:$0x3]
    %v840 = vsel %vm215, %v836, 0
    %842 = vmatprep.subr.mxu0 0.0
    %843 = vmatpush1.msra.mxu0 %v208
    %844 = vmatprep.subr.mxu0 0.0
    %845 = vmatpush1.msra.mxu0 %v209
    %846 = vmatprep.subr.mxu0 0.0
    %847 = vmatpush1.msra.mxu0 %v210
    %848 = vmatprep.subr.mxu0 0.0
    %849 = vmatpush1.msra.mxu0 %v211
    %850 = vmatprep.subr.mxu0 0.0
    %851 = vmatpush1.msra.mxu0 0.0
    %852 = vmatprep.subr.mxu0 0.0
    %853 = vmatpush1.msra.mxu0 0.0
    %854 = vmatprep.subr.mxu0 0.0
    %855 = vmatpush1.msra.mxu0 0.0
    %856 = vmatprep.subr.mxu0 0.0
    %857 = vmatpush1.msra.mxu0 0.0
    %858 = vmatprep.subr.mxu0 0.0
    %859 = vmatpush1.msra.mxu0 0.0
    %860 = vmatprep.subr.mxu0 0.0
    %861 = vmatpush1.msra.mxu0 0.0
    %862 = vmatprep.subr.mxu0 0.0
    %863 = vmatpush1.msra.mxu0 0.0
    %864 = vmatprep.subr.mxu0 0.0
    %865 = vmatpush1.msra.mxu0 0.0
    %866 = vmatprep.subr.mxu0 0.0
    %867 = vmatpush1.msra.mxu0 0.0
    %868 = vmatprep.subr.mxu0 0.0
    %869 = vmatpush1.msra.mxu0 0.0
    %870 = vmatprep.subr.mxu0 0.0
    %871 = vmatpush1.msra.mxu0 0.0
    %872 = vmatprep.subr.mxu0 0.0
    %873 = vmatpush1.msra.mxu0 0.0
    %874 = vmatprep.subr.mxu0 0.0
    %875 = vmatpush1.msra.mxu0 0.0
    %876 = vmatprep.subr.mxu0 0.0
    %877 = vmatpush1.msra.mxu0 0.0
    %878 = vmatprep.subr.mxu0 0.0
    %879 = vmatpush1.msra.mxu0 0.0
    %880 = vmatprep.subr.mxu0 0.0
    %881 = vmatpush1.msra.mxu0 0.0
    %882 = vmatprep.subr.mxu0 0.0
    %883 = vmatpush1.msra.mxu0 0.0
    %884 = vmatprep.subr.mxu0 0.0
    %885 = vmatpush1.msra.mxu0 0.0
    %886 = vmatprep.subr.mxu0 0.0
    %887 = vmatpush1.msra.mxu0 0.0
    %888 = vmatprep.subr.mxu0 0.0
    %889 = vmatpush1.msra.mxu0 0.0
    %890 = vmatprep.subr.mxu0 0.0
    %891 = vmatpush1.msra.mxu0 0.0
    %892 = vmatprep.subr.mxu0 0.0
    %893 = vmatpush1.msra.mxu0 0.0
    %894 = vmatprep.subr.mxu0 0.0
    %895 = vmatpush1.msra.mxu0 0.0
    %896 = vmatprep.subr.mxu0 0.0
    %897 = vmatpush1.msra.mxu0 0.0
    %898 = vmatprep.subr.mxu0 0.0
    %899 = vmatpush1.msra.mxu0 0.0
    %900 = vmatprep.subr.mxu0 0.0
    %901 = vmatpush1.msra.mxu0 0.0
    %902 = vmatprep.subr.mxu0 0.0
    %903 = vmatpush1.msra.mxu0 0.0
    %904 = vmatprep.subr.mxu0 0.0
    %905 = vmatpush1.msra.mxu0 0.0
    %906 = vmatprep.mubr.f32.mxu0 0.0
    %907 = vmatmul.mubr.f32.gmra.mrb[0].mxu0 %v840
    %v908 = vpop.f32.mrb[0].mxu0
    %v909 = vadd.f32 0.0, %v908
    %v910 = vpop.f32.mrb[0].mxu0
    %911 = vdwg.mxu0
    %v912 = vadd.f32 %v839, %v909
    %v913 = vxor.u32 %v912, 2147483648
    %v914 = vmul.f32 %v913, 1.442695
    %v915 = vpow.pop %v914
    %v916 = vadd.f32 %v915, 1.0
    %v917 = vrcp.pop %v916
    %v918 = vmul.f32 1.0, %v917
    %v919 = vtanh.pop %v912
    %v920 = vmul.f32 %v918, %v827
    %922 = vrot.lane.b32.xlu0 %v919, 64
    %v923 = vpop.permute.xlu0 %922
    %v925 = vmul.f32 %v918, %v923
    %927 = vrot.lane.b32.xlu0 %v925, 32
    %v928 = vpop.permute.xlu0 %927
    %v930 = vadd.f32 %v920, %v928
    %v931 = vtanh.pop %v930
    %933 = vrot.lane.b32.xlu0 %v931, 64
    %v934 = vpop.permute.xlu0 %933
    %v936 = vmul.f32 %v918, %v934
    %938 = vrot.lane.b32.xlu0 %v936, 32
    %v939 = vpop.permute.xlu0 %938
    %941 = vst.msk [vmem:[#allocation3 + $0xc] sm:$0x3] %vm322, %v939
    %v942 = vld [vmem:[#allocation2 + $0xe] sm:$0x3]
    %v943 = vsel %vm215, %v939, 0
    %945 = vmatprep.subr.mxu0 0.0
    %946 = vmatpush1.msra.mxu0 %v208
    %947 = vmatprep.subr.mxu0 0.0
    %948 = vmatpush1.msra.mxu0 %v209
    %949 = vmatprep.subr.mxu0 0.0
    %950 = vmatpush1.msra.mxu0 %v210
    %951 = vmatprep.subr.mxu0 0.0
    %952 = vmatpush1.msra.mxu0 %v211
    %953 = vmatprep.subr.mxu0 0.0
    %954 = vmatpush1.msra.mxu0 0.0
    %955 = vmatprep.subr.mxu0 0.0
    %956 = vmatpush1.msra.mxu0 0.0
    %957 = vmatprep.subr.mxu0 0.0
    %958 = vmatpush1.msra.mxu0 0.0
    %959 = vmatprep.subr.mxu0 0.0
    %960 = vmatpush1.msra.mxu0 0.0
    %961 = vmatprep.subr.mxu0 0.0
    %962 = vmatpush1.msra.mxu0 0.0
    %963 = vmatprep.subr.mxu0 0.0
    %964 = vmatpush1.msra.mxu0 0.0
    %965 = vmatprep.subr.mxu0 0.0
    %966 = vmatpush1.msra.mxu0 0.0
    %967 = vmatprep.subr.mxu0 0.0
    %968 = vmatpush1.msra.mxu0 0.0
    %969 = vmatprep.subr.mxu0 0.0
    %970 = vmatpush1.msra.mxu0 0.0
    %971 = vmatprep.subr.mxu0 0.0
    %972 = vmatpush1.msra.mxu0 0.0
    %973 = vmatprep.subr.mxu0 0.0
    %974 = vmatpush1.msra.mxu0 0.0
    %975 = vmatprep.subr.mxu0 0.0
    %976 = vmatpush1.msra.mxu0 0.0
    %977 = vmatprep.subr.mxu0 0.0
    %978 = vmatpush1.msra.mxu0 0.0
    %979 = vmatprep.subr.mxu0 0.0
    %980 = vmatpush1.msra.mxu0 0.0
    %981 = vmatprep.subr.mxu0 0.0
    %982 = vmatpush1.msra.mxu0 0.0
    %983 = vmatprep.subr.mxu0 0.0
    %984 = vmatpush1.msra.mxu0 0.0
    %985 = vmatprep.subr.mxu0 0.0
    %986 = vmatpush1.msra.mxu0 0.0
    %987 = vmatprep.subr.mxu0 0.0
    %988 = vmatpush1.msra.mxu0 0.0
    %989 = vmatprep.subr.mxu0 0.0
    %990 = vmatpush1.msra.mxu0 0.0
    %991 = vmatprep.subr.mxu0 0.0
    %992 = vmatpush1.msra.mxu0 0.0
    %993 = vmatprep.subr.mxu0 0.0
    %994 = vmatpush1.msra.mxu0 0.0
    %995 = vmatprep.subr.mxu0 0.0
    %996 = vmatpush1.msra.mxu0 0.0
    %997 = vmatprep.subr.mxu0 0.0
    %998 = vmatpush1.msra.mxu0 0.0
    %999 = vmatprep.subr.mxu0 0.0
    %1000 = vmatpush1.msra.mxu0 0.0
    %1001 = vmatprep.subr.mxu0 0.0
    %1002 = vmatpush1.msra.mxu0 0.0
    %1003 = vmatprep.subr.mxu0 0.0
    %1004 = vmatpush1.msra.mxu0 0.0
    %1005 = vmatprep.subr.mxu0 0.0
    %1006 = vmatpush1.msra.mxu0 0.0
    %1007 = vmatprep.subr.mxu0 0.0
    %1008 = vmatpush1.msra.mxu0 0.0
    %1009 = vmatprep.mubr.f32.mxu0 0.0
    %1010 = vmatmul.mubr.f32.gmra.mrb[0].mxu0 %v943
    %v1011 = vpop.f32.mrb[0].mxu0
    %v1012 = vadd.f32 0.0, %v1011
    %v1013 = vpop.f32.mrb[0].mxu0
    %1014 = vdwg.mxu0
    %v1015 = vadd.f32 %v942, %v1012
    %v1016 = vxor.u32 %v1015, 2147483648
    %v1017 = vmul.f32 %v1016, 1.442695
    %v1018 = vpow.pop %v1017
    %v1019 = vadd.f32 %v1018, 1.0
    %v1020 = vrcp.pop %v1019
    %v1021 = vmul.f32 1.0, %v1020
    %v1022 = vtanh.pop %v1015
    %v1023 = vmul.f32 %v1021, %v930
    %1025 = vrot.lane.b32.xlu0 %v1022, 64
    %v1026 = vpop.permute.xlu0 %1025
    %v1028 = vmul.f32 %v1021, %v1026
    %1030 = vrot.lane.b32.xlu0 %v1028, 32
    %v1031 = vpop.permute.xlu0 %1030
    %v1033 = vadd.f32 %v1023, %v1031
    %v1034 = vtanh.pop %v1033
    %1036 = vrot.lane.b32.xlu0 %v1034, 64
    %v1037 = vpop.permute.xlu0 %1036
    %v1039 = vmul.f32 %v1021, %v1037
    %1041 = vrot.lane.b32.xlu0 %v1039, 32
    %v1042 = vpop.permute.xlu0 %1041
    %1044 = vst.msk [vmem:[#allocation3 + $0xe] sm:$0x3] %vm322, %v1042
    %1045 = vst.msk [vmem:[#allocation13] sm:$0x3] %vm322, %v1042
    %1047 = vrot.lane.b32.xlu0 %v1033, 96
    %v1048 = vpop.permute.xlu0 %1047
    %1050 = vst.msk [vmem:[#allocation15] sm:$0x3] %vm322, %v1048
    %v1051 = vld [vmem:[%s12] sm:$0xff]
    %v1052 = vld [vmem:[%s12 + $0x8] sm:$0xff]
    %v1053 = vld [vmem:[%s12 + $0x10] sm:$0xff]
    %v1054 = vld [vmem:[%s12 + $0x18] sm:$0xff]
    %v1055 = vld [vmem:[#allocation3] sm:$0xff]
    %v1056 = vld [vmem:[#allocation3 + $0x8] sm:$0xff]
    %v1057 = vld [vmem:[%s6] sm:$0xff]
    %v1058 = vld [vmem:[%s6 + $0x8] sm:$0xff]
    %v1059 = vld [vmem:[%s6 + $0x10] sm:$0xff]
    %v1060 = vld [vmem:[%s6 + $0x18] sm:$0xff]
    %v1061 = vld [vmem:[%s8] sm:$0x1]
    %v1063 = vlaneseq
    %v1064 = vshrl.u32 %v1063, 7
    %v1065 = vsub.s32 0, %v1064
    %v1066 = vrot.slane %v1061, %v1065
    %v1069 = vsel %vm215, %v1055, 0
    %v1072 = vsel %vm215, %v1056, 0
    %1074 = vmatprep.subr.mxu0 0.0
    %1075 = vmatpush1.msra.mxu0 %v1057
    %1076 = vmatprep.subr.mxu0 0.0
    %1077 = vmatpush1.msra.mxu0 %v1058
    %1078 = vmatprep.subr.mxu0 0.0
    %1079 = vmatpush1.msra.mxu0 %v1059
    %1080 = vmatprep.subr.mxu0 0.0
    %1081 = vmatpush1.msra.mxu0 %v1060
    %1082 = vmatprep.subr.mxu0 0.0
    %1083 = vmatpush1.msra.mxu0 0.0
    %1084 = vmatprep.subr.mxu0 0.0
    %1085 = vmatpush1.msra.mxu0 0.0
    %1086 = vmatprep.subr.mxu0 0.0
    %1087 = vmatpush1.msra.mxu0 0.0
    %1088 = vmatprep.subr.mxu0 0.0
    %1089 = vmatpush1.msra.mxu0 0.0
    %1090 = vmatprep.subr.mxu0 0.0
    %1091 = vmatpush1.msra.mxu0 0.0
    %1092 = vmatprep.subr.mxu0 0.0
    %1093 = vmatpush1.msra.mxu0 0.0
    %1094 = vmatprep.subr.mxu0 0.0
    %1095 = vmatpush1.msra.mxu0 0.0
    %1096 = vmatprep.subr.mxu0 0.0
    %1097 = vmatpush1.msra.mxu0 0.0
    %1098 = vmatprep.subr.mxu0 0.0
    %1099 = vmatpush1.msra.mxu0 0.0
    %1100 = vmatprep.subr.mxu0 0.0
    %1101 = vmatpush1.msra.mxu0 0.0
    %1102 = vmatprep.subr.mxu0 0.0
    %1103 = vmatpush1.msra.mxu0 0.0
    %1104 = vmatprep.subr.mxu0 0.0
    %1105 = vmatpush1.msra.mxu0 0.0
    %1106 = vmatprep.subr.mxu0 0.0
    %1107 = vmatpush1.msra.mxu0 0.0
    %1108 = vmatprep.subr.mxu0 0.0
    %1109 = vmatpush1.msra.mxu0 0.0
    %1110 = vmatprep.subr.mxu0 0.0
    %1111 = vmatpush1.msra.mxu0 0.0
    %1112 = vmatprep.subr.mxu0 0.0
    %1113 = vmatpush1.msra.mxu0 0.0
    %1114 = vmatprep.subr.mxu0 0.0
    %1115 = vmatpush1.msra.mxu0 0.0
    %1116 = vmatprep.subr.mxu0 0.0
    %1117 = vmatpush1.msra.mxu0 0.0
    %1118 = vmatprep.subr.mxu0 0.0
    %1119 = vmatpush1.msra.mxu0 0.0
    %1120 = vmatprep.subr.mxu0 0.0
    %1121 = vmatpush1.msra.mxu0 0.0
    %1122 = vmatprep.subr.mxu0 0.0
    %1123 = vmatpush1.msra.mxu0 0.0
    %1124 = vmatprep.subr.mxu0 0.0
    %1125 = vmatpush1.msra.mxu0 0.0
    %1126 = vmatprep.subr.mxu0 0.0
    %1127 = vmatpush1.msra.mxu0 0.0
    %1128 = vmatprep.subr.mxu0 0.0
    %1129 = vmatpush1.msra.mxu0 0.0
    %1130 = vmatprep.subr.mxu0 0.0
    %1131 = vmatpush1.msra.mxu0 0.0
    %1132 = vmatprep.subr.mxu0 0.0
    %1133 = vmatpush1.msra.mxu0 0.0
    %1134 = vmatprep.subr.mxu0 0.0
    %1135 = vmatpush1.msra.mxu0 0.0
    %1136 = vmatprep.subr.mxu0 0.0
    %1137 = vmatpush1.msra.mxu0 0.0
    %1138 = vmatprep.mubr.f32.mxu0 0.0
    %1139 = vmatmul.mubr.f32.gmra.mrb[0].mxu0 %v1069
    %v1140 = vpop.f32.mrb[0].mxu0
    %v1141 = vadd.f32 %v1066, %v1140
    %v1142 = vpop.f32.mrb[0].mxu0
    %1143 = vmatprep.mubr.f32.mxu0 0.0
    %1144 = vmatmul.mubr.f32.gmra.mrb[0].mxu0 %v1072
    %v1145 = vpop.f32.mrb[0].mxu0
    %v1146 = vadd.f32 %v1066, %v1145
    %v1147 = vpop.f32.mrb[0].mxu0
    %1148 = vdwg.mxu0
    %1149 = vst [vmem:[#allocation2] sm:$0xff] %v1141
    %1150 = vst [vmem:[#allocation2 + $0x8] sm:$0xff] %v1146
    %v1151 = vld [vmem:[%s7] sm:$0xff]
    %v1152 = vld [vmem:[%s7 + $0x8] sm:$0xff]
    %v1153 = vld [vmem:[%s7 + $0x10] sm:$0xff]
    %v1154 = vld [vmem:[%s7 + $0x18] sm:$0xff]
    %s1155 = scalar_lea.vmem [#allocation7], 2
    %v1156 = vld [vmem:[%s1155] sm:$0x3]
    %s1157 = scalar_lea.vmem [#allocation9], 2
    %v1158 = vld [vmem:[%s1157] sm:$0x3]
    %v1159 = vld [vmem:[#allocation2] sm:$0x3]
    %v1161 = vsel %vm215, %v1156, 0
    %1163 = vmatprep.subr.mxu0 0.0
    %1164 = vmatpush1.msra.mxu0 %v1151
    %1165 = vmatprep.subr.mxu0 0.0
    %1166 = vmatpush1.msra.mxu0 %v1152
    %1167 = vmatprep.subr.mxu0 0.0
    %1168 = vmatpush1.msra.mxu0 %v1153
    %1169 = vmatprep.subr.mxu0 0.0
    %1170 = vmatpush1.msra.mxu0 %v1154
    %1171 = vmatprep.subr.mxu0 0.0
    %1172 = vmatpush1.msra.mxu0 0.0
    %1173 = vmatprep.subr.mxu0 0.0
    %1174 = vmatpush1.msra.mxu0 0.0
    %1175 = vmatprep.subr.mxu0 0.0
    %1176 = vmatpush1.msra.mxu0 0.0
    %1177 = vmatprep.subr.mxu0 0.0
    %1178 = vmatpush1.msra.mxu0 0.0
    %1179 = vmatprep.subr.mxu0 0.0
    %1180 = vmatpush1.msra.mxu0 0.0
    %1181 = vmatprep.subr.mxu0 0.0
    %1182 = vmatpush1.msra.mxu0 0.0
    %1183 = vmatprep.subr.mxu0 0.0
    %1184 = vmatpush1.msra.mxu0 0.0
    %1185 = vmatprep.subr.mxu0 0.0
    %1186 = vmatpush1.msra.mxu0 0.0
    %1187 = vmatprep.subr.mxu0 0.0
    %1188 = vmatpush1.msra.mxu0 0.0
    %1189 = vmatprep.subr.mxu0 0.0
    %1190 = vmatpush1.msra.mxu0 0.0
    %1191 = vmatprep.subr.mxu0 0.0
    %1192 = vmatpush1.msra.mxu0 0.0
    %1193 = vmatprep.subr.mxu0 0.0
    %1194 = vmatpush1.msra.mxu0 0.0
    %1195 = vmatprep.subr.mxu0 0.0
    %1196 = vmatpush1.msra.mxu0 0.0
    %1197 = vmatprep.subr.mxu0 0.0
    %1198 = vmatpush1.msra.mxu0 0.0
    %1199 = vmatprep.subr.mxu0 0.0
    %1200 = vmatpush1.msra.mxu0 0.0
    %1201 = vmatprep.subr.mxu0 0.0
    %1202 = vmatpush1.msra.mxu0 0.0
    %1203 = vmatprep.subr.mxu0 0.0
    %1204 = vmatpush1.msra.mxu0 0.0
    %1205 = vmatprep.subr.mxu0 0.0
    %1206 = vmatpush1.msra.mxu0 0.0
    %1207 = vmatprep.subr.mxu0 0.0
    %1208 = vmatpush1.msra.mxu0 0.0
    %1209 = vmatprep.subr.mxu0 0.0
    %1210 = vmatpush1.msra.mxu0 0.0
    %1211 = vmatprep.subr.mxu0 0.0
    %1212 = vmatpush1.msra.mxu0 0.0
    %1213 = vmatprep.subr.mxu0 0.0
    %1214 = vmatpush1.msra.mxu0 0.0
    %1215 = vmatprep.subr.mxu0 0.0
    %1216 = vmatpush1.msra.mxu0 0.0
    %1217 = vmatprep.subr.mxu0 0.0
    %1218 = vmatpush1.msra.mxu0 0.0
    %1219 = vmatprep.subr.mxu0 0.0
    %1220 = vmatpush1.msra.mxu0 0.0
    %1221 = vmatprep.subr.mxu0 0.0
    %1222 = vmatpush1.msra.mxu0 0.0
    %1223 = vmatprep.subr.mxu0 0.0
    %1224 = vmatpush1.msra.mxu0 0.0
    %1225 = vmatprep.subr.mxu0 0.0
    %1226 = vmatpush1.msra.mxu0 0.0
    %1227 = vmatprep.mubr.f32.mxu0 0.0
    %1228 = vmatmul.mubr.f32.gmra.mrb[0].mxu0 %v1161
    %v1229 = vpop.f32.mrb[0].mxu0
    %v1230 = vadd.f32 0.0, %v1229
    %v1231 = vpop.f32.mrb[0].mxu0
    %1232 = vdwg.mxu0
    %v1233 = vadd.f32 %v1159, %v1230
    %v1234 = vxor.u32 %v1233, 2147483648
    %v1235 = vmul.f32 %v1234, 1.442695
    %v1236 = vpow.pop %v1235
    %v1237 = vadd.f32 %v1236, 1.0
    %v1238 = vrcp.pop %v1237
    %v1239 = vmul.f32 1.0, %v1238
    %v1240 = vtanh.pop %v1233
    %1242 = vrot.lane.b32.xlu0 %v1158, 32
    %v1243 = vpop.permute.xlu0 %1242
    %v1245 = vmul.f32 %v1239, %v1243
    %1247 = vrot.lane.b32.xlu0 %v1240, 64
    %v1248 = vpop.permute.xlu0 %1247
    %v1250 = vmul.f32 %v1239, %v1248
    %1252 = vrot.lane.b32.xlu0 %v1250, 32
    %v1253 = vpop.permute.xlu0 %1252
    %v1255 = vadd.f32 %v1245, %v1253
    %v1256 = vtanh.pop %v1255
    %1258 = vrot.lane.b32.xlu0 %v1256, 64
    %v1259 = vpop.permute.xlu0 %1258
    %v1261 = vmul.f32 %v1239, %v1259
    %1263 = vrot.lane.b32.xlu0 %v1261, 32
    %v1264 = vpop.permute.xlu0 %1263
    %1266 = vst.msk [vmem:[#allocation3] sm:$0x3] %vm322, %v1264
    %v1267 = vld [vmem:[#allocation2 + $0x2] sm:$0x3]
    %v1268 = vsel %vm215, %v1264, 0
    %1270 = vmatprep.subr.mxu0 0.0
    %1271 = vmatpush1.msra.mxu0 %v1151
    %1272 = vmatprep.subr.mxu0 0.0
    %1273 = vmatpush1.msra.mxu0 %v1152
    %1274 = vmatprep.subr.mxu0 0.0
    %1275 = vmatpush1.msra.mxu0 %v1153
    %1276 = vmatprep.subr.mxu0 0.0
    %1277 = vmatpush1.msra.mxu0 %v1154
    %1278 = vmatprep.subr.mxu0 0.0
    %1279 = vmatpush1.msra.mxu0 0.0
    %1280 = vmatprep.subr.mxu0 0.0
    %1281 = vmatpush1.msra.mxu0 0.0
    %1282 = vmatprep.subr.mxu0 0.0
    %1283 = vmatpush1.msra.mxu0 0.0
    %1284 = vmatprep.subr.mxu0 0.0
    %1285 = vmatpush1.msra.mxu0 0.0
    %1286 = vmatprep.subr.mxu0 0.0
    %1287 = vmatpush1.msra.mxu0 0.0
    %1288 = vmatprep.subr.mxu0 0.0
    %1289 = vmatpush1.msra.mxu0 0.0
    %1290 = vmatprep.subr.mxu0 0.0
    %1291 = vmatpush1.msra.mxu0 0.0
    %1292 = vmatprep.subr.mxu0 0.0
    %1293 = vmatpush1.msra.mxu0 0.0
    %1294 = vmatprep.subr.mxu0 0.0
    %1295 = vmatpush1.msra.mxu0 0.0
    %1296 = vmatprep.subr.mxu0 0.0
    %1297 = vmatpush1.msra.mxu0 0.0
    %1298 = vmatprep.subr.mxu0 0.0
    %1299 = vmatpush1.msra.mxu0 0.0
    %1300 = vmatprep.subr.mxu0 0.0
    %1301 = vmatpush1.msra.mxu0 0.0
    %1302 = vmatprep.subr.mxu0 0.0
    %1303 = vmatpush1.msra.mxu0 0.0
    %1304 = vmatprep.subr.mxu0 0.0
    %1305 = vmatpush1.msra.mxu0 0.0
    %1306 = vmatprep.subr.mxu0 0.0
    %1307 = vmatpush1.msra.mxu0 0.0
    %1308 = vmatprep.subr.mxu0 0.0
    %1309 = vmatpush1.msra.mxu0 0.0
    %1310 = vmatprep.subr.mxu0 0.0
    %1311 = vmatpush1.msra.mxu0 0.0
    %1312 = vmatprep.subr.mxu0 0.0
    %1313 = vmatpush1.msra.mxu0 0.0
    %1314 = vmatprep.subr.mxu0 0.0
    %1315 = vmatpush1.msra.mxu0 0.0
    %1316 = vmatprep.subr.mxu0 0.0
    %1317 = vmatpush1.msra.mxu0 0.0
    %1318 = vmatprep.subr.mxu0 0.0
    %1319 = vmatpush1.msra.mxu0 0.0
    %1320 = vmatprep.subr.mxu0 0.0
    %1321 = vmatpush1.msra.mxu0 0.0
    %1322 = vmatprep.subr.mxu0 0.0
    %1323 = vmatpush1.msra.mxu0 0.0
    %1324 = vmatprep.subr.mxu0 0.0
    %1325 = vmatpush1.msra.mxu0 0.0
    %1326 = vmatprep.subr.mxu0 0.0
    %1327 = vmatpush1.msra.mxu0 0.0
    %1328 = vmatprep.subr.mxu0 0.0
    %1329 = vmatpush1.msra.mxu0 0.0
    %1330 = vmatprep.subr.mxu0 0.0
    %1331 = vmatpush1.msra.mxu0 0.0
    %1332 = vmatprep.subr.mxu0 0.0
    %1333 = vmatpush1.msra.mxu0 0.0
    %1334 = vmatprep.mubr.f32.mxu0 0.0
    %1335 = vmatmul.mubr.f32.gmra.mrb[0].mxu0 %v1268
    %v1336 = vpop.f32.mrb[0].mxu0
    %v1337 = vadd.f32 0.0, %v1336
    %v1338 = vpop.f32.mrb[0].mxu0
    %1339 = vdwg.mxu0
    %v1340 = vadd.f32 %v1267, %v1337
    %v1341 = vxor.u32 %v1340, 2147483648
    %v1342 = vmul.f32 %v1341, 1.442695
    %v1343 = vpow.pop %v1342
    %v1344 = vadd.f32 %v1343, 1.0
    %v1345 = vrcp.pop %v1344
    %v1346 = vmul.f32 1.0, %v1345
    %v1347 = vtanh.pop %v1340
    %v1348 = vmul.f32 %v1346, %v1255
    %1350 = vrot.lane.b32.xlu0 %v1347, 64
    %v1351 = vpop.permute.xlu0 %1350
    %v1353 = vmul.f32 %v1346, %v1351
    %1355 = vrot.lane.b32.xlu0 %v1353, 32
    %v1356 = vpop.permute.xlu0 %1355
    %v1358 = vadd.f32 %v1348, %v1356
    %v1359 = vtanh.pop %v1358
    %1361 = vrot.lane.b32.xlu0 %v1359, 64
    %v1362 = vpop.permute.xlu0 %1361
    %v1364 = vmul.f32 %v1346, %v1362
    %1366 = vrot.lane.b32.xlu0 %v1364, 32
    %v1367 = vpop.permute.xlu0 %1366
    %1369 = vst.msk [vmem:[#allocation3 + $0x2] sm:$0x3] %vm322, %v1367
    %v1370 = vld [vmem:[#allocation2 + $0x4] sm:$0x3]
    %v1371 = vsel %vm215, %v1367, 0
    %1373 = vmatprep.subr.mxu0 0.0
    %1374 = vmatpush1.msra.mxu0 %v1151
    %1375 = vmatprep.subr.mxu0 0.0
    %1376 = vmatpush1.msra.mxu0 %v1152
    %1377 = vmatprep.subr.mxu0 0.0
    %1378 = vmatpush1.msra.mxu0 %v1153
    %1379 = vmatprep.subr.mxu0 0.0
    %1380 = vmatpush1.msra.mxu0 %v1154
    %1381 = vmatprep.subr.mxu0 0.0
    %1382 = vmatpush1.msra.mxu0 0.0
    %1383 = vmatprep.subr.mxu0 0.0
    %1384 = vmatpush1.msra.mxu0 0.0
    %1385 = vmatprep.subr.mxu0 0.0
    %1386 = vmatpush1.msra.mxu0 0.0
    %1387 = vmatprep.subr.mxu0 0.0
    %1388 = vmatpush1.msra.mxu0 0.0
    %1389 = vmatprep.subr.mxu0 0.0
    %1390 = vmatpush1.msra.mxu0 0.0
    %1391 = vmatprep.subr.mxu0 0.0
    %1392 = vmatpush1.msra.mxu0 0.0
    %1393 = vmatprep.subr.mxu0 0.0
    %1394 = vmatpush1.msra.mxu0 0.0
    %1395 = vmatprep.subr.mxu0 0.0
    %1396 = vmatpush1.msra.mxu0 0.0
    %1397 = vmatprep.subr.mxu0 0.0
    %1398 = vmatpush1.msra.mxu0 0.0
    %1399 = vmatprep.subr.mxu0 0.0
    %1400 = vmatpush1.msra.mxu0 0.0
    %1401 = vmatprep.subr.mxu0 0.0
    %1402 = vmatpush1.msra.mxu0 0.0
    %1403 = vmatprep.subr.mxu0 0.0
    %1404 = vmatpush1.msra.mxu0 0.0
    %1405 = vmatprep.subr.mxu0 0.0
    %1406 = vmatpush1.msra.mxu0 0.0
    %1407 = vmatprep.subr.mxu0 0.0
    %1408 = vmatpush1.msra.mxu0 0.0
    %1409 = vmatprep.subr.mxu0 0.0
    %1410 = vmatpush1.msra.mxu0 0.0
    %1411 = vmatprep.subr.mxu0 0.0
    %1412 = vmatpush1.msra.mxu0 0.0
    %1413 = vmatprep.subr.mxu0 0.0
    %1414 = vmatpush1.msra.mxu0 0.0
    %1415 = vmatprep.subr.mxu0 0.0
    %1416 = vmatpush1.msra.mxu0 0.0
    %1417 = vmatprep.subr.mxu0 0.0
    %1418 = vmatpush1.msra.mxu0 0.0
    %1419 = vmatprep.subr.mxu0 0.0
    %1420 = vmatpush1.msra.mxu0 0.0
    %1421 = vmatprep.subr.mxu0 0.0
    %1422 = vmatpush1.msra.mxu0 0.0
    %1423 = vmatprep.subr.mxu0 0.0
    %1424 = vmatpush1.msra.mxu0 0.0
    %1425 = vmatprep.subr.mxu0 0.0
    %1426 = vmatpush1.msra.mxu0 0.0
    %1427 = vmatprep.subr.mxu0 0.0
    %1428 = vmatpush1.msra.mxu0 0.0
    %1429 = vmatprep.subr.mxu0 0.0
    %1430 = vmatpush1.msra.mxu0 0.0
    %1431 = vmatprep.subr.mxu0 0.0
    %1432 = vmatpush1.msra.mxu0 0.0
    %1433 = vmatprep.subr.mxu0 0.0
    %1434 = vmatpush1.msra.mxu0 0.0
    %1435 = vmatprep.subr.mxu0 0.0
    %1436 = vmatpush1.msra.mxu0 0.0
    %1437 = vmatprep.mubr.f32.mxu0 0.0
    %1438 = vmatmul.mubr.f32.gmra.mrb[0].mxu0 %v1371
    %v1439 = vpop.f32.mrb[0].mxu0
    %v1440 = vadd.f32 0.0, %v1439
    %v1441 = vpop.f32.mrb[0].mxu0
    %1442 = vdwg.mxu0
    %v1443 = vadd.f32 %v1370, %v1440
    %v1444 = vxor.u32 %v1443, 2147483648
    %v1445 = vmul.f32 %v1444, 1.442695
    %v1446 = vpow.pop %v1445
    %v1447 = vadd.f32 %v1446, 1.0
    %v1448 = vrcp.pop %v1447
    %v1449 = vmul.f32 1.0, %v1448
    %v1450 = vtanh.pop %v1443
    %v1451 = vmul.f32 %v1449, %v1358
    %1453 = vrot.lane.b32.xlu0 %v1450, 64
    %v1454 = vpop.permute.xlu0 %1453
    %v1456 = vmul.f32 %v1449, %v1454
    %1458 = vrot.lane.b32.xlu0 %v1456, 32
    %v1459 = vpop.permute.xlu0 %1458
    %v1461 = vadd.f32 %v1451, %v1459
    %v1462 = vtanh.pop %v1461
    %1464 = vrot.lane.b32.xlu0 %v1462, 64
    %v1465 = vpop.permute.xlu0 %1464
    %v1467 = vmul.f32 %v1449, %v1465
    %1469 = vrot.lane.b32.xlu0 %v1467, 32
    %v1470 = vpop.permute.xlu0 %1469
    %1472 = vst.msk [vmem:[#allocation3 + $0x4] sm:$0x3] %vm322, %v1470
    %v1473 = vld [vmem:[#allocation2 + $0x6] sm:$0x3]
    %v1474 = vsel %vm215, %v1470, 0
    %1476 = vmatprep.subr.mxu0 0.0
    %1477 = vmatpush1.msra.mxu0 %v1151
    %1478 = vmatprep.subr.mxu0 0.0
    %1479 = vmatpush1.msra.mxu0 %v1152
    %1480 = vmatprep.subr.mxu0 0.0
    %1481 = vmatpush1.msra.mxu0 %v1153
    %1482 = vmatprep.subr.mxu0 0.0
    %1483 = vmatpush1.msra.mxu0 %v1154
    %1484 = vmatprep.subr.mxu0 0.0
    %1485 = vmatpush1.msra.mxu0 0.0
    %1486 = vmatprep.subr.mxu0 0.0
    %1487 = vmatpush1.msra.mxu0 0.0
    %1488 = vmatprep.subr.mxu0 0.0
    %1489 = vmatpush1.msra.mxu0 0.0
    %1490 = vmatprep.subr.mxu0 0.0
    %1491 = vmatpush1.msra.mxu0 0.0
    %1492 = vmatprep.subr.mxu0 0.0
    %1493 = vmatpush1.msra.mxu0 0.0
    %1494 = vmatprep.subr.mxu0 0.0
    %1495 = vmatpush1.msra.mxu0 0.0
    %1496 = vmatprep.subr.mxu0 0.0
    %1497 = vmatpush1.msra.mxu0 0.0
    %1498 = vmatprep.subr.mxu0 0.0
    %1499 = vmatpush1.msra.mxu0 0.0
    %1500 = vmatprep.subr.mxu0 0.0
    %1501 = vmatpush1.msra.mxu0 0.0
    %1502 = vmatprep.subr.mxu0 0.0
    %1503 = vmatpush1.msra.mxu0 0.0
    %1504 = vmatprep.subr.mxu0 0.0
    %1505 = vmatpush1.msra.mxu0 0.0
    %1506 = vmatprep.subr.mxu0 0.0
    %1507 = vmatpush1.msra.mxu0 0.0
    %1508 = vmatprep.subr.mxu0 0.0
    %1509 = vmatpush1.msra.mxu0 0.0
    %1510 = vmatprep.subr.mxu0 0.0
    %1511 = vmatpush1.msra.mxu0 0.0
    %1512 = vmatprep.subr.mxu0 0.0
    %1513 = vmatpush1.msra.mxu0 0.0
    %1514 = vmatprep.subr.mxu0 0.0
    %1515 = vmatpush1.msra.mxu0 0.0
    %1516 = vmatprep.subr.mxu0 0.0
    %1517 = vmatpush1.msra.mxu0 0.0
    %1518 = vmatprep.subr.mxu0 0.0
    %1519 = vmatpush1.msra.mxu0 0.0
    %1520 = vmatprep.subr.mxu0 0.0
    %1521 = vmatpush1.msra.mxu0 0.0
    %1522 = vmatprep.subr.mxu0 0.0
    %1523 = vmatpush1.msra.mxu0 0.0
    %1524 = vmatprep.subr.mxu0 0.0
    %1525 = vmatpush1.msra.mxu0 0.0
    %1526 = vmatprep.subr.mxu0 0.0
    %1527 = vmatpush1.msra.mxu0 0.0
    %1528 = vmatprep.subr.mxu0 0.0
    %1529 = vmatpush1.msra.mxu0 0.0
    %1530 = vmatprep.subr.mxu0 0.0
    %1531 = vmatpush1.msra.mxu0 0.0
    %1532 = vmatprep.subr.mxu0 0.0
    %1533 = vmatpush1.msra.mxu0 0.0
    %1534 = vmatprep.subr.mxu0 0.0
    %1535 = vmatpush1.msra.mxu0 0.0
    %1536 = vmatprep.subr.mxu0 0.0
    %1537 = vmatpush1.msra.mxu0 0.0
    %1538 = vmatprep.subr.mxu0 0.0
    %1539 = vmatpush1.msra.mxu0 0.0
    %1540 = vmatprep.mubr.f32.mxu0 0.0
    %1541 = vmatmul.mubr.f32.gmra.mrb[0].mxu0 %v1474
    %v1542 = vpop.f32.mrb[0].mxu0
    %v1543 = vadd.f32 0.0, %v1542
    %v1544 = vpop.f32.mrb[0].mxu0
    %1545 = vdwg.mxu0
    %v1546 = vadd.f32 %v1473, %v1543
    %v1547 = vxor.u32 %v1546, 2147483648
    %v1548 = vmul.f32 %v1547, 1.442695
    %v1549 = vpow.pop %v1548
    %v1550 = vadd.f32 %v1549, 1.0
    %v1551 = vrcp.pop %v1550
    %v1552 = vmul.f32 1.0, %v1551
    %v1553 = vtanh.pop %v1546
    %v1554 = vmul.f32 %v1552, %v1461
    %1556 = vrot.lane.b32.xlu0 %v1553, 64
    %v1557 = vpop.permute.xlu0 %1556
    %v1559 = vmul.f32 %v1552, %v1557
    %1561 = vrot.lane.b32.xlu0 %v1559, 32
    %v1562 = vpop.permute.xlu0 %1561
    %v1564 = vadd.f32 %v1554, %v1562
    %v1565 = vtanh.pop %v1564
    %1567 = vrot.lane.b32.xlu0 %v1565, 64
    %v1568 = vpop.permute.xlu0 %1567
    %v1570 = vmul.f32 %v1552, %v1568
    %1572 = vrot.lane.b32.xlu0 %v1570, 32
    %v1573 = vpop.permute.xlu0 %1572
    %1575 = vst.msk [vmem:[#allocation3 + $0x6] sm:$0x3] %vm322, %v1573
    %v1576 = vld [vmem:[#allocation2 + $0x8] sm:$0x3]
    %v1577 = vsel %vm215, %v1573, 0
    %1579 = vmatprep.subr.mxu0 0.0
    %1580 = vmatpush1.msra.mxu0 %v1151
    %1581 = vmatprep.subr.mxu0 0.0
    %1582 = vmatpush1.msra.mxu0 %v1152
    %1583 = vmatprep.subr.mxu0 0.0
    %1584 = vmatpush1.msra.mxu0 %v1153
    %1585 = vmatprep.subr.mxu0 0.0
    %1586 = vmatpush1.msra.mxu0 %v1154
    %1587 = vmatprep.subr.mxu0 0.0
    %1588 = vmatpush1.msra.mxu0 0.0
    %1589 = vmatprep.subr.mxu0 0.0
    %1590 = vmatpush1.msra.mxu0 0.0
    %1591 = vmatprep.subr.mxu0 0.0
    %1592 = vmatpush1.msra.mxu0 0.0
    %1593 = vmatprep.subr.mxu0 0.0
    %1594 = vmatpush1.msra.mxu0 0.0
    %1595 = vmatprep.subr.mxu0 0.0
    %1596 = vmatpush1.msra.mxu0 0.0
    %1597 = vmatprep.subr.mxu0 0.0
    %1598 = vmatpush1.msra.mxu0 0.0
    %1599 = vmatprep.subr.mxu0 0.0
    %1600 = vmatpush1.msra.mxu0 0.0
    %1601 = vmatprep.subr.mxu0 0.0
    %1602 = vmatpush1.msra.mxu0 0.0
    %1603 = vmatprep.subr.mxu0 0.0
    %1604 = vmatpush1.msra.mxu0 0.0
    %1605 = vmatprep.subr.mxu0 0.0
    %1606 = vmatpush1.msra.mxu0 0.0
    %1607 = vmatprep.subr.mxu0 0.0
    %1608 = vmatpush1.msra.mxu0 0.0
    %1609 = vmatprep.subr.mxu0 0.0
    %1610 = vmatpush1.msra.mxu0 0.0
    %1611 = vmatprep.subr.mxu0 0.0
    %1612 = vmatpush1.msra.mxu0 0.0
    %1613 = vmatprep.subr.mxu0 0.0
    %1614 = vmatpush1.msra.mxu0 0.0
    %1615 = vmatprep.subr.mxu0 0.0
    %1616 = vmatpush1.msra.mxu0 0.0
    %1617 = vmatprep.subr.mxu0 0.0
    %1618 = vmatpush1.msra.mxu0 0.0
    %1619 = vmatprep.subr.mxu0 0.0
    %1620 = vmatpush1.msra.mxu0 0.0
    %1621 = vmatprep.subr.mxu0 0.0
    %1622 = vmatpush1.msra.mxu0 0.0
    %1623 = vmatprep.subr.mxu0 0.0
    %1624 = vmatpush1.msra.mxu0 0.0
    %1625 = vmatprep.subr.mxu0 0.0
    %1626 = vmatpush1.msra.mxu0 0.0
    %1627 = vmatprep.subr.mxu0 0.0
    %1628 = vmatpush1.msra.mxu0 0.0
    %1629 = vmatprep.subr.mxu0 0.0
    %1630 = vmatpush1.msra.mxu0 0.0
    %1631 = vmatprep.subr.mxu0 0.0
    %1632 = vmatpush1.msra.mxu0 0.0
    %1633 = vmatprep.subr.mxu0 0.0
    %1634 = vmatpush1.msra.mxu0 0.0
    %1635 = vmatprep.subr.mxu0 0.0
    %1636 = vmatpush1.msra.mxu0 0.0
    %1637 = vmatprep.subr.mxu0 0.0
    %1638 = vmatpush1.msra.mxu0 0.0
    %1639 = vmatprep.subr.mxu0 0.0
    %1640 = vmatpush1.msra.mxu0 0.0
    %1641 = vmatprep.subr.mxu0 0.0
    %1642 = vmatpush1.msra.mxu0 0.0
    %1643 = vmatprep.mubr.f32.mxu0 0.0
    %1644 = vmatmul.mubr.f32.gmra.mrb[0].mxu0 %v1577
    %v1645 = vpop.f32.mrb[0].mxu0
    %v1646 = vadd.f32 0.0, %v1645
    %v1647 = vpop.f32.mrb[0].mxu0
    %1648 = vdwg.mxu0
    %v1649 = vadd.f32 %v1576, %v1646
    %v1650 = vxor.u32 %v1649, 2147483648
    %v1651 = vmul.f32 %v1650, 1.442695
    %v1652 = vpow.pop %v1651
    %v1653 = vadd.f32 %v1652, 1.0
    %v1654 = vrcp.pop %v1653
    %v1655 = vmul.f32 1.0, %v1654
    %v1656 = vtanh.pop %v1649
    %v1657 = vmul.f32 %v1655, %v1564
    %1659 = vrot.lane.b32.xlu0 %v1656, 64
    %v1660 = vpop.permute.xlu0 %1659
    %v1662 = vmul.f32 %v1655, %v1660
    %1664 = vrot.lane.b32.xlu0 %v1662, 32
    %v1665 = vpop.permute.xlu0 %1664
    %v1667 = vadd.f32 %v1657, %v1665
    %v1668 = vtanh.pop %v1667
    %1670 = vrot.lane.b32.xlu0 %v1668, 64
    %v1671 = vpop.permute.xlu0 %1670
    %v1673 = vmul.f32 %v1655, %v1671
    %1675 = vrot.lane.b32.xlu0 %v1673, 32
    %v1676 = vpop.permute.xlu0 %1675
    %1678 = vst.msk [vmem:[#allocation3 + $0x8] sm:$0x3] %vm322, %v1676
    %v1679 = vld [vmem:[#allocation2 + $0xa] sm:$0x3]
    %v1680 = vsel %vm215, %v1676, 0
    %1682 = vmatprep.subr.mxu0 0.0
    %1683 = vmatpush1.msra.mxu0 %v1151
    %1684 = vmatprep.subr.mxu0 0.0
    %1685 = vmatpush1.msra.mxu0 %v1152
    %1686 = vmatprep.subr.mxu0 0.0
    %1687 = vmatpush1.msra.mxu0 %v1153
    %1688 = vmatprep.subr.mxu0 0.0
    %1689 = vmatpush1.msra.mxu0 %v1154
    %1690 = vmatprep.subr.mxu0 0.0
    %1691 = vmatpush1.msra.mxu0 0.0
    %1692 = vmatprep.subr.mxu0 0.0
    %1693 = vmatpush1.msra.mxu0 0.0
    %1694 = vmatprep.subr.mxu0 0.0
    %1695 = vmatpush1.msra.mxu0 0.0
    %1696 = vmatprep.subr.mxu0 0.0
    %1697 = vmatpush1.msra.mxu0 0.0
    %1698 = vmatprep.subr.mxu0 0.0
    %1699 = vmatpush1.msra.mxu0 0.0
    %1700 = vmatprep.subr.mxu0 0.0
    %1701 = vmatpush1.msra.mxu0 0.0
    %1702 = vmatprep.subr.mxu0 0.0
    %1703 = vmatpush1.msra.mxu0 0.0
    %1704 = vmatprep.subr.mxu0 0.0
    %1705 = vmatpush1.msra.mxu0 0.0
    %1706 = vmatprep.subr.mxu0 0.0
    %1707 = vmatpush1.msra.mxu0 0.0
    %1708 = vmatprep.subr.mxu0 0.0
    %1709 = vmatpush1.msra.mxu0 0.0
    %1710 = vmatprep.subr.mxu0 0.0
    %1711 = vmatpush1.msra.mxu0 0.0
    %1712 = vmatprep.subr.mxu0 0.0
    %1713 = vmatpush1.msra.mxu0 0.0
    %1714 = vmatprep.subr.mxu0 0.0
    %1715 = vmatpush1.msra.mxu0 0.0
    %1716 = vmatprep.subr.mxu0 0.0
    %1717 = vmatpush1.msra.mxu0 0.0
    %1718 = vmatprep.subr.mxu0 0.0
    %1719 = vmatpush1.msra.mxu0 0.0
    %1720 = vmatprep.subr.mxu0 0.0
    %1721 = vmatpush1.msra.mxu0 0.0
    %1722 = vmatprep.subr.mxu0 0.0
    %1723 = vmatpush1.msra.mxu0 0.0
    %1724 = vmatprep.subr.mxu0 0.0
    %1725 = vmatpush1.msra.mxu0 0.0
    %1726 = vmatprep.subr.mxu0 0.0
    %1727 = vmatpush1.msra.mxu0 0.0
    %1728 = vmatprep.subr.mxu0 0.0
    %1729 = vmatpush1.msra.mxu0 0.0
    %1730 = vmatprep.subr.mxu0 0.0
    %1731 = vmatpush1.msra.mxu0 0.0
    %1732 = vmatprep.subr.mxu0 0.0
    %1733 = vmatpush1.msra.mxu0 0.0
    %1734 = vmatprep.subr.mxu0 0.0
    %1735 = vmatpush1.msra.mxu0 0.0
    %1736 = vmatprep.subr.mxu0 0.0
    %1737 = vmatpush1.msra.mxu0 0.0
    %1738 = vmatprep.subr.mxu0 0.0
    %1739 = vmatpush1.msra.mxu0 0.0
    %1740 = vmatprep.subr.mxu0 0.0
    %1741 = vmatpush1.msra.mxu0 0.0
    %1742 = vmatprep.subr.mxu0 0.0
    %1743 = vmatpush1.msra.mxu0 0.0
    %1744 = vmatprep.subr.mxu0 0.0
    %1745 = vmatpush1.msra.mxu0 0.0
    %1746 = vmatprep.mubr.f32.mxu0 0.0
    %1747 = vmatmul.mubr.f32.gmra.mrb[0].mxu0 %v1680
    %v1748 = vpop.f32.mrb[0].mxu0
    %v1749 = vadd.f32 0.0, %v1748
    %v1750 = vpop.f32.mrb[0].mxu0
    %1751 = vdwg.mxu0
    %v1752 = vadd.f32 %v1679, %v1749
    %v1753 = vxor.u32 %v1752, 2147483648
    %v1754 = vmul.f32 %v1753, 1.442695
    %v1755 = vpow.pop %v1754
    %v1756 = vadd.f32 %v1755, 1.0
    %v1757 = vrcp.pop %v1756
    %v1758 = vmul.f32 1.0, %v1757
    %v1759 = vtanh.pop %v1752
    %v1760 = vmul.f32 %v1758, %v1667
    %1762 = vrot.lane.b32.xlu0 %v1759, 64
    %v1763 = vpop.permute.xlu0 %1762
    %v1765 = vmul.f32 %v1758, %v1763
    %1767 = vrot.lane.b32.xlu0 %v1765, 32
    %v1768 = vpop.permute.xlu0 %1767
    %v1770 = vadd.f32 %v1760, %v1768
    %v1771 = vtanh.pop %v1770
    %1773 = vrot.lane.b32.xlu0 %v1771, 64
    %v1774 = vpop.permute.xlu0 %1773
    %v1776 = vmul.f32 %v1758, %v1774
    %1778 = vrot.lane.b32.xlu0 %v1776, 32
    %v1779 = vpop.permute.xlu0 %1778
    %1781 = vst.msk [vmem:[#allocation3 + $0xa] sm:$0x3] %vm322, %v1779
    %v1782 = vld [vmem:[#allocation2 + $0xc] sm:$0x3]
    %v1783 = vsel %vm215, %v1779, 0
    %1785 = vmatprep.subr.mxu0 0.0
    %1786 = vmatpush1.msra.mxu0 %v1151
    %1787 = vmatprep.subr.mxu0 0.0
    %1788 = vmatpush1.msra.mxu0 %v1152
    %1789 = vmatprep.subr.mxu0 0.0
    %1790 = vmatpush1.msra.mxu0 %v1153
    %1791 = vmatprep.subr.mxu0 0.0
    %1792 = vmatpush1.msra.mxu0 %v1154
    %1793 = vmatprep.subr.mxu0 0.0
    %1794 = vmatpush1.msra.mxu0 0.0
    %1795 = vmatprep.subr.mxu0 0.0
    %1796 = vmatpush1.msra.mxu0 0.0
    %1797 = vmatprep.subr.mxu0 0.0
    %1798 = vmatpush1.msra.mxu0 0.0
    %1799 = vmatprep.subr.mxu0 0.0
    %1800 = vmatpush1.msra.mxu0 0.0
    %1801 = vmatprep.subr.mxu0 0.0
    %1802 = vmatpush1.msra.mxu0 0.0
    %1803 = vmatprep.subr.mxu0 0.0
    %1804 = vmatpush1.msra.mxu0 0.0
    %1805 = vmatprep.subr.mxu0 0.0
    %1806 = vmatpush1.msra.mxu0 0.0
    %1807 = vmatprep.subr.mxu0 0.0
    %1808 = vmatpush1.msra.mxu0 0.0
    %1809 = vmatprep.subr.mxu0 0.0
    %1810 = vmatpush1.msra.mxu0 0.0
    %1811 = vmatprep.subr.mxu0 0.0
    %1812 = vmatpush1.msra.mxu0 0.0
    %1813 = vmatprep.subr.mxu0 0.0
    %1814 = vmatpush1.msra.mxu0 0.0
    %1815 = vmatprep.subr.mxu0 0.0
    %1816 = vmatpush1.msra.mxu0 0.0
    %1817 = vmatprep.subr.mxu0 0.0
    %1818 = vmatpush1.msra.mxu0 0.0
    %1819 = vmatprep.subr.mxu0 0.0
    %1820 = vmatpush1.msra.mxu0 0.0
    %1821 = vmatprep.subr.mxu0 0.0
    %1822 = vmatpush1.msra.mxu0 0.0
    %1823 = vmatprep.subr.mxu0 0.0
    %1824 = vmatpush1.msra.mxu0 0.0
    %1825 = vmatprep.subr.mxu0 0.0
    %1826 = vmatpush1.msra.mxu0 0.0
    %1827 = vmatprep.subr.mxu0 0.0
    %1828 = vmatpush1.msra.mxu0 0.0
    %1829 = vmatprep.subr.mxu0 0.0
    %1830 = vmatpush1.msra.mxu0 0.0
    %1831 = vmatprep.subr.mxu0 0.0
    %1832 = vmatpush1.msra.mxu0 0.0
    %1833 = vmatprep.subr.mxu0 0.0
    %1834 = vmatpush1.msra.mxu0 0.0
    %1835 = vmatprep.subr.mxu0 0.0
    %1836 = vmatpush1.msra.mxu0 0.0
    %1837 = vmatprep.subr.mxu0 0.0
    %1838 = vmatpush1.msra.mxu0 0.0
    %1839 = vmatprep.subr.mxu0 0.0
    %1840 = vmatpush1.msra.mxu0 0.0
    %1841 = vmatprep.subr.mxu0 0.0
    %1842 = vmatpush1.msra.mxu0 0.0
    %1843 = vmatprep.subr.mxu0 0.0
    %1844 = vmatpush1.msra.mxu0 0.0
    %1845 = vmatprep.subr.mxu0 0.0
    %1846 = vmatpush1.msra.mxu0 0.0
    %1847 = vmatprep.subr.mxu0 0.0
    %1848 = vmatpush1.msra.mxu0 0.0
    %1849 = vmatprep.mubr.f32.mxu0 0.0
    %1850 = vmatmul.mubr.f32.gmra.mrb[0].mxu0 %v1783
    %v1851 = vpop.f32.mrb[0].mxu0
    %v1852 = vadd.f32 0.0, %v1851
    %v1853 = vpop.f32.mrb[0].mxu0
    %1854 = vdwg.mxu0
    %v1855 = vadd.f32 %v1782, %v1852
    %v1856 = vxor.u32 %v1855, 2147483648
    %v1857 = vmul.f32 %v1856, 1.442695
    %v1858 = vpow.pop %v1857
    %v1859 = vadd.f32 %v1858, 1.0
    %v1860 = vrcp.pop %v1859
    %v1861 = vmul.f32 1.0, %v1860
    %v1862 = vtanh.pop %v1855
    %v1863 = vmul.f32 %v1861, %v1770
    %1865 = vrot.lane.b32.xlu0 %v1862, 64
    %v1866 = vpop.permute.xlu0 %1865
    %v1868 = vmul.f32 %v1861, %v1866
    %1870 = vrot.lane.b32.xlu0 %v1868, 32
    %v1871 = vpop.permute.xlu0 %1870
    %v1873 = vadd.f32 %v1863, %v1871
    %v1874 = vtanh.pop %v1873
    %1876 = vrot.lane.b32.xlu0 %v1874, 64
    %v1877 = vpop.permute.xlu0 %1876
    %v1879 = vmul.f32 %v1861, %v1877
    %1881 = vrot.lane.b32.xlu0 %v1879, 32
    %v1882 = vpop.permute.xlu0 %1881
    %1884 = vst.msk [vmem:[#allocation3 + $0xc] sm:$0x3] %vm322, %v1882
    %v1885 = vld [vmem:[#allocation2 + $0xe] sm:$0x3]
    %v1886 = vsel %vm215, %v1882, 0
    %1888 = vmatprep.subr.mxu0 0.0
    %1889 = vmatpush1.msra.mxu0 %v1151
    %1890 = vmatprep.subr.mxu0 0.0
    %1891 = vmatpush1.msra.mxu0 %v1152
    %1892 = vmatprep.subr.mxu0 0.0
    %1893 = vmatpush1.msra.mxu0 %v1153
    %1894 = vmatprep.subr.mxu0 0.0
    %1895 = vmatpush1.msra.mxu0 %v1154
    %1896 = vmatprep.subr.mxu0 0.0
    %1897 = vmatpush1.msra.mxu0 0.0
    %1898 = vmatprep.subr.mxu0 0.0
    %1899 = vmatpush1.msra.mxu0 0.0
    %1900 = vmatprep.subr.mxu0 0.0
    %1901 = vmatpush1.msra.mxu0 0.0
    %1902 = vmatprep.subr.mxu0 0.0
    %1903 = vmatpush1.msra.mxu0 0.0
    %1904 = vmatprep.subr.mxu0 0.0
    %1905 = vmatpush1.msra.mxu0 0.0
    %1906 = vmatprep.subr.mxu0 0.0
    %1907 = vmatpush1.msra.mxu0 0.0
    %1908 = vmatprep.subr.mxu0 0.0
    %1909 = vmatpush1.msra.mxu0 0.0
    %1910 = vmatprep.subr.mxu0 0.0
    %1911 = vmatpush1.msra.mxu0 0.0
    %1912 = vmatprep.subr.mxu0 0.0
    %1913 = vmatpush1.msra.mxu0 0.0
    %1914 = vmatprep.subr.mxu0 0.0
    %1915 = vmatpush1.msra.mxu0 0.0
    %1916 = vmatprep.subr.mxu0 0.0
    %1917 = vmatpush1.msra.mxu0 0.0
    %1918 = vmatprep.subr.mxu0 0.0
    %1919 = vmatpush1.msra.mxu0 0.0
    %1920 = vmatprep.subr.mxu0 0.0
    %1921 = vmatpush1.msra.mxu0 0.0
    %1922 = vmatprep.subr.mxu0 0.0
    %1923 = vmatpush1.msra.mxu0 0.0
    %1924 = vmatprep.subr.mxu0 0.0
    %1925 = vmatpush1.msra.mxu0 0.0
    %1926 = vmatprep.subr.mxu0 0.0
    %1927 = vmatpush1.msra.mxu0 0.0
    %1928 = vmatprep.subr.mxu0 0.0
    %1929 = vmatpush1.msra.mxu0 0.0
    %1930 = vmatprep.subr.mxu0 0.0
    %1931 = vmatpush1.msra.mxu0 0.0
    %1932 = vmatprep.subr.mxu0 0.0
    %1933 = vmatpush1.msra.mxu0 0.0
    %1934 = vmatprep.subr.mxu0 0.0
    %1935 = vmatpush1.msra.mxu0 0.0
    %1936 = vmatprep.subr.mxu0 0.0
    %1937 = vmatpush1.msra.mxu0 0.0
    %1938 = vmatprep.subr.mxu0 0.0
    %1939 = vmatpush1.msra.mxu0 0.0
    %1940 = vmatprep.subr.mxu0 0.0
    %1941 = vmatpush1.msra.mxu0 0.0
    %1942 = vmatprep.subr.mxu0 0.0
    %1943 = vmatpush1.msra.mxu0 0.0
    %1944 = vmatprep.subr.mxu0 0.0
    %1945 = vmatpush1.msra.mxu0 0.0
    %1946 = vmatprep.subr.mxu0 0.0
    %1947 = vmatpush1.msra.mxu0 0.0
    %1948 = vmatprep.subr.mxu0 0.0
    %1949 = vmatpush1.msra.mxu0 0.0
    %1950 = vmatprep.subr.mxu0 0.0
    %1951 = vmatpush1.msra.mxu0 0.0
    %1952 = vmatprep.mubr.f32.mxu0 0.0
    %1953 = vmatmul.mubr.f32.gmra.mrb[0].mxu0 %v1886
    %v1954 = vpop.f32.mrb[0].mxu0
    %v1955 = vadd.f32 0.0, %v1954
    %v1956 = vpop.f32.mrb[0].mxu0
    %1957 = vdwg.mxu0
    %v1958 = vadd.f32 %v1885, %v1955
    %v1959 = vxor.u32 %v1958, 2147483648
    %v1960 = vmul.f32 %v1959, 1.442695
    %v1961 = vpow.pop %v1960
    %v1962 = vadd.f32 %v1961, 1.0
    %v1963 = vrcp.pop %v1962
    %v1964 = vmul.f32 1.0, %v1963
    %v1965 = vtanh.pop %v1958
    %v1966 = vmul.f32 %v1964, %v1873
    %1968 = vrot.lane.b32.xlu0 %v1965, 64
    %v1969 = vpop.permute.xlu0 %1968
    %v1971 = vmul.f32 %v1964, %v1969
    %1973 = vrot.lane.b32.xlu0 %v1971, 32
    %v1974 = vpop.permute.xlu0 %1973
    %v1976 = vadd.f32 %v1966, %v1974
    %v1977 = vtanh.pop %v1976
    %1979 = vrot.lane.b32.xlu0 %v1977, 64
    %v1980 = vpop.permute.xlu0 %1979
    %v1982 = vmul.f32 %v1964, %v1980
    %1984 = vrot.lane.b32.xlu0 %v1982, 32
    %v1985 = vpop.permute.xlu0 %1984
    %1987 = vst.msk [vmem:[#allocation3 + $0xe] sm:$0x3] %vm322, %v1985
    %s1988 = scalar_lea.vmem [#allocation13], 2
    %1989 = vst.msk [vmem:[%s1988] sm:$0x3] %vm322, %v1985
    %1991 = vrot.lane.b32.xlu0 %v1976, 96
    %v1992 = vpop.permute.xlu0 %1991
    %s1994 = scalar_lea.vmem [#allocation15], 2
    %1995 = vst.msk [vmem:[%s1994] sm:$0x3] %vm322, %v1992
    %v1996 = vld [vmem:[%s12 + $0x20] sm:$0xff]
    %v1997 = vld [vmem:[%s12 + $0x28] sm:$0xff]
    %v1998 = vld [vmem:[%s12 + $0x30] sm:$0xff]
    %v1999 = vld [vmem:[%s12 + $0x38] sm:$0xff]
    %v2000 = vsel %vm215, %v1985, 0
    %2002 = vmatprep.subr.mxu0 0.0
    %2003 = vmatpush1.msra.mxu0 %v1996
    %2004 = vmatprep.subr.mxu0 0.0
    %2005 = vmatpush1.msra.mxu0 %v1997
    %2006 = vmatprep.subr.mxu0 0.0
    %2007 = vmatpush1.msra.mxu0 %v1998
    %2008 = vmatprep.subr.mxu0 0.0
    %2009 = vmatpush1.msra.mxu0 %v1999
    %2010 = vmatprep.subr.mxu0 0.0
    %2011 = vmatpush1.msra.mxu0 0.0
    %2012 = vmatprep.subr.mxu0 0.0
    %2013 = vmatpush1.msra.mxu0 0.0
    %2014 = vmatprep.subr.mxu0 0.0
    %2015 = vmatpush1.msra.mxu0 0.0
    %2016 = vmatprep.subr.mxu0 0.0
    %2017 = vmatpush1.msra.mxu0 0.0
    %2018 = vmatprep.subr.mxu0 0.0
    %2019 = vmatpush1.msra.mxu0 0.0
    %2020 = vmatprep.subr.mxu0 0.0
    %2021 = vmatpush1.msra.mxu0 0.0
    %2022 = vmatprep.subr.mxu0 0.0
    %2023 = vmatpush1.msra.mxu0 0.0
    %2024 = vmatprep.subr.mxu0 0.0
    %2025 = vmatpush1.msra.mxu0 0.0
    %2026 = vmatprep.subr.mxu0 0.0
    %2027 = vmatpush1.msra.mxu0 0.0
    %2028 = vmatprep.subr.mxu0 0.0
    %2029 = vmatpush1.msra.mxu0 0.0
    %2030 = vmatprep.subr.mxu0 0.0
    %2031 = vmatpush1.msra.mxu0 0.0
    %2032 = vmatprep.subr.mxu0 0.0
    %2033 = vmatpush1.msra.mxu0 0.0
    %2034 = vmatprep.subr.mxu0 0.0
    %2035 = vmatpush1.msra.mxu0 0.0
    %2036 = vmatprep.subr.mxu0 0.0
    %2037 = vmatpush1.msra.mxu0 0.0
    %2038 = vmatprep.subr.mxu0 0.0
    %2039 = vmatpush1.msra.mxu0 0.0
    %2040 = vmatprep.subr.mxu0 0.0
    %2041 = vmatpush1.msra.mxu0 0.0
    %2042 = vmatprep.subr.mxu0 0.0
    %2043 = vmatpush1.msra.mxu0 0.0
    %2044 = vmatprep.subr.mxu0 0.0
    %2045 = vmatpush1.msra.mxu0 0.0
    %2046 = vmatprep.subr.mxu0 0.0
    %2047 = vmatpush1.msra.mxu0 0.0
    %2048 = vmatprep.subr.mxu0 0.0
    %2049 = vmatpush1.msra.mxu0 0.0
    %2050 = vmatprep.subr.mxu0 0.0
    %2051 = vmatpush1.msra.mxu0 0.0
    %2052 = vmatprep.subr.mxu0 0.0
    %2053 = vmatpush1.msra.mxu0 0.0
    %2054 = vmatprep.subr.mxu0 0.0
    %2055 = vmatpush1.msra.mxu0 0.0
    %2056 = vmatprep.subr.mxu0 0.0
    %2057 = vmatpush1.msra.mxu0 0.0
    %2058 = vmatprep.subr.mxu0 0.0
    %2059 = vmatpush1.msra.mxu0 0.0
    %2060 = vmatprep.subr.mxu0 0.0
    %2061 = vmatpush1.msra.mxu0 0.0
    %2062 = vmatprep.subr.mxu0 0.0
    %2063 = vmatpush1.msra.mxu0 0.0
    %2064 = vmatprep.subr.mxu0 0.0
    %2065 = vmatpush1.msra.mxu0 0.0
    %2066 = vmatprep.mubr.f32.mxu0 0.0
    %2067 = vmatmul.mubr.f32.gmra.mrb[0].mxu0 %v2000
    %v2068 = vpop.f32.mrb[0].mxu0
    %v2069 = vadd.f32 0.0, %v2068
    %v2070 = vpop.f32.mrb[0].mxu0
    %2071 = vdwg.mxu0
    %v2072 = vsel %vm215, %v1042, 0
    %2074 = vmatprep.subr.mxu0 0.0
    %2075 = vmatpush1.msra.mxu0 %v1051
    %2076 = vmatprep.subr.mxu0 0.0
    %2077 = vmatpush1.msra.mxu0 %v1052
    %2078 = vmatprep.subr.mxu0 0.0
    %2079 = vmatpush1.msra.mxu0 %v1053
    %2080 = vmatprep.subr.mxu0 0.0
    %2081 = vmatpush1.msra.mxu0 %v1054
    %2082 = vmatprep.subr.mxu0 0.0
    %2083 = vmatpush1.msra.mxu0 0.0
    %2084 = vmatprep.subr.mxu0 0.0
    %2085 = vmatpush1.msra.mxu0 0.0
    %2086 = vmatprep.subr.mxu0 0.0
    %2087 = vmatpush1.msra.mxu0 0.0
    %2088 = vmatprep.subr.mxu0 0.0
    %2089 = vmatpush1.msra.mxu0 0.0
    %2090 = vmatprep.subr.mxu0 0.0
    %2091 = vmatpush1.msra.mxu0 0.0
    %2092 = vmatprep.subr.mxu0 0.0
    %2093 = vmatpush1.msra.mxu0 0.0
    %2094 = vmatprep.subr.mxu0 0.0
    %2095 = vmatpush1.msra.mxu0 0.0
    %2096 = vmatprep.subr.mxu0 0.0
    %2097 = vmatpush1.msra.mxu0 0.0
    %2098 = vmatprep.subr.mxu0 0.0
    %2099 = vmatpush1.msra.mxu0 0.0
    %2100 = vmatprep.subr.mxu0 0.0
    %2101 = vmatpush1.msra.mxu0 0.0
    %2102 = vmatprep.subr.mxu0 0.0
    %2103 = vmatpush1.msra.mxu0 0.0
    %2104 = vmatprep.subr.mxu0 0.0
    %2105 = vmatpush1.msra.mxu0 0.0
    %2106 = vmatprep.subr.mxu0 0.0
    %2107 = vmatpush1.msra.mxu0 0.0
    %2108 = vmatprep.subr.mxu0 0.0
    %2109 = vmatpush1.msra.mxu0 0.0
    %2110 = vmatprep.subr.mxu0 0.0
    %2111 = vmatpush1.msra.mxu0 0.0
    %2112 = vmatprep.subr.mxu0 0.0
    %2113 = vmatpush1.msra.mxu0 0.0
    %2114 = vmatprep.subr.mxu0 0.0
    %2115 = vmatpush1.msra.mxu0 0.0
    %2116 = vmatprep.subr.mxu0 0.0
    %2117 = vmatpush1.msra.mxu0 0.0
    %2118 = vmatprep.subr.mxu0 0.0
    %2119 = vmatpush1.msra.mxu0 0.0
    %2120 = vmatprep.subr.mxu0 0.0
    %2121 = vmatpush1.msra.mxu0 0.0
    %2122 = vmatprep.subr.mxu0 0.0
    %2123 = vmatpush1.msra.mxu0 0.0
    %2124 = vmatprep.subr.mxu0 0.0
    %2125 = vmatpush1.msra.mxu0 0.0
    %2126 = vmatprep.subr.mxu0 0.0
    %2127 = vmatpush1.msra.mxu0 0.0
    %2128 = vmatprep.subr.mxu0 0.0
    %2129 = vmatpush1.msra.mxu0 0.0
    %2130 = vmatprep.subr.mxu0 0.0
    %2131 = vmatpush1.msra.mxu0 0.0
    %2132 = vmatprep.subr.mxu0 0.0
    %2133 = vmatpush1.msra.mxu0 0.0
    %2134 = vmatprep.subr.mxu0 0.0
    %2135 = vmatpush1.msra.mxu0 0.0
    %2136 = vmatprep.subr.mxu0 0.0
    %2137 = vmatpush1.msra.mxu0 0.0
    %2138 = vmatprep.mubr.f32.mxu0 0.0
    %2139 = vmatmul.mubr.f32.gmra.mrb[0].mxu0 %v2072
    %v2140 = vpop.f32.mrb[0].mxu0
    %v2141 = vadd.f32 %v2069, %v2140
    %v2142 = vpop.f32.mrb[0].mxu0
    %2143 = vdwg.mxu0
    %v2144 = vld [vmem:[#allocation3] sm:$0xff]
    %v2145 = vld [vmem:[#allocation3 + $0x8] sm:$0xff]
    %v2146 = vld [vmem:[%s9] sm:$0xff]
    %v2147 = vld [vmem:[%s9 + $0x8] sm:$0xff]
    %v2148 = vld [vmem:[%s9 + $0x10] sm:$0xff]
    %v2149 = vld [vmem:[%s9 + $0x18] sm:$0xff]
    %v2150 = vld [vmem:[%s11] sm:$0x1]
    %v2152 = vlaneseq
    %v2153 = vshrl.u32 %v2152, 7
    %v2154 = vsub.s32 0, %v2153
    %v2155 = vrot.slane %v2150, %v2154
    %v2158 = vsel %vm215, %v2144, 0
    %v2161 = vsel %vm215, %v2145, 0
    %2163 = vmatprep.subr.mxu0 0.0
    %2164 = vmatpush1.msra.mxu0 %v2146
    %2165 = vmatprep.subr.mxu0 0.0
    %2166 = vmatpush1.msra.mxu0 %v2147
    %2167 = vmatprep.subr.mxu0 0.0
    %2168 = vmatpush1.msra.mxu0 %v2148
    %2169 = vmatprep.subr.mxu0 0.0
    %2170 = vmatpush1.msra.mxu0 %v2149
    %2171 = vmatprep.subr.mxu0 0.0
    %2172 = vmatpush1.msra.mxu0 0.0
    %2173 = vmatprep.subr.mxu0 0.0
    %2174 = vmatpush1.msra.mxu0 0.0
    %2175 = vmatprep.subr.mxu0 0.0
    %2176 = vmatpush1.msra.mxu0 0.0
    %2177 = vmatprep.subr.mxu0 0.0
    %2178 = vmatpush1.msra.mxu0 0.0
    %2179 = vmatprep.subr.mxu0 0.0
    %2180 = vmatpush1.msra.mxu0 0.0
    %2181 = vmatprep.subr.mxu0 0.0
    %2182 = vmatpush1.msra.mxu0 0.0
    %2183 = vmatprep.subr.mxu0 0.0
    %2184 = vmatpush1.msra.mxu0 0.0
    %2185 = vmatprep.subr.mxu0 0.0
    %2186 = vmatpush1.msra.mxu0 0.0
    %2187 = vmatprep.subr.mxu0 0.0
    %2188 = vmatpush1.msra.mxu0 0.0
    %2189 = vmatprep.subr.mxu0 0.0
    %2190 = vmatpush1.msra.mxu0 0.0
    %2191 = vmatprep.subr.mxu0 0.0
    %2192 = vmatpush1.msra.mxu0 0.0
    %2193 = vmatprep.subr.mxu0 0.0
    %2194 = vmatpush1.msra.mxu0 0.0
    %2195 = vmatprep.subr.mxu0 0.0
    %2196 = vmatpush1.msra.mxu0 0.0
    %2197 = vmatprep.subr.mxu0 0.0
    %2198 = vmatpush1.msra.mxu0 0.0
    %2199 = vmatprep.subr.mxu0 0.0
    %2200 = vmatpush1.msra.mxu0 0.0
    %2201 = vmatprep.subr.mxu0 0.0
    %2202 = vmatpush1.msra.mxu0 0.0
    %2203 = vmatprep.subr.mxu0 0.0
    %2204 = vmatpush1.msra.mxu0 0.0
    %2205 = vmatprep.subr.mxu0 0.0
    %2206 = vmatpush1.msra.mxu0 0.0
    %2207 = vmatprep.subr.mxu0 0.0
    %2208 = vmatpush1.msra.mxu0 0.0
    %2209 = vmatprep.subr.mxu0 0.0
    %2210 = vmatpush1.msra.mxu0 0.0
    %2211 = vmatprep.subr.mxu0 0.0
    %2212 = vmatpush1.msra.mxu0 0.0
    %2213 = vmatprep.subr.mxu0 0.0
    %2214 = vmatpush1.msra.mxu0 0.0
    %2215 = vmatprep.subr.mxu0 0.0
    %2216 = vmatpush1.msra.mxu0 0.0
    %2217 = vmatprep.subr.mxu0 0.0
    %2218 = vmatpush1.msra.mxu0 0.0
    %2219 = vmatprep.subr.mxu0 0.0
    %2220 = vmatpush1.msra.mxu0 0.0
    %2221 = vmatprep.subr.mxu0 0.0
    %2222 = vmatpush1.msra.mxu0 0.0
    %2223 = vmatprep.subr.mxu0 0.0
    %2224 = vmatpush1.msra.mxu0 0.0
    %2225 = vmatprep.subr.mxu0 0.0
    %2226 = vmatpush1.msra.mxu0 0.0
    %2227 = vmatprep.mubr.f32.mxu0 0.0
    %2228 = vmatmul.mubr.f32.gmra.mrb[0].mxu0 %v2158
    %v2229 = vpop.f32.mrb[0].mxu0
    %v2230 = vadd.f32 %v2155, %v2229
    %v2231 = vpop.f32.mrb[0].mxu0
    %2232 = vmatprep.mubr.f32.mxu0 0.0
    %2233 = vmatmul.mubr.f32.gmra.mrb[0].mxu0 %v2161
    %v2234 = vpop.f32.mrb[0].mxu0
    %v2235 = vadd.f32 %v2155, %v2234
    %v2236 = vpop.f32.mrb[0].mxu0
    %2237 = vdwg.mxu0
    %2238 = vst [vmem:[#allocation2] sm:$0xff] %v2230
    %2239 = vst [vmem:[#allocation2 + $0x8] sm:$0xff] %v2235
    %v2240 = vld [vmem:[#allocation10] sm:$0xff]
    %v2241 = vld [vmem:[#allocation10 + $0x8] sm:$0xff]
    %v2242 = vld [vmem:[#allocation10 + $0x10] sm:$0xff]
    %v2243 = vld [vmem:[#allocation10 + $0x18] sm:$0xff]
    %s2244 = scalar_lea.vmem [#allocation7], 4
    %v2245 = vld [vmem:[%s2244] sm:$0x3]
    %s2246 = scalar_lea.vmem [#allocation9], 4
    %v2247 = vld [vmem:[%s2246] sm:$0x3]
    %v2248 = vld [vmem:[#allocation2] sm:$0x3]
    %v2250 = vsel %vm215, %v2245, 0
    %2252 = vmatprep.subr.mxu0 0.0
    %2253 = vmatpush1.msra.mxu0 %v2240
    %2254 = vmatprep.subr.mxu0 0.0
    %2255 = vmatpush1.msra.mxu0 %v2241
    %2256 = vmatprep.subr.mxu0 0.0
    %2257 = vmatpush1.msra.mxu0 %v2242
    %2258 = vmatprep.subr.mxu0 0.0
    %2259 = vmatpush1.msra.mxu0 %v2243
    %2260 = vmatprep.subr.mxu0 0.0
    %2261 = vmatpush1.msra.mxu0 0.0
    %2262 = vmatprep.subr.mxu0 0.0
    %2263 = vmatpush1.msra.mxu0 0.0
    %2264 = vmatprep.subr.mxu0 0.0
    %2265 = vmatpush1.msra.mxu0 0.0
    %2266 = vmatprep.subr.mxu0 0.0
    %2267 = vmatpush1.msra.mxu0 0.0
    %2268 = vmatprep.subr.mxu0 0.0
    %2269 = vmatpush1.msra.mxu0 0.0
    %2270 = vmatprep.subr.mxu0 0.0
    %2271 = vmatpush1.msra.mxu0 0.0
    %2272 = vmatprep.subr.mxu0 0.0
    %2273 = vmatpush1.msra.mxu0 0.0
    %2274 = vmatprep.subr.mxu0 0.0
    %2275 = vmatpush1.msra.mxu0 0.0
    %2276 = vmatprep.subr.mxu0 0.0
    %2277 = vmatpush1.msra.mxu0 0.0
    %2278 = vmatprep.subr.mxu0 0.0
    %2279 = vmatpush1.msra.mxu0 0.0
    %2280 = vmatprep.subr.mxu0 0.0
    %2281 = vmatpush1.msra.mxu0 0.0
    %2282 = vmatprep.subr.mxu0 0.0
    %2283 = vmatpush1.msra.mxu0 0.0
    %2284 = vmatprep.subr.mxu0 0.0
    %2285 = vmatpush1.msra.mxu0 0.0
    %2286 = vmatprep.subr.mxu0 0.0
    %2287 = vmatpush1.msra.mxu0 0.0
    %2288 = vmatprep.subr.mxu0 0.0
    %2289 = vmatpush1.msra.mxu0 0.0
    %2290 = vmatprep.subr.mxu0 0.0
    %2291 = vmatpush1.msra.mxu0 0.0
    %2292 = vmatprep.subr.mxu0 0.0
    %2293 = vmatpush1.msra.mxu0 0.0
    %2294 = vmatprep.subr.mxu0 0.0
    %2295 = vmatpush1.msra.mxu0 0.0
    %2296 = vmatprep.subr.mxu0 0.0
    %2297 = vmatpush1.msra.mxu0 0.0
    %2298 = vmatprep.subr.mxu0 0.0
    %2299 = vmatpush1.msra.mxu0 0.0
    %2300 = vmatprep.subr.mxu0 0.0
    %2301 = vmatpush1.msra.mxu0 0.0
    %2302 = vmatprep.subr.mxu0 0.0
    %2303 = vmatpush1.msra.mxu0 0.0
    %2304 = vmatprep.subr.mxu0 0.0
    %2305 = vmatpush1.msra.mxu0 0.0
    %2306 = vmatprep.subr.mxu0 0.0
    %2307 = vmatpush1.msra.mxu0 0.0
    %2308 = vmatprep.subr.mxu0 0.0
    %2309 = vmatpush1.msra.mxu0 0.0
    %2310 = vmatprep.subr.mxu0 0.0
    %2311 = vmatpush1.msra.mxu0 0.0
    %2312 = vmatprep.subr.mxu0 0.0
    %2313 = vmatpush1.msra.mxu0 0.0
    %2314 = vmatprep.subr.mxu0 0.0
    %2315 = vmatpush1.msra.mxu0 0.0
    %2316 = vmatprep.mubr.f32.mxu0 0.0
    %2317 = vmatmul.mubr.f32.gmra.mrb[0].mxu0 %v2250
    %v2318 = vpop.f32.mrb[0].mxu0
    %v2319 = vadd.f32 0.0, %v2318
    %v2320 = vpop.f32.mrb[0].mxu0
    %2321 = vdwg.mxu0
    %v2322 = vadd.f32 %v2248, %v2319
    %v2323 = vxor.u32 %v2322, 2147483648
    %v2324 = vmul.f32 %v2323, 1.442695
    %v2325 = vpow.pop %v2324
    %v2326 = vadd.f32 %v2325, 1.0
    %v2327 = vrcp.pop %v2326
    %v2328 = vmul.f32 1.0, %v2327
    %v2329 = vtanh.pop %v2322
    %2331 = vrot.lane.b32.xlu0 %v2247, 32
    %v2332 = vpop.permute.xlu0 %2331
    %v2334 = vmul.f32 %v2328, %v2332
    %2336 = vrot.lane.b32.xlu0 %v2329, 64
    %v2337 = vpop.permute.xlu0 %2336
    %v2339 = vmul.f32 %v2328, %v2337
    %2341 = vrot.lane.b32.xlu0 %v2339, 32
    %v2342 = vpop.permute.xlu0 %2341
    %v2344 = vadd.f32 %v2334, %v2342
    %v2345 = vtanh.pop %v2344
    %2347 = vrot.lane.b32.xlu0 %v2345, 64
    %v2348 = vpop.permute.xlu0 %2347
    %v2350 = vmul.f32 %v2328, %v2348
    %v2351 = vld [vmem:[#allocation2 + $0x2] sm:$0x3]
    %2353 = vrot.lane.b32.xlu0 %v2350, 32
    %v2354 = vpop.permute.xlu0 %2353
    %v2355 = vsel %vm215, %v2354, 0
    %2357 = vmatprep.subr.mxu0 0.0
    %2358 = vmatpush1.msra.mxu0 %v2240
    %2359 = vmatprep.subr.mxu0 0.0
    %2360 = vmatpush1.msra.mxu0 %v2241
    %2361 = vmatprep.subr.mxu0 0.0
    %2362 = vmatpush1.msra.mxu0 %v2242
    %2363 = vmatprep.subr.mxu0 0.0
    %2364 = vmatpush1.msra.mxu0 %v2243
    %2365 = vmatprep.subr.mxu0 0.0
    %2366 = vmatpush1.msra.mxu0 0.0
    %2367 = vmatprep.subr.mxu0 0.0
    %2368 = vmatpush1.msra.mxu0 0.0
    %2369 = vmatprep.subr.mxu0 0.0
    %2370 = vmatpush1.msra.mxu0 0.0
    %2371 = vmatprep.subr.mxu0 0.0
    %2372 = vmatpush1.msra.mxu0 0.0
    %2373 = vmatprep.subr.mxu0 0.0
    %2374 = vmatpush1.msra.mxu0 0.0
    %2375 = vmatprep.subr.mxu0 0.0
    %2376 = vmatpush1.msra.mxu0 0.0
    %2377 = vmatprep.subr.mxu0 0.0
    %2378 = vmatpush1.msra.mxu0 0.0
    %2379 = vmatprep.subr.mxu0 0.0
    %2380 = vmatpush1.msra.mxu0 0.0
    %2381 = vmatprep.subr.mxu0 0.0
    %2382 = vmatpush1.msra.mxu0 0.0
    %2383 = vmatprep.subr.mxu0 0.0
    %2384 = vmatpush1.msra.mxu0 0.0
    %2385 = vmatprep.subr.mxu0 0.0
    %2386 = vmatpush1.msra.mxu0 0.0
    %2387 = vmatprep.subr.mxu0 0.0
    %2388 = vmatpush1.msra.mxu0 0.0
    %2389 = vmatprep.subr.mxu0 0.0
    %2390 = vmatpush1.msra.mxu0 0.0
    %2391 = vmatprep.subr.mxu0 0.0
    %2392 = vmatpush1.msra.mxu0 0.0
    %2393 = vmatprep.subr.mxu0 0.0
    %2394 = vmatpush1.msra.mxu0 0.0
    %2395 = vmatprep.subr.mxu0 0.0
    %2396 = vmatpush1.msra.mxu0 0.0
    %2397 = vmatprep.subr.mxu0 0.0
    %2398 = vmatpush1.msra.mxu0 0.0
    %2399 = vmatprep.subr.mxu0 0.0
    %2400 = vmatpush1.msra.mxu0 0.0
    %2401 = vmatprep.subr.mxu0 0.0
    %2402 = vmatpush1.msra.mxu0 0.0
    %2403 = vmatprep.subr.mxu0 0.0
    %2404 = vmatpush1.msra.mxu0 0.0
    %2405 = vmatprep.subr.mxu0 0.0
    %2406 = vmatpush1.msra.mxu0 0.0
    %2407 = vmatprep.subr.mxu0 0.0
    %2408 = vmatpush1.msra.mxu0 0.0
    %2409 = vmatprep.subr.mxu0 0.0
    %2410 = vmatpush1.msra.mxu0 0.0
    %2411 = vmatprep.subr.mxu0 0.0
    %2412 = vmatpush1.msra.mxu0 0.0
    %2413 = vmatprep.subr.mxu0 0.0
    %2414 = vmatpush1.msra.mxu0 0.0
    %2415 = vmatprep.subr.mxu0 0.0
    %2416 = vmatpush1.msra.mxu0 0.0
    %2417 = vmatprep.subr.mxu0 0.0
    %2418 = vmatpush1.msra.mxu0 0.0
    %2419 = vmatprep.subr.mxu0 0.0
    %2420 = vmatpush1.msra.mxu0 0.0
    %2421 = vmatprep.mubr.f32.mxu0 0.0
    %2422 = vmatmul.mubr.f32.gmra.mrb[0].mxu0 %v2355
    %v2423 = vpop.f32.mrb[0].mxu0
    %v2424 = vadd.f32 0.0, %v2423
    %v2425 = vpop.f32.mrb[0].mxu0
    %2426 = vdwg.mxu0
    %v2427 = vadd.f32 %v2351, %v2424
    %v2428 = vxor.u32 %v2427, 2147483648
    %v2429 = vmul.f32 %v2428, 1.442695
    %v2430 = vpow.pop %v2429
    %v2431 = vadd.f32 %v2430, 1.0
    %v2432 = vrcp.pop %v2431
    %v2433 = vmul.f32 1.0, %v2432
    %v2434 = vtanh.pop %v2427
    %v2435 = vmul.f32 %v2433, %v2344
    %2437 = vrot.lane.b32.xlu0 %v2434, 64
    %v2438 = vpop.permute.xlu0 %2437
    %v2440 = vmul.f32 %v2433, %v2438
    %2442 = vrot.lane.b32.xlu0 %v2440, 32
    %v2443 = vpop.permute.xlu0 %2442
    %v2445 = vadd.f32 %v2435, %v2443
    %v2446 = vtanh.pop %v2445
    %2448 = vrot.lane.b32.xlu0 %v2446, 64
    %v2449 = vpop.permute.xlu0 %2448
    %v2451 = vmul.f32 %v2433, %v2449
    %v2452 = vld [vmem:[#allocation2 + $0x4] sm:$0x3]
    %2454 = vrot.lane.b32.xlu0 %v2451, 32
    %v2455 = vpop.permute.xlu0 %2454
    %v2456 = vsel %vm215, %v2455, 0
    %2458 = vmatprep.subr.mxu0 0.0
    %2459 = vmatpush1.msra.mxu0 %v2240
    %2460 = vmatprep.subr.mxu0 0.0
    %2461 = vmatpush1.msra.mxu0 %v2241
    %2462 = vmatprep.subr.mxu0 0.0
    %2463 = vmatpush1.msra.mxu0 %v2242
    %2464 = vmatprep.subr.mxu0 0.0
    %2465 = vmatpush1.msra.mxu0 %v2243
    %2466 = vmatprep.subr.mxu0 0.0
    %2467 = vmatpush1.msra.mxu0 0.0
    %2468 = vmatprep.subr.mxu0 0.0
    %2469 = vmatpush1.msra.mxu0 0.0
    %2470 = vmatprep.subr.mxu0 0.0
    %2471 = vmatpush1.msra.mxu0 0.0
    %2472 = vmatprep.subr.mxu0 0.0
    %2473 = vmatpush1.msra.mxu0 0.0
    %2474 = vmatprep.subr.mxu0 0.0
    %2475 = vmatpush1.msra.mxu0 0.0
    %2476 = vmatprep.subr.mxu0 0.0
    %2477 = vmatpush1.msra.mxu0 0.0
    %2478 = vmatprep.subr.mxu0 0.0
    %2479 = vmatpush1.msra.mxu0 0.0
    %2480 = vmatprep.subr.mxu0 0.0
    %2481 = vmatpush1.msra.mxu0 0.0
    %2482 = vmatprep.subr.mxu0 0.0
    %2483 = vmatpush1.msra.mxu0 0.0
    %2484 = vmatprep.subr.mxu0 0.0
    %2485 = vmatpush1.msra.mxu0 0.0
    %2486 = vmatprep.subr.mxu0 0.0
    %2487 = vmatpush1.msra.mxu0 0.0
    %2488 = vmatprep.subr.mxu0 0.0
    %2489 = vmatpush1.msra.mxu0 0.0
    %2490 = vmatprep.subr.mxu0 0.0
    %2491 = vmatpush1.msra.mxu0 0.0
    %2492 = vmatprep.subr.mxu0 0.0
    %2493 = vmatpush1.msra.mxu0 0.0
    %2494 = vmatprep.subr.mxu0 0.0
    %2495 = vmatpush1.msra.mxu0 0.0
    %2496 = vmatprep.subr.mxu0 0.0
    %2497 = vmatpush1.msra.mxu0 0.0
    %2498 = vmatprep.subr.mxu0 0.0
    %2499 = vmatpush1.msra.mxu0 0.0
    %2500 = vmatprep.subr.mxu0 0.0
    %2501 = vmatpush1.msra.mxu0 0.0
    %2502 = vmatprep.subr.mxu0 0.0
    %2503 = vmatpush1.msra.mxu0 0.0
    %2504 = vmatprep.subr.mxu0 0.0
    %2505 = vmatpush1.msra.mxu0 0.0
    %2506 = vmatprep.subr.mxu0 0.0
    %2507 = vmatpush1.msra.mxu0 0.0
    %2508 = vmatprep.subr.mxu0 0.0
    %2509 = vmatpush1.msra.mxu0 0.0
    %2510 = vmatprep.subr.mxu0 0.0
    %2511 = vmatpush1.msra.mxu0 0.0
    %2512 = vmatprep.subr.mxu0 0.0
    %2513 = vmatpush1.msra.mxu0 0.0
    %2514 = vmatprep.subr.mxu0 0.0
    %2515 = vmatpush1.msra.mxu0 0.0
    %2516 = vmatprep.subr.mxu0 0.0
    %2517 = vmatpush1.msra.mxu0 0.0
    %2518 = vmatprep.subr.mxu0 0.0
    %2519 = vmatpush1.msra.mxu0 0.0
    %2520 = vmatprep.subr.mxu0 0.0
    %2521 = vmatpush1.msra.mxu0 0.0
    %2522 = vmatprep.mubr.f32.mxu0 0.0
    %2523 = vmatmul.mubr.f32.gmra.mrb[0].mxu0 %v2456
    %v2524 = vpop.f32.mrb[0].mxu0
    %v2525 = vadd.f32 0.0, %v2524
    %v2526 = vpop.f32.mrb[0].mxu0
    %2527 = vdwg.mxu0
    %v2528 = vadd.f32 %v2452, %v2525
    %v2529 = vxor.u32 %v2528, 2147483648
    %v2530 = vmul.f32 %v2529, 1.442695
    %v2531 = vpow.pop %v2530
    %v2532 = vadd.f32 %v2531, 1.0
    %v2533 = vrcp.pop %v2532
    %v2534 = vmul.f32 1.0, %v2533
    %v2535 = vtanh.pop %v2528
    %v2536 = vmul.f32 %v2534, %v2445
    %2538 = vrot.lane.b32.xlu0 %v2535, 64
    %v2539 = vpop.permute.xlu0 %2538
    %v2541 = vmul.f32 %v2534, %v2539
    %2543 = vrot.lane.b32.xlu0 %v2541, 32
    %v2544 = vpop.permute.xlu0 %2543
    %v2546 = vadd.f32 %v2536, %v2544
    %v2547 = vtanh.pop %v2546
    %2549 = vrot.lane.b32.xlu0 %v2547, 64
    %v2550 = vpop.permute.xlu0 %2549
    %v2552 = vmul.f32 %v2534, %v2550
    %v2553 = vld [vmem:[#allocation2 + $0x6] sm:$0x3]
    %2555 = vrot.lane.b32.xlu0 %v2552, 32
    %v2556 = vpop.permute.xlu0 %2555
    %v2557 = vsel %vm215, %v2556, 0
    %2559 = vmatprep.subr.mxu0 0.0
    %2560 = vmatpush1.msra.mxu0 %v2240
    %2561 = vmatprep.subr.mxu0 0.0
    %2562 = vmatpush1.msra.mxu0 %v2241
    %2563 = vmatprep.subr.mxu0 0.0
    %2564 = vmatpush1.msra.mxu0 %v2242
    %2565 = vmatprep.subr.mxu0 0.0
    %2566 = vmatpush1.msra.mxu0 %v2243
    %2567 = vmatprep.subr.mxu0 0.0
    %2568 = vmatpush1.msra.mxu0 0.0
    %2569 = vmatprep.subr.mxu0 0.0
    %2570 = vmatpush1.msra.mxu0 0.0
    %2571 = vmatprep.subr.mxu0 0.0
    %2572 = vmatpush1.msra.mxu0 0.0
    %2573 = vmatprep.subr.mxu0 0.0
    %2574 = vmatpush1.msra.mxu0 0.0
    %2575 = vmatprep.subr.mxu0 0.0
    %2576 = vmatpush1.msra.mxu0 0.0
    %2577 = vmatprep.subr.mxu0 0.0
    %2578 = vmatpush1.msra.mxu0 0.0
    %2579 = vmatprep.subr.mxu0 0.0
    %2580 = vmatpush1.msra.mxu0 0.0
    %2581 = vmatprep.subr.mxu0 0.0
    %2582 = vmatpush1.msra.mxu0 0.0
    %2583 = vmatprep.subr.mxu0 0.0
    %2584 = vmatpush1.msra.mxu0 0.0
    %2585 = vmatprep.subr.mxu0 0.0
    %2586 = vmatpush1.msra.mxu0 0.0
    %2587 = vmatprep.subr.mxu0 0.0
    %2588 = vmatpush1.msra.mxu0 0.0
    %2589 = vmatprep.subr.mxu0 0.0
    %2590 = vmatpush1.msra.mxu0 0.0
    %2591 = vmatprep.subr.mxu0 0.0
    %2592 = vmatpush1.msra.mxu0 0.0
    %2593 = vmatprep.subr.mxu0 0.0
    %2594 = vmatpush1.msra.mxu0 0.0
    %2595 = vmatprep.subr.mxu0 0.0
    %2596 = vmatpush1.msra.mxu0 0.0
    %2597 = vmatprep.subr.mxu0 0.0
    %2598 = vmatpush1.msra.mxu0 0.0
    %2599 = vmatprep.subr.mxu0 0.0
    %2600 = vmatpush1.msra.mxu0 0.0
    %2601 = vmatprep.subr.mxu0 0.0
    %2602 = vmatpush1.msra.mxu0 0.0
    %2603 = vmatprep.subr.mxu0 0.0
    %2604 = vmatpush1.msra.mxu0 0.0
    %2605 = vmatprep.subr.mxu0 0.0
    %2606 = vmatpush1.msra.mxu0 0.0
    %2607 = vmatprep.subr.mxu0 0.0
    %2608 = vmatpush1.msra.mxu0 0.0
    %2609 = vmatprep.subr.mxu0 0.0
    %2610 = vmatpush1.msra.mxu0 0.0
    %2611 = vmatprep.subr.mxu0 0.0
    %2612 = vmatpush1.msra.mxu0 0.0
    %2613 = vmatprep.subr.mxu0 0.0
    %2614 = vmatpush1.msra.mxu0 0.0
    %2615 = vmatprep.subr.mxu0 0.0
    %2616 = vmatpush1.msra.mxu0 0.0
    %2617 = vmatprep.subr.mxu0 0.0
    %2618 = vmatpush1.msra.mxu0 0.0
    %2619 = vmatprep.subr.mxu0 0.0
    %2620 = vmatpush1.msra.mxu0 0.0
    %2621 = vmatprep.subr.mxu0 0.0
    %2622 = vmatpush1.msra.mxu0 0.0
    %2623 = vmatprep.mubr.f32.mxu0 0.0
    %2624 = vmatmul.mubr.f32.gmra.mrb[0].mxu0 %v2557
    %v2625 = vpop.f32.mrb[0].mxu0
    %v2626 = vadd.f32 0.0, %v2625
    %v2627 = vpop.f32.mrb[0].mxu0
    %2628 = vdwg.mxu0
    %v2629 = vadd.f32 %v2553, %v2626
    %v2630 = vxor.u32 %v2629, 2147483648
    %v2631 = vmul.f32 %v2630, 1.442695
    %v2632 = vpow.pop %v2631
    %v2633 = vadd.f32 %v2632, 1.0
    %v2634 = vrcp.pop %v2633
    %v2635 = vmul.f32 1.0, %v2634
    %v2636 = vtanh.pop %v2629
    %v2637 = vmul.f32 %v2635, %v2546
    %2639 = vrot.lane.b32.xlu0 %v2636, 64
    %v2640 = vpop.permute.xlu0 %2639
    %v2642 = vmul.f32 %v2635, %v2640
    %2644 = vrot.lane.b32.xlu0 %v2642, 32
    %v2645 = vpop.permute.xlu0 %2644
    %v2647 = vadd.f32 %v2637, %v2645
    %v2648 = vtanh.pop %v2647
    %2650 = vrot.lane.b32.xlu0 %v2648, 64
    %v2651 = vpop.permute.xlu0 %2650
    %v2653 = vmul.f32 %v2635, %v2651
    %v2654 = vld [vmem:[#allocation2 + $0x8] sm:$0x3]
    %2656 = vrot.lane.b32.xlu0 %v2653, 32
    %v2657 = vpop.permute.xlu0 %2656
    %v2658 = vsel %vm215, %v2657, 0
    %2660 = vmatprep.subr.mxu0 0.0
    %2661 = vmatpush1.msra.mxu0 %v2240
    %2662 = vmatprep.subr.mxu0 0.0
    %2663 = vmatpush1.msra.mxu0 %v2241
    %2664 = vmatprep.subr.mxu0 0.0
    %2665 = vmatpush1.msra.mxu0 %v2242
    %2666 = vmatprep.subr.mxu0 0.0
    %2667 = vmatpush1.msra.mxu0 %v2243
    %2668 = vmatprep.subr.mxu0 0.0
    %2669 = vmatpush1.msra.mxu0 0.0
    %2670 = vmatprep.subr.mxu0 0.0
    %2671 = vmatpush1.msra.mxu0 0.0
    %2672 = vmatprep.subr.mxu0 0.0
    %2673 = vmatpush1.msra.mxu0 0.0
    %2674 = vmatprep.subr.mxu0 0.0
    %2675 = vmatpush1.msra.mxu0 0.0
    %2676 = vmatprep.subr.mxu0 0.0
    %2677 = vmatpush1.msra.mxu0 0.0
    %2678 = vmatprep.subr.mxu0 0.0
    %2679 = vmatpush1.msra.mxu0 0.0
    %2680 = vmatprep.subr.mxu0 0.0
    %2681 = vmatpush1.msra.mxu0 0.0
    %2682 = vmatprep.subr.mxu0 0.0
    %2683 = vmatpush1.msra.mxu0 0.0
    %2684 = vmatprep.subr.mxu0 0.0
    %2685 = vmatpush1.msra.mxu0 0.0
    %2686 = vmatprep.subr.mxu0 0.0
    %2687 = vmatpush1.msra.mxu0 0.0
    %2688 = vmatprep.subr.mxu0 0.0
    %2689 = vmatpush1.msra.mxu0 0.0
    %2690 = vmatprep.subr.mxu0 0.0
    %2691 = vmatpush1.msra.mxu0 0.0
    %2692 = vmatprep.subr.mxu0 0.0
    %2693 = vmatpush1.msra.mxu0 0.0
    %2694 = vmatprep.subr.mxu0 0.0
    %2695 = vmatpush1.msra.mxu0 0.0
    %2696 = vmatprep.subr.mxu0 0.0
    %2697 = vmatpush1.msra.mxu0 0.0
    %2698 = vmatprep.subr.mxu0 0.0
    %2699 = vmatpush1.msra.mxu0 0.0
    %2700 = vmatprep.subr.mxu0 0.0
    %2701 = vmatpush1.msra.mxu0 0.0
    %2702 = vmatprep.subr.mxu0 0.0
    %2703 = vmatpush1.msra.mxu0 0.0
    %2704 = vmatprep.subr.mxu0 0.0
    %2705 = vmatpush1.msra.mxu0 0.0
    %2706 = vmatprep.subr.mxu0 0.0
    %2707 = vmatpush1.msra.mxu0 0.0
    %2708 = vmatprep.subr.mxu0 0.0
    %2709 = vmatpush1.msra.mxu0 0.0
    %2710 = vmatprep.subr.mxu0 0.0
    %2711 = vmatpush1.msra.mxu0 0.0
    %2712 = vmatprep.subr.mxu0 0.0
    %2713 = vmatpush1.msra.mxu0 0.0
    %2714 = vmatprep.subr.mxu0 0.0
    %2715 = vmatpush1.msra.mxu0 0.0
    %2716 = vmatprep.subr.mxu0 0.0
    %2717 = vmatpush1.msra.mxu0 0.0
    %2718 = vmatprep.subr.mxu0 0.0
    %2719 = vmatpush1.msra.mxu0 0.0
    %2720 = vmatprep.subr.mxu0 0.0
    %2721 = vmatpush1.msra.mxu0 0.0
    %2722 = vmatprep.subr.mxu0 0.0
    %2723 = vmatpush1.msra.mxu0 0.0
    %2724 = vmatprep.mubr.f32.mxu0 0.0
    %2725 = vmatmul.mubr.f32.gmra.mrb[0].mxu0 %v2658
    %v2726 = vpop.f32.mrb[0].mxu0
    %v2727 = vadd.f32 0.0, %v2726
    %v2728 = vpop.f32.mrb[0].mxu0
    %2729 = vdwg.mxu0
    %v2730 = vadd.f32 %v2654, %v2727
    %v2731 = vxor.u32 %v2730, 2147483648
    %v2732 = vmul.f32 %v2731, 1.442695
    %v2733 = vpow.pop %v2732
    %v2734 = vadd.f32 %v2733, 1.0
    %v2735 = vrcp.pop %v2734
    %v2736 = vmul.f32 1.0, %v2735
    %v2737 = vtanh.pop %v2730
    %v2738 = vmul.f32 %v2736, %v2647
    %2740 = vrot.lane.b32.xlu0 %v2737, 64
    %v2741 = vpop.permute.xlu0 %2740
    %v2743 = vmul.f32 %v2736, %v2741
    %2745 = vrot.lane.b32.xlu0 %v2743, 32
    %v2746 = vpop.permute.xlu0 %2745
    %v2748 = vadd.f32 %v2738, %v2746
    %v2749 = vtanh.pop %v2748
    %2751 = vrot.lane.b32.xlu0 %v2749, 64
    %v2752 = vpop.permute.xlu0 %2751
    %v2754 = vmul.f32 %v2736, %v2752
    %v2755 = vld [vmem:[#allocation2 + $0xa] sm:$0x3]
    %2757 = vrot.lane.b32.xlu0 %v2754, 32
    %v2758 = vpop.permute.xlu0 %2757
    %v2759 = vsel %vm215, %v2758, 0
    %2761 = vmatprep.subr.mxu0 0.0
    %2762 = vmatpush1.msra.mxu0 %v2240
    %2763 = vmatprep.subr.mxu0 0.0
    %2764 = vmatpush1.msra.mxu0 %v2241
    %2765 = vmatprep.subr.mxu0 0.0
    %2766 = vmatpush1.msra.mxu0 %v2242
    %2767 = vmatprep.subr.mxu0 0.0
    %2768 = vmatpush1.msra.mxu0 %v2243
    %2769 = vmatprep.subr.mxu0 0.0
    %2770 = vmatpush1.msra.mxu0 0.0
    %2771 = vmatprep.subr.mxu0 0.0
    %2772 = vmatpush1.msra.mxu0 0.0
    %2773 = vmatprep.subr.mxu0 0.0
    %2774 = vmatpush1.msra.mxu0 0.0
    %2775 = vmatprep.subr.mxu0 0.0
    %2776 = vmatpush1.msra.mxu0 0.0
    %2777 = vmatprep.subr.mxu0 0.0
    %2778 = vmatpush1.msra.mxu0 0.0
    %2779 = vmatprep.subr.mxu0 0.0
    %2780 = vmatpush1.msra.mxu0 0.0
    %2781 = vmatprep.subr.mxu0 0.0
    %2782 = vmatpush1.msra.mxu0 0.0
    %2783 = vmatprep.subr.mxu0 0.0
    %2784 = vmatpush1.msra.mxu0 0.0
    %2785 = vmatprep.subr.mxu0 0.0
    %2786 = vmatpush1.msra.mxu0 0.0
    %2787 = vmatprep.subr.mxu0 0.0
    %2788 = vmatpush1.msra.mxu0 0.0
    %2789 = vmatprep.subr.mxu0 0.0
    %2790 = vmatpush1.msra.mxu0 0.0
    %2791 = vmatprep.subr.mxu0 0.0
    %2792 = vmatpush1.msra.mxu0 0.0
    %2793 = vmatprep.subr.mxu0 0.0
    %2794 = vmatpush1.msra.mxu0 0.0
    %2795 = vmatprep.subr.mxu0 0.0
    %2796 = vmatpush1.msra.mxu0 0.0
    %2797 = vmatprep.subr.mxu0 0.0
    %2798 = vmatpush1.msra.mxu0 0.0
    %2799 = vmatprep.subr.mxu0 0.0
    %2800 = vmatpush1.msra.mxu0 0.0
    %2801 = vmatprep.subr.mxu0 0.0
    %2802 = vmatpush1.msra.mxu0 0.0
    %2803 = vmatprep.subr.mxu0 0.0
    %2804 = vmatpush1.msra.mxu0 0.0
    %2805 = vmatprep.subr.mxu0 0.0
    %2806 = vmatpush1.msra.mxu0 0.0
    %2807 = vmatprep.subr.mxu0 0.0
    %2808 = vmatpush1.msra.mxu0 0.0
    %2809 = vmatprep.subr.mxu0 0.0
    %2810 = vmatpush1.msra.mxu0 0.0
    %2811 = vmatprep.subr.mxu0 0.0
    %2812 = vmatpush1.msra.mxu0 0.0
    %2813 = vmatprep.subr.mxu0 0.0
    %2814 = vmatpush1.msra.mxu0 0.0
    %2815 = vmatprep.subr.mxu0 0.0
    %2816 = vmatpush1.msra.mxu0 0.0
    %2817 = vmatprep.subr.mxu0 0.0
    %2818 = vmatpush1.msra.mxu0 0.0
    %2819 = vmatprep.subr.mxu0 0.0
    %2820 = vmatpush1.msra.mxu0 0.0
    %2821 = vmatprep.subr.mxu0 0.0
    %2822 = vmatpush1.msra.mxu0 0.0
    %2823 = vmatprep.subr.mxu0 0.0
    %2824 = vmatpush1.msra.mxu0 0.0
    %2825 = vmatprep.mubr.f32.mxu0 0.0
    %2826 = vmatmul.mubr.f32.gmra.mrb[0].mxu0 %v2759
    %v2827 = vpop.f32.mrb[0].mxu0
    %v2828 = vadd.f32 0.0, %v2827
    %v2829 = vpop.f32.mrb[0].mxu0
    %2830 = vdwg.mxu0
    %v2831 = vadd.f32 %v2755, %v2828
    %v2832 = vxor.u32 %v2831, 2147483648
    %v2833 = vmul.f32 %v2832, 1.442695
    %v2834 = vpow.pop %v2833
    %v2835 = vadd.f32 %v2834, 1.0
    %v2836 = vrcp.pop %v2835
    %v2837 = vmul.f32 1.0, %v2836
    %v2838 = vtanh.pop %v2831
    %v2839 = vmul.f32 %v2837, %v2748
    %2841 = vrot.lane.b32.xlu0 %v2838, 64
    %v2842 = vpop.permute.xlu0 %2841
    %v2844 = vmul.f32 %v2837, %v2842
    %2846 = vrot.lane.b32.xlu0 %v2844, 32
    %v2847 = vpop.permute.xlu0 %2846
    %v2849 = vadd.f32 %v2839, %v2847
    %v2850 = vtanh.pop %v2849
    %2852 = vrot.lane.b32.xlu0 %v2850, 64
    %v2853 = vpop.permute.xlu0 %2852
    %v2855 = vmul.f32 %v2837, %v2853
    %v2856 = vld [vmem:[#allocation2 + $0xc] sm:$0x3]
    %2858 = vrot.lane.b32.xlu0 %v2855, 32
    %v2859 = vpop.permute.xlu0 %2858
    %v2860 = vsel %vm215, %v2859, 0
    %2862 = vmatprep.subr.mxu0 0.0
    %2863 = vmatpush1.msra.mxu0 %v2240
    %2864 = vmatprep.subr.mxu0 0.0
    %2865 = vmatpush1.msra.mxu0 %v2241
    %2866 = vmatprep.subr.mxu0 0.0
    %2867 = vmatpush1.msra.mxu0 %v2242
    %2868 = vmatprep.subr.mxu0 0.0
    %2869 = vmatpush1.msra.mxu0 %v2243
    %2870 = vmatprep.subr.mxu0 0.0
    %2871 = vmatpush1.msra.mxu0 0.0
    %2872 = vmatprep.subr.mxu0 0.0
    %2873 = vmatpush1.msra.mxu0 0.0
    %2874 = vmatprep.subr.mxu0 0.0
    %2875 = vmatpush1.msra.mxu0 0.0
    %2876 = vmatprep.subr.mxu0 0.0
    %2877 = vmatpush1.msra.mxu0 0.0
    %2878 = vmatprep.subr.mxu0 0.0
    %2879 = vmatpush1.msra.mxu0 0.0
    %2880 = vmatprep.subr.mxu0 0.0
    %2881 = vmatpush1.msra.mxu0 0.0
    %2882 = vmatprep.subr.mxu0 0.0
    %2883 = vmatpush1.msra.mxu0 0.0
    %2884 = vmatprep.subr.mxu0 0.0
    %2885 = vmatpush1.msra.mxu0 0.0
    %2886 = vmatprep.subr.mxu0 0.0
    %2887 = vmatpush1.msra.mxu0 0.0
    %2888 = vmatprep.subr.mxu0 0.0
    %2889 = vmatpush1.msra.mxu0 0.0
    %2890 = vmatprep.subr.mxu0 0.0
    %2891 = vmatpush1.msra.mxu0 0.0
    %2892 = vmatprep.subr.mxu0 0.0
    %2893 = vmatpush1.msra.mxu0 0.0
    %2894 = vmatprep.subr.mxu0 0.0
    %2895 = vmatpush1.msra.mxu0 0.0
    %2896 = vmatprep.subr.mxu0 0.0
    %2897 = vmatpush1.msra.mxu0 0.0
    %2898 = vmatprep.subr.mxu0 0.0
    %2899 = vmatpush1.msra.mxu0 0.0
    %2900 = vmatprep.subr.mxu0 0.0
    %2901 = vmatpush1.msra.mxu0 0.0
    %2902 = vmatprep.subr.mxu0 0.0
    %2903 = vmatpush1.msra.mxu0 0.0
    %2904 = vmatprep.subr.mxu0 0.0
    %2905 = vmatpush1.msra.mxu0 0.0
    %2906 = vmatprep.subr.mxu0 0.0
    %2907 = vmatpush1.msra.mxu0 0.0
    %2908 = vmatprep.subr.mxu0 0.0
    %2909 = vmatpush1.msra.mxu0 0.0
    %2910 = vmatprep.subr.mxu0 0.0
    %2911 = vmatpush1.msra.mxu0 0.0
    %2912 = vmatprep.subr.mxu0 0.0
    %2913 = vmatpush1.msra.mxu0 0.0
    %2914 = vmatprep.subr.mxu0 0.0
    %2915 = vmatpush1.msra.mxu0 0.0
    %2916 = vmatprep.subr.mxu0 0.0
    %2917 = vmatpush1.msra.mxu0 0.0
    %2918 = vmatprep.subr.mxu0 0.0
    %2919 = vmatpush1.msra.mxu0 0.0
    %2920 = vmatprep.subr.mxu0 0.0
    %2921 = vmatpush1.msra.mxu0 0.0
    %2922 = vmatprep.subr.mxu0 0.0
    %2923 = vmatpush1.msra.mxu0 0.0
    %2924 = vmatprep.subr.mxu0 0.0
    %2925 = vmatpush1.msra.mxu0 0.0
    %2926 = vmatprep.mubr.f32.mxu0 0.0
    %2927 = vmatmul.mubr.f32.gmra.mrb[0].mxu0 %v2860
    %v2928 = vpop.f32.mrb[0].mxu0
    %v2929 = vadd.f32 0.0, %v2928
    %v2930 = vpop.f32.mrb[0].mxu0
    %2931 = vdwg.mxu0
    %v2932 = vadd.f32 %v2856, %v2929
    %v2933 = vxor.u32 %v2932, 2147483648
    %v2934 = vmul.f32 %v2933, 1.442695
    %v2935 = vpow.pop %v2934
    %v2936 = vadd.f32 %v2935, 1.0
    %v2937 = vrcp.pop %v2936
    %v2938 = vmul.f32 1.0, %v2937
    %v2939 = vtanh.pop %v2932
    %v2940 = vmul.f32 %v2938, %v2849
    %2942 = vrot.lane.b32.xlu0 %v2939, 64
    %v2943 = vpop.permute.xlu0 %2942
    %v2945 = vmul.f32 %v2938, %v2943
    %2947 = vrot.lane.b32.xlu0 %v2945, 32
    %v2948 = vpop.permute.xlu0 %2947
    %v2950 = vadd.f32 %v2940, %v2948
    %v2951 = vtanh.pop %v2950
    %2953 = vrot.lane.b32.xlu0 %v2951, 64
    %v2954 = vpop.permute.xlu0 %2953
    %v2956 = vmul.f32 %v2938, %v2954
    %v2957 = vld [vmem:[#allocation2 + $0xe] sm:$0x3]
    %2959 = vrot.lane.b32.xlu0 %v2956, 32
    %v2960 = vpop.permute.xlu0 %2959
    %v2961 = vsel %vm215, %v2960, 0
    %2963 = vmatprep.subr.mxu0 0.0
    %2964 = vmatpush1.msra.mxu0 %v2240
    %2965 = vmatprep.subr.mxu0 0.0
    %2966 = vmatpush1.msra.mxu0 %v2241
    %2967 = vmatprep.subr.mxu0 0.0
    %2968 = vmatpush1.msra.mxu0 %v2242
    %2969 = vmatprep.subr.mxu0 0.0
    %2970 = vmatpush1.msra.mxu0 %v2243
    %2971 = vmatprep.subr.mxu0 0.0
    %2972 = vmatpush1.msra.mxu0 0.0
    %2973 = vmatprep.subr.mxu0 0.0
    %2974 = vmatpush1.msra.mxu0 0.0
    %2975 = vmatprep.subr.mxu0 0.0
    %2976 = vmatpush1.msra.mxu0 0.0
    %2977 = vmatprep.subr.mxu0 0.0
    %2978 = vmatpush1.msra.mxu0 0.0
    %2979 = vmatprep.subr.mxu0 0.0
    %2980 = vmatpush1.msra.mxu0 0.0
    %2981 = vmatprep.subr.mxu0 0.0
    %2982 = vmatpush1.msra.mxu0 0.0
    %2983 = vmatprep.subr.mxu0 0.0
    %2984 = vmatpush1.msra.mxu0 0.0
    %2985 = vmatprep.subr.mxu0 0.0
    %2986 = vmatpush1.msra.mxu0 0.0
    %2987 = vmatprep.subr.mxu0 0.0
    %2988 = vmatpush1.msra.mxu0 0.0
    %2989 = vmatprep.subr.mxu0 0.0
    %2990 = vmatpush1.msra.mxu0 0.0
    %2991 = vmatprep.subr.mxu0 0.0
    %2992 = vmatpush1.msra.mxu0 0.0
    %2993 = vmatprep.subr.mxu0 0.0
    %2994 = vmatpush1.msra.mxu0 0.0
    %2995 = vmatprep.subr.mxu0 0.0
    %2996 = vmatpush1.msra.mxu0 0.0
    %2997 = vmatprep.subr.mxu0 0.0
    %2998 = vmatpush1.msra.mxu0 0.0
    %2999 = vmatprep.subr.mxu0 0.0
    %3000 = vmatpush1.msra.mxu0 0.0
    %3001 = vmatprep.subr.mxu0 0.0
    %3002 = vmatpush1.msra.mxu0 0.0
    %3003 = vmatprep.subr.mxu0 0.0
    %3004 = vmatpush1.msra.mxu0 0.0
    %3005 = vmatprep.subr.mxu0 0.0
    %3006 = vmatpush1.msra.mxu0 0.0
    %3007 = vmatprep.subr.mxu0 0.0
    %3008 = vmatpush1.msra.mxu0 0.0
    %3009 = vmatprep.subr.mxu0 0.0
    %3010 = vmatpush1.msra.mxu0 0.0
    %3011 = vmatprep.subr.mxu0 0.0
    %3012 = vmatpush1.msra.mxu0 0.0
    %3013 = vmatprep.subr.mxu0 0.0
    %3014 = vmatpush1.msra.mxu0 0.0
    %3015 = vmatprep.subr.mxu0 0.0
    %3016 = vmatpush1.msra.mxu0 0.0
    %3017 = vmatprep.subr.mxu0 0.0
    %3018 = vmatpush1.msra.mxu0 0.0
    %3019 = vmatprep.subr.mxu0 0.0
    %3020 = vmatpush1.msra.mxu0 0.0
    %3021 = vmatprep.subr.mxu0 0.0
    %3022 = vmatpush1.msra.mxu0 0.0
    %3023 = vmatprep.subr.mxu0 0.0
    %3024 = vmatpush1.msra.mxu0 0.0
    %3025 = vmatprep.subr.mxu0 0.0
    %3026 = vmatpush1.msra.mxu0 0.0
    %3027 = vmatprep.mubr.f32.mxu0 0.0
    %3028 = vmatmul.mubr.f32.gmra.mrb[0].mxu0 %v2961
    %v3029 = vpop.f32.mrb[0].mxu0
    %v3030 = vadd.f32 0.0, %v3029
    %v3031 = vpop.f32.mrb[0].mxu0
    %3032 = vdwg.mxu0
    %v3033 = vadd.f32 %v2957, %v3030
    %v3034 = vxor.u32 %v3033, 2147483648
    %v3035 = vmul.f32 %v3034, 1.442695
    %v3036 = vpow.pop %v3035
    %v3037 = vadd.f32 %v3036, 1.0
    %v3038 = vrcp.pop %v3037
    %v3039 = vmul.f32 1.0, %v3038
    %v3040 = vtanh.pop %v3033
    %v3041 = vmul.f32 %v3039, %v2950
    %3043 = vrot.lane.b32.xlu0 %v3040, 64
    %v3044 = vpop.permute.xlu0 %3043
    %v3046 = vmul.f32 %v3039, %v3044
    %3048 = vrot.lane.b32.xlu0 %v3046, 32
    %v3049 = vpop.permute.xlu0 %3048
    %v3051 = vadd.f32 %v3041, %v3049
    %v3052 = vtanh.pop %v3051
    %3054 = vrot.lane.b32.xlu0 %v3052, 64
    %v3055 = vpop.permute.xlu0 %3054
    %v3057 = vmul.f32 %v3039, %v3055
    %3059 = vrot.lane.b32.xlu0 %v3057, 32
    %v3060 = vpop.permute.xlu0 %3059
    %s3062 = scalar_lea.vmem [#allocation13], 4
    %3063 = vst.msk [vmem:[%s3062] sm:$0x3] %vm322, %v3060
    %3065 = vrot.lane.b32.xlu0 %v3051, 96
    %v3066 = vpop.permute.xlu0 %3065
    %s3068 = scalar_lea.vmem [#allocation15], 4
    %3069 = vst.msk [vmem:[%s3068] sm:$0x3] %vm322, %v3066
    %v3070 = vld [vmem:[%s12 + $0x40] sm:$0xff]
    %v3071 = vld [vmem:[%s12 + $0x48] sm:$0xff]
    %v3072 = vld [vmem:[%s12 + $0x50] sm:$0xff]
    %v3073 = vld [vmem:[%s12 + $0x58] sm:$0xff]
    %v3074 = vsel %vm215, %v3060, 0
    %3076 = vmatprep.subr.mxu0 0.0
    %3077 = vmatpush1.msra.mxu0 %v3070
    %3078 = vmatprep.subr.mxu0 0.0
    %3079 = vmatpush1.msra.mxu0 %v3071
    %3080 = vmatprep.subr.mxu0 0.0
    %3081 = vmatpush1.msra.mxu0 %v3072
    %3082 = vmatprep.subr.mxu0 0.0
    %3083 = vmatpush1.msra.mxu0 %v3073
    %3084 = vmatprep.subr.mxu0 0.0
    %3085 = vmatpush1.msra.mxu0 0.0
    %3086 = vmatprep.subr.mxu0 0.0
    %3087 = vmatpush1.msra.mxu0 0.0
    %3088 = vmatprep.subr.mxu0 0.0
    %3089 = vmatpush1.msra.mxu0 0.0
    %3090 = vmatprep.subr.mxu0 0.0
    %3091 = vmatpush1.msra.mxu0 0.0
    %3092 = vmatprep.subr.mxu0 0.0
    %3093 = vmatpush1.msra.mxu0 0.0
    %3094 = vmatprep.subr.mxu0 0.0
    %3095 = vmatpush1.msra.mxu0 0.0
    %3096 = vmatprep.subr.mxu0 0.0
    %3097 = vmatpush1.msra.mxu0 0.0
    %3098 = vmatprep.subr.mxu0 0.0
    %3099 = vmatpush1.msra.mxu0 0.0
    %3100 = vmatprep.subr.mxu0 0.0
    %3101 = vmatpush1.msra.mxu0 0.0
    %3102 = vmatprep.subr.mxu0 0.0
    %3103 = vmatpush1.msra.mxu0 0.0
    %3104 = vmatprep.subr.mxu0 0.0
    %3105 = vmatpush1.msra.mxu0 0.0
    %3106 = vmatprep.subr.mxu0 0.0
    %3107 = vmatpush1.msra.mxu0 0.0
    %3108 = vmatprep.subr.mxu0 0.0
    %3109 = vmatpush1.msra.mxu0 0.0
    %3110 = vmatprep.subr.mxu0 0.0
    %3111 = vmatpush1.msra.mxu0 0.0
    %3112 = vmatprep.subr.mxu0 0.0
    %3113 = vmatpush1.msra.mxu0 0.0
    %3114 = vmatprep.subr.mxu0 0.0
    %3115 = vmatpush1.msra.mxu0 0.0
    %3116 = vmatprep.subr.mxu0 0.0
    %3117 = vmatpush1.msra.mxu0 0.0
    %3118 = vmatprep.subr.mxu0 0.0
    %3119 = vmatpush1.msra.mxu0 0.0
    %3120 = vmatprep.subr.mxu0 0.0
    %3121 = vmatpush1.msra.mxu0 0.0
    %3122 = vmatprep.subr.mxu0 0.0
    %3123 = vmatpush1.msra.mxu0 0.0
    %3124 = vmatprep.subr.mxu0 0.0
    %3125 = vmatpush1.msra.mxu0 0.0
    %3126 = vmatprep.subr.mxu0 0.0
    %3127 = vmatpush1.msra.mxu0 0.0
    %3128 = vmatprep.subr.mxu0 0.0
    %3129 = vmatpush1.msra.mxu0 0.0
    %3130 = vmatprep.subr.mxu0 0.0
    %3131 = vmatpush1.msra.mxu0 0.0
    %3132 = vmatprep.subr.mxu0 0.0
    %3133 = vmatpush1.msra.mxu0 0.0
    %3134 = vmatprep.subr.mxu0 0.0
    %3135 = vmatpush1.msra.mxu0 0.0
    %3136 = vmatprep.subr.mxu0 0.0
    %3137 = vmatpush1.msra.mxu0 0.0
    %3138 = vmatprep.subr.mxu0 0.0
    %3139 = vmatpush1.msra.mxu0 0.0
    %3140 = vmatprep.mubr.f32.mxu0 0.0
    %3141 = vmatmul.mubr.f32.gmra.mrb[0].mxu0 %v3074
    %v3142 = vpop.f32.mrb[0].mxu0
    %v3143 = vadd.f32 0.0, %v3142
    %v3144 = vpop.f32.mrb[0].mxu0
    %3145 = vdwg.mxu0
    %v3146 = vadd.f32 %v2141, %v3143
    %v3147 = vld [vmem:[%s13] sm:$0x1]
    %v3149 = vlaneseq
    %v3150 = vshrl.u32 %v3149, 7
    %v3151 = vsub.s32 0, %v3150
    %v3152 = vrot.slane %v3147, %v3151
    %v3154 = vadd.f32 %v3146, %v3152
    %vm3155 = vcmask 517120
    %3156 = vst.msk [vmem:[#allocation12] sm:$0x3] %vm3155, %v3154
    // Predicated region
    $region74: #{tpu_custom_call.1} parent=1 // pred_check
      _
    $region75: #{tpu_custom_call.1} parent=1 // pred_check_branch
      %3158 = sbr.rel (0) target = $region77
    $region76: #{tpu_custom_call.1} parent=1 // pred_region
      %s3160 = ssub.s32 32, 32
      %3161 = vsyncadd [#allocation6], %s3160
      %s3163 = sshll.u32 [#allocation12], 4
      %s3164 = int_to_ptr.vmem [resolvable:$true] %s3163
      %3166 = dma.vmem_to_hbm [thread:$0]  %s3164, 32, %s14, [#allocation6]
    $region77: #{tpu_custom_call.1} parent=1 // pred_fallthru
      _
    // Predicated region
    $region78: #{tpu_custom_call.1} parent=1 // pred_check
      _
    $region79: #{tpu_custom_call.1} parent=1 // pred_check_branch
      %3168 = sbr.rel (0) target = $region81
    $region80: #{tpu_custom_call.1} parent=1 // pred_region
      %s3170 = ssub.s32 96, 96
      %3171 = vsyncadd [#allocation14], %s3170
      %s3172 = sshll.u32 [#allocation13], 4
      %s3173 = int_to_ptr.vmem [resolvable:$true] %s3172
      %3178 = dma.vmem_to_hbm [thread:$0]  %s3173, 96, %s15, [#allocation14], 32, 32, 2
    $region81: #{tpu_custom_call.1} parent=1 // pred_fallthru
      _
    // Predicated region
    $region82: #{tpu_custom_call.1} parent=1 // pred_check
      _
    $region83: #{tpu_custom_call.1} parent=1 // pred_check_branch
      %3180 = sbr.rel (0) target = $region85
    $region84: #{tpu_custom_call.1} parent=1 // pred_region
      %s3182 = ssub.s32 96, 96
      %3183 = vsyncadd [#allocation14], %s3182
      %s3184 = sshll.u32 [#allocation15], 4
      %s3185 = int_to_ptr.vmem [resolvable:$true] %s3184
      %3190 = dma.vmem_to_hbm [thread:$0]  %s3185, 96, %s16, [#allocation14], 32, 32, 2
    $region85: #{tpu_custom_call.1} parent=1 // pred_fallthru
      _
    // Predicated region
    $region86: #{tpu_custom_call.1} parent=1 // pred_check
      _
    $region87: #{tpu_custom_call.1} parent=1 // pred_check_branch
      %3192 = sbr.rel (0) target = $region89
    $region88: #{tpu_custom_call.1} parent=1 // pred_region
      %3193 = dma.done [#allocation6], 32
    $region89: #{tpu_custom_call.1} parent=1 // pred_fallthru
      _
    // Predicated region
    $region90: #{tpu_custom_call.1} parent=1 // pred_check
      _
    $region91: #{tpu_custom_call.1} parent=1 // pred_check_branch
      %3195 = sbr.rel (0) target = $region93
    $region92: #{tpu_custom_call.1} parent=1 // pred_region
      %3196 = dma.done [#allocation14], 96
    $region93: #{tpu_custom_call.1} parent=1 // pred_fallthru
      _
    // Predicated region
    $region94: #{tpu_custom_call.1} parent=1 // pred_check
      _
    $region95: #{tpu_custom_call.1} parent=1 // pred_check_branch
      %3198 = sbr.rel (0) target = $region97
    $region96: #{tpu_custom_call.1} parent=1 // pred_region
      %3199 = dma.done [#allocation14], 96
    $region97: #{tpu_custom_call.1} parent=1 // pred_fallthru
      _
    %3200 = vsyncpa [#allocation5], 1
    %3201 = vsyncpa [#allocation8], 1
    %3202 = vsyncpa [#allocation11], 1
    %3203 = vsyncpa [#allocation6], 1
    %3204 = vsyncpa [#allocation14], 1

</llo_original>
